<compile_context>
chip_gen: v7x
topology: tpu7x:2x2x1
jax: 0.10.0
libtpu: 0.0.40
codegen_flags: <defaults>
</compile_context>

<pallas_src>
import numpy as np

import jax
import jax.numpy as jnp
from jax import lax
from jax.experimental import pallas as pl
from jax.experimental.pallas import tpu as pltpu

# ---------------------------------------------------------------------------
# Model hyper-parameters (mirrors the PyTorch module, with a small Sc)
# ---------------------------------------------------------------------------
Sc = 28                                  # original script uses 200
K = 5                                    # conv kernel size
N_IN_CH = 1
N_CLASSES = 14                           # len(classes) in the original
C1, C2 = 6, 16                           # conv output channels
CONV1_HW = Sc - K + 1                    # 24
POOL1_HW = CONV1_HW // 2                 # 12
CONV2_HW = POOL1_HW - K + 1              # 8
DIM_FLAT = CONV2_HW // 2                 # 4   (== ((Sc-4)//2 - 4)//2)
FLAT_IN = C2 * DIM_FLAT * DIM_FLAT       # 256
FC1, FC2 = 120, 84

W_P1 = C1 * CONV1_HW                     # 144 (conv1 / pooled1 lane width)
W_H2 = C2 * CONV2_HW                     # 128 (conv2 / pooled2 lane width)
FC1_IN_PACKED = DIM_FLAT * W_H2          # 512 (uncompacted flatten width)
PAD_OUT = 128                            # lane-dense padded logits width

BATCH_TILE = 8                           # images per grid step


# ---------------------------------------------------------------------------
# Host-side weight packing (one-time, outside the forward pass)
# ---------------------------------------------------------------------------
def pack_params(params, batch_tile=BATCH_TILE):
    """Pre-pack PyTorch-layout params into the kernel's constant operands."""
    w1 = np.asarray(params["w1"], np.float32)   # (6,1,5,5)
    b1 = np.asarray(params["b1"], np.float32)
    w2 = np.asarray(params["w2"], np.float32)   # (16,6,5,5)
    b2 = np.asarray(params["b2"], np.float32)
    wf1 = np.asarray(params["wf1"], np.float32)  # (120,256)
    bf1 = np.asarray(params["bf1"], np.float32)
    wf2 = np.asarray(params["wf2"], np.float32)  # (84,120)
    bf2 = np.asarray(params["bf2"], np.float32)
    wf3 = np.asarray(params["wf3"], np.float32)  # (14,84)
    bf3 = np.asarray(params["bf3"], np.float32)

    # conv1 Toeplitz, kh folded into the contraction axis: (K*Sc, C1*24).
    # h1[(b,y), c*24+xo] = sum_{kh,xin} img[b, y+kh, xin] * t1[kh*Sc+xin, c*24+xo]
    t1 = np.zeros((K * Sc, W_P1), np.float32)
    for kh in range(K):
        for kw in range(K):
            for xo in range(CONV1_HW):
                t1[kh * Sc + xo + kw, np.arange(C1) * CONV1_HW + xo] = w1[:, 0, kh, kw]
    b1row = np.repeat(b1, CONV1_HW)[None, :]                       # (1, 144)

    # pool1 vertical-compaction 0/1 selector; output rows ordered [yp, b] so
    # downstream stages only need contiguous B-row slices.
    bt = batch_tile
    sel1 = np.zeros((bt * POOL1_HW, bt * CONV1_HW), np.float32)
    for yp in range(POOL1_HW):
        for b in range(bt):
            sel1[yp * bt + b, b * CONV1_HW + 2 * yp] = 1.0

    # conv2 Toeplitz, kh folded, defined over the UNCOMPACTED pooled1 columns:
    # nonzero only at even xin (= 2*(x2+kw)); odd-column garbage is zeroed here
    # (this absorbs the horizontal-pool compaction).
    t2 = np.zeros((K * W_P1, W_H2), np.float32)
    for kh in range(K):
        for ci in range(C1):
            for kw in range(K):
                for x2 in range(CONV2_HW):
                    t2[kh * W_P1 + ci * CONV1_HW + 2 * (x2 + kw),
                       np.arange(C2) * CONV2_HW + x2] = w2[:, ci, kh, kw]
    b2row = np.repeat(b2, CONV2_HW)[None, :]                       # (1, 128)

    # fc1 over the uncompacted pooled2 flatten layout [y4*128 + c2*8 + 2*x4];
    # absorbs torch.flatten's (c2, y4, x4) order and the horizontal compaction.
    wf1p = np.zeros((FC1_IN_PACKED, FC1), np.float32)
    for y4 in range(DIM_FLAT):
        for c2 in range(C2):
            for x4 in range(DIM_FLAT):
                wf1p[y4 * W_H2 + c2 * CONV2_HW + 2 * x4, :] = \
                    wf1[:, c2 * DIM_FLAT * DIM_FLAT + y4 * DIM_FLAT + x4]
    bf1row = bf1[None, :]

    wf2t = wf2.T                                                   # (120, 84)
    bf2row = bf2[None, :]

    # fc3 padded to 128 output lanes (unmasked store; extra cols are exactly 0).
    wf3p = np.zeros((FC2, PAD_OUT), np.float32)
    wf3p[:, :N_CLASSES] = wf3.T
    bf3p = np.zeros((1, PAD_OUT), np.float32)
    bf3p[0, :N_CLASSES] = bf3

    packed = (t1, b1row, sel1, t2, b2row,
              wf1p, bf1row, wf2t, bf2row, wf3p, bf3p)
    # TODO(synk): at Sc=200 cast these slabs to bf16 (keep f32 accumulation).
    return tuple(jnp.asarray(a, jnp.float32) for a in packed)


# ---------------------------------------------------------------------------
# Fused Pallas kernel: whole forward pass for BATCH_TILE images per grid step
# ---------------------------------------------------------------------------
def _net_kernel(x_ref, t1_ref, b1_ref, sel1_ref, t2_ref, b2_ref,
                wf1_ref, bf1_ref, wf2_ref, bf2_ref, wf3_ref, bf3_ref, o_ref):
    bt = x_ref.shape[0]

    def mm(a, b):
        return jnp.dot(a, b, preferred_element_type=jnp.float32)

    def shift_left_cols(h):   # shifted[:, x] = h[:, x+1] (wrap col is unused)
        return jnp.concatenate([h[:, 1:], h[:, :1]], axis=1)

    def shift_up_rows(h):     # shifted[y, :] = h[y+1, :] (wrap row is unused)
        return jnp.concatenate([h[1:, :], h[:1, :]], axis=0)

    # ---- conv1 (kh folded): one (bt*24, 140) x (140, 144) matmul -----------
    xb = x_ref[...]                                              # (bt, 28, 28)
    lhs1 = jnp.concatenate(
        [xb[:, kh:kh + CONV1_HW, :] for kh in range(K)], axis=2)  # (bt,24,140)
    lhs1 = lhs1.reshape(bt * CONV1_HW, K * Sc)     # rows [b, y]; 24 % 8 == 0
    h1 = jnp.maximum(mm(lhs1, t1_ref[...]) + b1_ref[...], 0.0)   # (bt*24, 144)

    # ---- pool1: lane-shift max (horizontal) + row-pair max, then one small
    #      0/1 selection matmul compacts rows into [yp, b] order -------------
    h1 = jnp.maximum(h1, shift_left_cols(h1))      # valid at even x (per chan)
    pvsrc = jnp.maximum(h1, shift_up_rows(h1))     # valid at even y (per image)
    pv1 = mm(sel1_ref[...], pvsrc)                 # (12*bt, 144), rows [yp, b]

    # ---- conv2 (kh folded): LHS rows [y2, b], lanes kh*144 + pooled1 cols ---
    lhs2 = jnp.concatenate([
        jnp.concatenate([pv1[(y2 + kh) * bt:(y2 + kh + 1) * bt, :]
                         for kh in range(K)], axis=1)
        for y2 in range(CONV2_HW)], axis=0)                       # (8*bt, 720)
    h2 = jnp.maximum(mm(lhs2, t2_ref[...]) + b2_ref[...], 0.0)    # (8*bt, 128)

    # ---- pool2 + flatten: rows are y2-major, so vertical pairs are two
    #      contiguous bt-row blocks; flatten is a lane concat -> (bt, 512) ----
    h2 = jnp.maximum(h2, shift_left_cols(h2))      # valid at even x (per chan)
    lhsf = jnp.concatenate(
        [jnp.maximum(h2[(2 * y4) * bt:(2 * y4 + 1) * bt, :],
                     h2[(2 * y4 + 1) * bt:(2 * y4 + 2) * bt, :])
         for y4 in range(DIM_FLAT)], axis=1)                      # (bt, 512)

    # ---- fc1 / fc2 / fc3 (single batched matmuls, fc3 padded to 128 lanes) --
    f1 = jnp.maximum(mm(lhsf, wf1_ref[...]) + bf1_ref[...], 0.0)  # (bt, 120)
    f2 = jnp.maximum(mm(f1, wf2_ref[...]) + bf2_ref[...], 0.0)    # (bt, 84)
    o_ref[...] = mm(f2, wf3_ref[...]) + bf3_ref[...]              # (bt, 128)


def _const_spec(a):
    zeros = (0,) * a.ndim
    return pl.BlockSpec(a.shape, lambda i, _z=zeros: _z)


def net_forward(x_nchw, packed):
    """x_nchw: (N, 1, Sc, Sc) float32 -> (N, N_CLASSES) float32 logits."""
    n = x_nchw.shape[0]
    bt = packed[2].shape[0] // POOL1_HW          # batch tile baked into sel1
    x3d = x_nchw.reshape(n, Sc, Sc)              # Cin == 1 (free, contiguous)
    n_pad = -(-n // bt) * bt
    if n_pad != n:                               # pad batch to a tile multiple
        x3d = jnp.concatenate(
            [x3d, jnp.zeros((n_pad - n, Sc, Sc), x3d.dtype)], axis=0)

    in_specs = [pl.BlockSpec((bt, Sc, Sc), lambda i: (i, 0, 0))]
    in_specs += [_const_spec(a) for a in packed]

    out = pl.pallas_call(
        _net_kernel,
        out_shape=jax.ShapeDtypeStruct((n_pad, PAD_OUT), jnp.float32),
        grid_spec=pltpu.PrefetchScalarGridSpec(
            num_scalar_prefetch=0,
            grid=(n_pad // bt,),
            in_specs=in_specs,
            out_specs=pl.BlockSpec((bt, PAD_OUT), lambda i: (i, 0)),
        ),
        compiler_params=pltpu.CompilerParams(
            dimension_semantics=("parallel",),     # v7x: split batch on 2 TCs
            vmem_limit_bytes=32 * 1024 * 1024,
        ),
    )(x3d, *packed)
    return out[:n, :N_CLASSES]


# ---------------------------------------------------------------------------
# Pure-JAX reference (PyTorch semantics) for a correctness check
# ---------------------------------------------------------------------------
def net_forward_reference(x, p):
    hp = lax.Precision.HIGHEST
    y = lax.conv_general_dilated(
        x, p["w1"], (1, 1), "VALID",
        dimension_numbers=("NCHW", "OIHW", "NCHW"), precision=hp)
    y = jnp.maximum(y + p["b1"][None, :, None, None], 0.0)
    y = lax.reduce_window(y, -jnp.inf, lax.max, (1, 1, 2, 2), (1, 1, 2, 2), "VALID")
    y = lax.conv_general_dilated(
        y, p["w2"], (1, 1), "VALID",
        dimension_numbers=("NCHW", "OIHW", "NCHW"), precision=hp)
    y = jnp.maximum(y + p["b2"][None, :, None, None], 0.0)
    y = lax.reduce_window(y, -jnp.inf, lax.max, (1, 1, 2, 2), (1, 1, 2, 2), "VALID")
    y = y.reshape(y.shape[0], -1)
    y = jnp.maximum(jnp.dot(y, p["wf1"].T, precision=hp) + p["bf1"], 0.0)
    y = jnp.maximum(jnp.dot(y, p["wf2"].T, precision=hp) + p["bf2"], 0.0)
    return jnp.dot(y, p["wf3"].T, precision=hp) + p["bf3"]


# ---------------------------------------------------------------------------
# Deterministic parameter init (PyTorch-style uniform(+-1/sqrt(fan_in)))
# ---------------------------------------------------------------------------
def init_params(key):
    def u(k, shape, fan_in):
        bound = 1.0 / jnp.sqrt(jnp.float32(fan_in))
        return jax.random.uniform(k, shape, jnp.float32, -bound, bound)

    ks = jax.random.split(key, 10)
    return {
        "w1": u(ks[0], (C1, N_IN_CH, K, K), N_IN_CH * K * K),
        "b1": u(ks[1], (C1,), N_IN_CH * K * K),
        "w2": u(ks[2], (C2, C1, K, K), C1 * K * K),
        "b2": u(ks[3], (C2,), C1 * K * K),
        "wf1": u(ks[4], (FC1, FLAT_IN), FLAT_IN),
        "bf1": u(ks[5], (FC1,), FLAT_IN),
        "wf2": u(ks[6], (FC2, FC1), FC1),
        "bf2": u(ks[7], (FC2,), FC1),
        "wf3": u(ks[8], (N_CLASSES, FC2), FC2),
        "bf3": u(ks[9], (N_CLASSES,), FC2),
    }


if __name__ == "__main__":
    key = jax.random.PRNGKey(0)
    k_x, k_p = jax.random.split(key)
    batch = 16                       # 2 grid steps of BATCH_TILE=8 (even, >=2)
    x = jax.random.normal(k_x, (batch, N_IN_CH, Sc, Sc), jnp.float32)  # NCHW
    params = init_params(k_p)
    packed = pack_params(params)

    logits = jax.jit(net_forward)(x, packed)
    logits = jax.block_until_ready(logits)

    assert logits.shape == (batch, N_CLASSES), logits.shape
    assert logits.dtype == jnp.float32

    ref = net_forward_reference(x, params)
    err = float(jnp.max(jnp.abs(logits - ref)))
    assert err < 2e-2, f"max abs diff vs reference: {err}"

    print("KERNEL_OK")
</pallas_src>

<mosaic_0001>
module attributes {stable_mosaic.version = 11 : i64} {
  func.func @_net_kernel(%arg0: i32, %arg1: memref<8x28x28xf32, #tpu.memory_space<vmem>>, %arg2: memref<140x144xf32, #tpu.memory_space<vmem>>, %arg3: memref<1x144xf32, #tpu.memory_space<vmem>>, %arg4: memref<96x192xf32, #tpu.memory_space<vmem>>, %arg5: memref<720x128xf32, #tpu.memory_space<vmem>>, %arg6: memref<1x128xf32, #tpu.memory_space<vmem>>, %arg7: memref<512x120xf32, #tpu.memory_space<vmem>>, %arg8: memref<1x120xf32, #tpu.memory_space<vmem>>, %arg9: memref<120x84xf32, #tpu.memory_space<vmem>>, %arg10: memref<1x84xf32, #tpu.memory_space<vmem>>, %arg11: memref<84x128xf32, #tpu.memory_space<vmem>>, %arg12: memref<1x128xf32, #tpu.memory_space<vmem>>, %arg13: memref<8x128xf32, #tpu.memory_space<vmem>>) attributes {dimension_semantics = [#tpu.dimension_semantics<parallel>], iteration_bounds = array<i64: 2>, scalar_prefetch = 0 : i64, scratch_operands = 0 : i64, tpu.core_type = #tpu.core_type<tc>, window_params = [{transform_indices = @transform_0, window_bounds = array<i64: 8, 28, 28>}, {pipeline_mode = #tpu.pipeline_mode<synchronous>, transform_indices = @transform_1, window_bounds = array<i64: 140, 144>}, {pipeline_mode = #tpu.pipeline_mode<synchronous>, transform_indices = @transform_2, window_bounds = array<i64: 1, 144>}, {pipeline_mode = #tpu.pipeline_mode<synchronous>, transform_indices = @transform_3, window_bounds = array<i64: 96, 192>}, {pipeline_mode = #tpu.pipeline_mode<synchronous>, transform_indices = @transform_4, window_bounds = array<i64: 720, 128>}, {pipeline_mode = #tpu.pipeline_mode<synchronous>, transform_indices = @transform_5, window_bounds = array<i64: 1, 128>}, {pipeline_mode = #tpu.pipeline_mode<synchronous>, transform_indices = @transform_6, window_bounds = array<i64: 512, 120>}, {pipeline_mode = #tpu.pipeline_mode<synchronous>, transform_indices = @transform_7, window_bounds = array<i64: 1, 120>}, {pipeline_mode = #tpu.pipeline_mode<synchronous>, transform_indices = @transform_8, window_bounds = array<i64: 120, 84>}, {pipeline_mode = #tpu.pipeline_mode<synchronous>, transform_indices = @transform_9, window_bounds = array<i64: 1, 84>}, {pipeline_mode = #tpu.pipeline_mode<synchronous>, transform_indices = @transform_10, window_bounds = array<i64: 84, 128>}, {pipeline_mode = #tpu.pipeline_mode<synchronous>, transform_indices = @transform_11, window_bounds = array<i64: 1, 128>}, {transform_indices = @transform_12, window_bounds = array<i64: 8, 128>}]} {
    %c0 = arith.constant 0 : index
    %c0_0 = arith.constant 0 : index
    %c0_1 = arith.constant 0 : index
    %0 = vector.load %arg1[%c0, %c0_0, %c0_1] : memref<8x28x28xf32, #tpu.memory_space<vmem>>, vector<8x28x28xf32>
    %1 = vector.extract_strided_slice %0 {offsets = [0, 0, 0], sizes = [8, 24, 28], strides = [1, 1, 1]} : vector<8x28x28xf32> to vector<8x24x28xf32>
    %2 = vector.extract_strided_slice %0 {offsets = [0, 1, 0], sizes = [8, 24, 28], strides = [1, 1, 1]} : vector<8x28x28xf32> to vector<8x24x28xf32>
    %3 = vector.extract_strided_slice %0 {offsets = [0, 2, 0], sizes = [8, 24, 28], strides = [1, 1, 1]} : vector<8x28x28xf32> to vector<8x24x28xf32>
    %4 = vector.extract_strided_slice %0 {offsets = [0, 3, 0], sizes = [8, 24, 28], strides = [1, 1, 1]} : vector<8x28x28xf32> to vector<8x24x28xf32>
    %5 = vector.extract_strided_slice %0 {offsets = [0, 4, 0], sizes = [8, 24, 28], strides = [1, 1, 1]} : vector<8x28x28xf32> to vector<8x24x28xf32>
    %6 = tpu.concatenate %1, %2, %3, %4, %5 in 2 : vector<8x24x28xf32>, vector<8x24x28xf32>, vector<8x24x28xf32>, vector<8x24x28xf32>, vector<8x24x28xf32> -> vector<8x24x140xf32>
    %7 = vector.shape_cast %6 : vector<8x24x140xf32> to vector<192x140xf32>
    %c0_2 = arith.constant 0 : index
    %c0_3 = arith.constant 0 : index
    %8 = vector.load %arg2[%c0_2, %c0_3] : memref<140x144xf32, #tpu.memory_space<vmem>>, vector<140x144xf32>
    %cst = arith.constant dense<0.000000e+00> : vector<192x144xf32>
    %9 = tpu.matmul %7, %8, %cst {dimension_numbers = #tpu.dot_dimension_numbers<[1], [0], [0], [1], [0, 0, 1, 1], [], []>} : vector<192x140xf32>, vector<140x144xf32>, vector<192x144xf32> -> vector<192x144xf32>
    %c0_4 = arith.constant 0 : index
    %c0_5 = arith.constant 0 : index
    %10 = vector.load %arg3[%c0_4, %c0_5] : memref<1x144xf32, #tpu.memory_space<vmem>>, vector<1x144xf32>
    %11 = vector.broadcast %10 : vector<1x144xf32> to vector<192x144xf32>
    %12 = arith.addf %9, %11 : vector<192x144xf32>
    %cst_6 = arith.constant 0.000000e+00 : f32
    %13 = vector.broadcast %cst_6 : f32 to vector<192x144xf32>
    %14 = arith.maximumf %12, %13 : vector<192x144xf32>
    %15 = vector.extract_strided_slice %14 {offsets = [0, 1], sizes = [192, 143], strides = [1, 1]} : vector<192x144xf32> to vector<192x143xf32>
    %16 = vector.extract_strided_slice %14 {offsets = [0, 0], sizes = [192, 1], strides = [1, 1]} : vector<192x144xf32> to vector<192x1xf32>
    %17 = tpu.concatenate %15, %16 in 1 : vector<192x143xf32>, vector<192x1xf32> -> vector<192x144xf32>
    %18 = arith.maximumf %14, %17 : vector<192x144xf32>
    %19 = vector.extract_strided_slice %18 {offsets = [1, 0], sizes = [191, 144], strides = [1, 1]} : vector<192x144xf32> to vector<191x144xf32>
    %20 = vector.extract_strided_slice %18 {offsets = [0, 0], sizes = [1, 144], strides = [1, 1]} : vector<192x144xf32> to vector<1x144xf32>
    %21 = tpu.concatenate %19, %20 in 0 : vector<191x144xf32>, vector<1x144xf32> -> vector<192x144xf32>
    %22 = arith.maximumf %18, %21 : vector<192x144xf32>
    %c0_7 = arith.constant 0 : index
    %c0_8 = arith.constant 0 : index
    %23 = vector.load %arg4[%c0_7, %c0_8] : memref<96x192xf32, #tpu.memory_space<vmem>>, vector<96x192xf32>
    %cst_9 = arith.constant dense<0.000000e+00> : vector<96x144xf32>
    %24 = tpu.matmul %23, %22, %cst_9 {dimension_numbers = #tpu.dot_dimension_numbers<[1], [0], [0], [1], [0, 0, 1, 1], [], []>} : vector<96x192xf32>, vector<192x144xf32>, vector<96x144xf32> -> vector<96x144xf32>
    %25 = vector.extract_strided_slice %24 {offsets = [0, 0], sizes = [8, 144], strides = [1, 1]} : vector<96x144xf32> to vector<8x144xf32>
    %26 = vector.extract_strided_slice %24 {offsets = [8, 0], sizes = [8, 144], strides = [1, 1]} : vector<96x144xf32> to vector<8x144xf32>
    %27 = vector.extract_strided_slice %24 {offsets = [16, 0], sizes = [8, 144], strides = [1, 1]} : vector<96x144xf32> to vector<8x144xf32>
    %28 = vector.extract_strided_slice %24 {offsets = [24, 0], sizes = [8, 144], strides = [1, 1]} : vector<96x144xf32> to vector<8x144xf32>
    %29 = vector.extract_strided_slice %24 {offsets = [32, 0], sizes = [8, 144], strides = [1, 1]} : vector<96x144xf32> to vector<8x144xf32>
    %30 = tpu.concatenate %25, %26, %27, %28, %29 in 1 : vector<8x144xf32>, vector<8x144xf32>, vector<8x144xf32>, vector<8x144xf32>, vector<8x144xf32> -> vector<8x720xf32>
    %31 = vector.extract_strided_slice %24 {offsets = [8, 0], sizes = [8, 144], strides = [1, 1]} : vector<96x144xf32> to vector<8x144xf32>
    %32 = vector.extract_strided_slice %24 {offsets = [16, 0], sizes = [8, 144], strides = [1, 1]} : vector<96x144xf32> to vector<8x144xf32>
    %33 = vector.extract_strided_slice %24 {offsets = [24, 0], sizes = [8, 144], strides = [1, 1]} : vector<96x144xf32> to vector<8x144xf32>
    %34 = vector.extract_strided_slice %24 {offsets = [32, 0], sizes = [8, 144], strides = [1, 1]} : vector<96x144xf32> to vector<8x144xf32>
    %35 = vector.extract_strided_slice %24 {offsets = [40, 0], sizes = [8, 144], strides = [1, 1]} : vector<96x144xf32> to vector<8x144xf32>
    %36 = tpu.concatenate %31, %32, %33, %34, %35 in 1 : vector<8x144xf32>, vector<8x144xf32>, vector<8x144xf32>, vector<8x144xf32>, vector<8x144xf32> -> vector<8x720xf32>
    %37 = vector.extract_strided_slice %24 {offsets = [16, 0], sizes = [8, 144], strides = [1, 1]} : vector<96x144xf32> to vector<8x144xf32>
    %38 = vector.extract_strided_slice %24 {offsets = [24, 0], sizes = [8, 144], strides = [1, 1]} : vector<96x144xf32> to vector<8x144xf32>
    %39 = vector.extract_strided_slice %24 {offsets = [32, 0], sizes = [8, 144], strides = [1, 1]} : vector<96x144xf32> to vector<8x144xf32>
    %40 = vector.extract_strided_slice %24 {offsets = [40, 0], sizes = [8, 144], strides = [1, 1]} : vector<96x144xf32> to vector<8x144xf32>
    %41 = vector.extract_strided_slice %24 {offsets = [48, 0], sizes = [8, 144], strides = [1, 1]} : vector<96x144xf32> to vector<8x144xf32>
    %42 = tpu.concatenate %37, %38, %39, %40, %41 in 1 : vector<8x144xf32>, vector<8x144xf32>, vector<8x144xf32>, vector<8x144xf32>, vector<8x144xf32> -> vector<8x720xf32>
    %43 = vector.extract_strided_slice %24 {offsets = [24, 0], sizes = [8, 144], strides = [1, 1]} : vector<96x144xf32> to vector<8x144xf32>
    %44 = vector.extract_strided_slice %24 {offsets = [32, 0], sizes = [8, 144], strides = [1, 1]} : vector<96x144xf32> to vector<8x144xf32>
    %45 = vector.extract_strided_slice %24 {offsets = [40, 0], sizes = [8, 144], strides = [1, 1]} : vector<96x144xf32> to vector<8x144xf32>
    %46 = vector.extract_strided_slice %24 {offsets = [48, 0], sizes = [8, 144], strides = [1, 1]} : vector<96x144xf32> to vector<8x144xf32>
    %47 = vector.extract_strided_slice %24 {offsets = [56, 0], sizes = [8, 144], strides = [1, 1]} : vector<96x144xf32> to vector<8x144xf32>
    %48 = tpu.concatenate %43, %44, %45, %46, %47 in 1 : vector<8x144xf32>, vector<8x144xf32>, vector<8x144xf32>, vector<8x144xf32>, vector<8x144xf32> -> vector<8x720xf32>
    %49 = vector.extract_strided_slice %24 {offsets = [32, 0], sizes = [8, 144], strides = [1, 1]} : vector<96x144xf32> to vector<8x144xf32>
    %50 = vector.extract_strided_slice %24 {offsets = [40, 0], sizes = [8, 144], strides = [1, 1]} : vector<96x144xf32> to vector<8x144xf32>
    %51 = vector.extract_strided_slice %24 {offsets = [48, 0], sizes = [8, 144], strides = [1, 1]} : vector<96x144xf32> to vector<8x144xf32>
    %52 = vector.extract_strided_slice %24 {offsets = [56, 0], sizes = [8, 144], strides = [1, 1]} : vector<96x144xf32> to vector<8x144xf32>
    %53 = vector.extract_strided_slice %24 {offsets = [64, 0], sizes = [8, 144], strides = [1, 1]} : vector<96x144xf32> to vector<8x144xf32>
    %54 = tpu.concatenate %49, %50, %51, %52, %53 in 1 : vector<8x144xf32>, vector<8x144xf32>, vector<8x144xf32>, vector<8x144xf32>, vector<8x144xf32> -> vector<8x720xf32>
    %55 = vector.extract_strided_slice %24 {offsets = [40, 0], sizes = [8, 144], strides = [1, 1]} : vector<96x144xf32> to vector<8x144xf32>
    %56 = vector.extract_strided_slice %24 {offsets = [48, 0], sizes = [8, 144], strides = [1, 1]} : vector<96x144xf32> to vector<8x144xf32>
    %57 = vector.extract_strided_slice %24 {offsets = [56, 0], sizes = [8, 144], strides = [1, 1]} : vector<96x144xf32> to vector<8x144xf32>
    %58 = vector.extract_strided_slice %24 {offsets = [64, 0], sizes = [8, 144], strides = [1, 1]} : vector<96x144xf32> to vector<8x144xf32>
    %59 = vector.extract_strided_slice %24 {offsets = [72, 0], sizes = [8, 144], strides = [1, 1]} : vector<96x144xf32> to vector<8x144xf32>
    %60 = tpu.concatenate %55, %56, %57, %58, %59 in 1 : vector<8x144xf32>, vector<8x144xf32>, vector<8x144xf32>, vector<8x144xf32>, vector<8x144xf32> -> vector<8x720xf32>
    %61 = vector.extract_strided_slice %24 {offsets = [48, 0], sizes = [8, 144], strides = [1, 1]} : vector<96x144xf32> to vector<8x144xf32>
    %62 = vector.extract_strided_slice %24 {offsets = [56, 0], sizes = [8, 144], strides = [1, 1]} : vector<96x144xf32> to vector<8x144xf32>
    %63 = vector.extract_strided_slice %24 {offsets = [64, 0], sizes = [8, 144], strides = [1, 1]} : vector<96x144xf32> to vector<8x144xf32>
    %64 = vector.extract_strided_slice %24 {offsets = [72, 0], sizes = [8, 144], strides = [1, 1]} : vector<96x144xf32> to vector<8x144xf32>
    %65 = vector.extract_strided_slice %24 {offsets = [80, 0], sizes = [8, 144], strides = [1, 1]} : vector<96x144xf32> to vector<8x144xf32>
    %66 = tpu.concatenate %61, %62, %63, %64, %65 in 1 : vector<8x144xf32>, vector<8x144xf32>, vector<8x144xf32>, vector<8x144xf32>, vector<8x144xf32> -> vector<8x720xf32>
    %67 = vector.extract_strided_slice %24 {offsets = [56, 0], sizes = [8, 144], strides = [1, 1]} : vector<96x144xf32> to vector<8x144xf32>
    %68 = vector.extract_strided_slice %24 {offsets = [64, 0], sizes = [8, 144], strides = [1, 1]} : vector<96x144xf32> to vector<8x144xf32>
    %69 = vector.extract_strided_slice %24 {offsets = [72, 0], sizes = [8, 144], strides = [1, 1]} : vector<96x144xf32> to vector<8x144xf32>
    %70 = vector.extract_strided_slice %24 {offsets = [80, 0], sizes = [8, 144], strides = [1, 1]} : vector<96x144xf32> to vector<8x144xf32>
    %71 = vector.extract_strided_slice %24 {offsets = [88, 0], sizes = [8, 144], strides = [1, 1]} : vector<96x144xf32> to vector<8x144xf32>
    %72 = tpu.concatenate %67, %68, %69, %70, %71 in 1 : vector<8x144xf32>, vector<8x144xf32>, vector<8x144xf32>, vector<8x144xf32>, vector<8x144xf32> -> vector<8x720xf32>
    %73 = tpu.concatenate %30, %36, %42, %48, %54, %60, %66, %72 in 0 : vector<8x720xf32>, vector<8x720xf32>, vector<8x720xf32>, vector<8x720xf32>, vector<8x720xf32>, vector<8x720xf32>, vector<8x720xf32>, vector<8x720xf32> -> vector<64x720xf32>
    %c0_10 = arith.constant 0 : index
    %c0_11 = arith.constant 0 : index
    %74 = vector.load %arg5[%c0_10, %c0_11] : memref<720x128xf32, #tpu.memory_space<vmem>>, vector<720x128xf32>
    %cst_12 = arith.constant dense<0.000000e+00> : vector<64x128xf32>
    %75 = tpu.matmul %73, %74, %cst_12 {dimension_numbers = #tpu.dot_dimension_numbers<[1], [0], [0], [1], [0, 0, 1, 1], [], []>} : vector<64x720xf32>, vector<720x128xf32>, vector<64x128xf32> -> vector<64x128xf32>
    %c0_13 = arith.constant 0 : index
    %c0_14 = arith.constant 0 : index
    %76 = vector.load %arg6[%c0_13, %c0_14] : memref<1x128xf32, #tpu.memory_space<vmem>>, vector<1x128xf32>
    %77 = vector.broadcast %76 : vector<1x128xf32> to vector<64x128xf32>
    %78 = arith.addf %75, %77 : vector<64x128xf32>
    %cst_15 = arith.constant 0.000000e+00 : f32
    %79 = vector.broadcast %cst_15 : f32 to vector<64x128xf32>
    %80 = arith.maximumf %78, %79 : vector<64x128xf32>
    %81 = vector.extract_strided_slice %80 {offsets = [0, 1], sizes = [64, 127], strides = [1, 1]} : vector<64x128xf32> to vector<64x127xf32>
    %82 = vector.extract_strided_slice %80 {offsets = [0, 0], sizes = [64, 1], strides = [1, 1]} : vector<64x128xf32> to vector<64x1xf32>
    %83 = tpu.concatenate %81, %82 in 1 : vector<64x127xf32>, vector<64x1xf32> -> vector<64x128xf32>
    %84 = arith.maximumf %80, %83 : vector<64x128xf32>
    %85 = vector.extract_strided_slice %84 {offsets = [0, 0], sizes = [8, 128], strides = [1, 1]} : vector<64x128xf32> to vector<8x128xf32>
    %86 = vector.extract_strided_slice %84 {offsets = [8, 0], sizes = [8, 128], strides = [1, 1]} : vector<64x128xf32> to vector<8x128xf32>
    %87 = arith.maximumf %85, %86 : vector<8x128xf32>
    %88 = vector.extract_strided_slice %84 {offsets = [16, 0], sizes = [8, 128], strides = [1, 1]} : vector<64x128xf32> to vector<8x128xf32>
    %89 = vector.extract_strided_slice %84 {offsets = [24, 0], sizes = [8, 128], strides = [1, 1]} : vector<64x128xf32> to vector<8x128xf32>
    %90 = arith.maximumf %88, %89 : vector<8x128xf32>
    %91 = vector.extract_strided_slice %84 {offsets = [32, 0], sizes = [8, 128], strides = [1, 1]} : vector<64x128xf32> to vector<8x128xf32>
    %92 = vector.extract_strided_slice %84 {offsets = [40, 0], sizes = [8, 128], strides = [1, 1]} : vector<64x128xf32> to vector<8x128xf32>
    %93 = arith.maximumf %91, %92 : vector<8x128xf32>
    %94 = vector.extract_strided_slice %84 {offsets = [48, 0], sizes = [8, 128], strides = [1, 1]} : vector<64x128xf32> to vector<8x128xf32>
    %95 = vector.extract_strided_slice %84 {offsets = [56, 0], sizes = [8, 128], strides = [1, 1]} : vector<64x128xf32> to vector<8x128xf32>
    %96 = arith.maximumf %94, %95 : vector<8x128xf32>
    %97 = tpu.concatenate %87, %90, %93, %96 in 1 : vector<8x128xf32>, vector<8x128xf32>, vector<8x128xf32>, vector<8x128xf32> -> vector<8x512xf32>
    %c0_16 = arith.constant 0 : index
    %c0_17 = arith.constant 0 : index
    %98 = vector.load %arg7[%c0_16, %c0_17] : memref<512x120xf32, #tpu.memory_space<vmem>>, vector<512x120xf32>
    %cst_18 = arith.constant dense<0.000000e+00> : vector<8x120xf32>
    %99 = tpu.matmul %97, %98, %cst_18 {dimension_numbers = #tpu.dot_dimension_numbers<[1], [0], [0], [1], [0, 0, 1, 1], [], []>} : vector<8x512xf32>, vector<512x120xf32>, vector<8x120xf32> -> vector<8x120xf32>
    %c0_19 = arith.constant 0 : index
    %c0_20 = arith.constant 0 : index
    %100 = vector.load %arg8[%c0_19, %c0_20] : memref<1x120xf32, #tpu.memory_space<vmem>>, vector<1x120xf32>
    %101 = vector.broadcast %100 : vector<1x120xf32> to vector<8x120xf32>
    %102 = arith.addf %99, %101 : vector<8x120xf32>
    %cst_21 = arith.constant 0.000000e+00 : f32
    %103 = vector.broadcast %cst_21 : f32 to vector<8x120xf32>
    %104 = arith.maximumf %102, %103 : vector<8x120xf32>
    %c0_22 = arith.constant 0 : index
    %c0_23 = arith.constant 0 : index
    %105 = vector.load %arg9[%c0_22, %c0_23] : memref<120x84xf32, #tpu.memory_space<vmem>>, vector<120x84xf32>
    %cst_24 = arith.constant dense<0.000000e+00> : vector<8x84xf32>
    %106 = tpu.matmul %104, %105, %cst_24 {dimension_numbers = #tpu.dot_dimension_numbers<[1], [0], [0], [1], [0, 0, 1, 1], [], []>} : vector<8x120xf32>, vector<120x84xf32>, vector<8x84xf32> -> vector<8x84xf32>
    %c0_25 = arith.constant 0 : index
    %c0_26 = arith.constant 0 : index
    %107 = vector.load %arg10[%c0_25, %c0_26] : memref<1x84xf32, #tpu.memory_space<vmem>>, vector<1x84xf32>
    %108 = vector.broadcast %107 : vector<1x84xf32> to vector<8x84xf32>
    %109 = arith.addf %106, %108 : vector<8x84xf32>
    %cst_27 = arith.constant 0.000000e+00 : f32
    %110 = vector.broadcast %cst_27 : f32 to vector<8x84xf32>
    %111 = arith.maximumf %109, %110 : vector<8x84xf32>
    %c0_28 = arith.constant 0 : index
    %c0_29 = arith.constant 0 : index
    %112 = vector.load %arg11[%c0_28, %c0_29] : memref<84x128xf32, #tpu.memory_space<vmem>>, vector<84x128xf32>
    %cst_30 = arith.constant dense<0.000000e+00> : vector<8x128xf32>
    %113 = tpu.matmul %111, %112, %cst_30 {dimension_numbers = #tpu.dot_dimension_numbers<[1], [0], [0], [1], [0, 0, 1, 1], [], []>} : vector<8x84xf32>, vector<84x128xf32>, vector<8x128xf32> -> vector<8x128xf32>
    %c0_31 = arith.constant 0 : index
    %c0_32 = arith.constant 0 : index
    %114 = vector.load %arg12[%c0_31, %c0_32] : memref<1x128xf32, #tpu.memory_space<vmem>>, vector<1x128xf32>
    %115 = vector.broadcast %114 : vector<1x128xf32> to vector<8x128xf32>
    %116 = arith.addf %113, %115 : vector<8x128xf32>
    %c0_33 = arith.constant 0 : index
    %c0_34 = arith.constant 0 : index
    %117 = vector.load %arg13[%c0_33, %c0_34] : memref<8x128xf32, #tpu.memory_space<vmem>>, vector<8x128xf32>
    tpu.vector_store %arg13[%c0_33, %c0_34], %116 {strides = array<i32>} : memref<8x128xf32, #tpu.memory_space<vmem>>, vector<8x128xf32>,
    return
  }
  func.func @transform_0(%arg0: i32) -> (i32, i32, i32) {
    %c0_i32 = arith.constant 0 : i32
    %c0_i32_0 = arith.constant 0 : i32
    %c0_i32_1 = arith.constant 0 : i32
    return %arg0, %c0_i32, %c0_i32_0 : i32, i32, i32
  }
  func.func @transform_1(%arg0: i32) -> (i32, i32) {
    %c0_i32 = arith.constant 0 : i32
    %c0_i32_0 = arith.constant 0 : i32
    %c0_i32_1 = arith.constant 0 : i32
    return %c0_i32, %c0_i32_0 : i32, i32
  }
  func.func @transform_2(%arg0: i32) -> (i32, i32) {
    %c0_i32 = arith.constant 0 : i32
    %c0_i32_0 = arith.constant 0 : i32
    %c0_i32_1 = arith.constant 0 : i32
    return %c0_i32, %c0_i32_0 : i32, i32
  }
  func.func @transform_3(%arg0: i32) -> (i32, i32) {
    %c0_i32 = arith.constant 0 : i32
    %c0_i32_0 = arith.constant 0 : i32
    %c0_i32_1 = arith.constant 0 : i32
    return %c0_i32, %c0_i32_0 : i32, i32
  }
  func.func @transform_4(%arg0: i32) -> (i32, i32) {
    %c0_i32 = arith.constant 0 : i32
    %c0_i32_0 = arith.constant 0 : i32
    %c0_i32_1 = arith.constant 0 : i32
    return %c0_i32, %c0_i32_0 : i32, i32
  }
  func.func @transform_5(%arg0: i32) -> (i32, i32) {
    %c0_i32 = arith.constant 0 : i32
    %c0_i32_0 = arith.constant 0 : i32
    %c0_i32_1 = arith.constant 0 : i32
    return %c0_i32, %c0_i32_0 : i32, i32
  }
  func.func @transform_6(%arg0: i32) -> (i32, i32) {
    %c0_i32 = arith.constant 0 : i32
    %c0_i32_0 = arith.constant 0 : i32
    %c0_i32_1 = arith.constant 0 : i32
    return %c0_i32, %c0_i32_0 : i32, i32
  }
  func.func @transform_7(%arg0: i32) -> (i32, i32) {
    %c0_i32 = arith.constant 0 : i32
    %c0_i32_0 = arith.constant 0 : i32
    %c0_i32_1 = arith.constant 0 : i32
    return %c0_i32, %c0_i32_0 : i32, i32
  }
  func.func @transform_8(%arg0: i32) -> (i32, i32) {
    %c0_i32 = arith.constant 0 : i32
    %c0_i32_0 = arith.constant 0 : i32
    %c0_i32_1 = arith.constant 0 : i32
    return %c0_i32, %c0_i32_0 : i32, i32
  }
  func.func @transform_9(%arg0: i32) -> (i32, i32) {
    %c0_i32 = arith.constant 0 : i32
    %c0_i32_0 = arith.constant 0 : i32
    %c0_i32_1 = arith.constant 0 : i32
    return %c0_i32, %c0_i32_0 : i32, i32
  }
  func.func @transform_10(%arg0: i32) -> (i32, i32) {
    %c0_i32 = arith.constant 0 : i32
    %c0_i32_0 = arith.constant 0 : i32
    %c0_i32_1 = arith.constant 0 : i32
    return %c0_i32, %c0_i32_0 : i32, i32
  }
  func.func @transform_11(%arg0: i32) -> (i32, i32) {
    %c0_i32 = arith.constant 0 : i32
    %c0_i32_0 = arith.constant 0 : i32
    %c0_i32_1 = arith.constant 0 : i32
    return %c0_i32, %c0_i32_0 : i32, i32
  }
  func.func @transform_12(%arg0: i32) -> (i32, i32) {
    %c0_i32 = arith.constant 0 : i32
    %c0_i32_0 = arith.constant 0 : i32
    return %arg0, %c0_i32 : i32, i32
  }
}

</mosaic_0001>

<llo_original>
// kernel: net_forward.1
$region0: #{net_forward.1}
  #allocation0 [shape = 'u32[]', space=smem, size = 0x4, offset = 0x4, fixed_abs, tag = 'smem constant byte address 0x4 - core index']
  #allocation1 [shape = 'u32[144,128]{1,0:T(1,128)}', space=vmem, size = 0x12000, scoped, tag = 'internal scratch']
  %s0 = inlined_call_operand.vmem [shape: f32[16,28,28], index: 0, kind: input, shape index: {}]
  %s1 = inlined_call_operand.vmem [shape: f32[140,144], index: 1, kind: input, shape index: {}]
  %s2 = inlined_call_operand.vmem [shape: f32[1,144], index: 2, kind: input, shape index: {}]
  %s3 = inlined_call_operand.vmem [shape: f32[96,192], index: 3, kind: input, shape index: {}]
  %s4 = inlined_call_operand.vmem [shape: f32[720,128], index: 4, kind: input, shape index: {}]
  %s5 = inlined_call_operand.vmem [shape: f32[1,128], index: 5, kind: input, shape index: {}]
  %s6 = inlined_call_operand.vmem [shape: f32[512,120], index: 6, kind: input, shape index: {}]
  %s7 = inlined_call_operand.vmem [shape: f32[1,120], index: 7, kind: input, shape index: {}]
  %s8 = inlined_call_operand.vmem [shape: f32[120,84], index: 8, kind: input, shape index: {}]
  %s9 = inlined_call_operand.vmem [shape: f32[1,84], index: 9, kind: input, shape index: {}]
  %s10 = inlined_call_operand.vmem [shape: f32[84,128], index: 10, kind: input, shape index: {}]
  %s11 = inlined_call_operand.vmem [shape: f32[1,128], index: 11, kind: input, shape index: {}]
  %s12 = inlined_call_operand.hbm [shape: f32[16,128], index: 12, kind: output, shape index: {}]
  %s13 = sld [smem:[#allocation0]]
  $region81: #{net_forward.1} parent=0
    _
  %s15 = ssub.s32 1, %s13
  %s16 = scalar_select 0, %s15, %s13
  $region1: #{net_forward.1} parent=0
    #allocation2 [shape = 'u8[8192]{0}', space=vmem, size = 0x2000, scoped, tag = 'output window, operand 0']
    #allocation3 [shape = 's32[2]{0}', space=sflag, size = 0x8, scoped, tag = 'scoped memory for net_forward.1']
    %17 = vsyncpa [#allocation3], 0
    %s18 = scalar_lea.sflag [#allocation3], 1
    %19 = vsyncpa %s18, 0
    loop: start=0, step=1, limit=4
    $region2: #{net_forward.1} parent=1 // loop_pre_header
      _
    $region3: #{net_forward.1} parent=1 // loop_header
      %s21 = sphi 0, %s25
      %p22 = scmp.ge.s32.totalorder %s21, 4
      %s31 = sphi 0, %s33
      %s34 = sphi 0, %s31
      %s35 = sphi 0, %s34
      %s51 = sphi 0, %s35
      %s55 = sphi 0, %s55
      %s57 = sphi 0, %s55
      %s58 = sphi 0, %s57
      %s72 = sphi 0, %s58
      %s76 = sphi 0, %s76
      %s78 = sphi 0, %s76
      %s79 = sphi 0, %s78
      %s93 = sphi 0, %s79
      %s97 = sphi 0, %s97
      %s99 = sphi 0, %s97
      %s100 = sphi 0, %s99
      %s114 = sphi 0, %s100
      %s118 = sphi 0, %s118
      %s120 = sphi 0, %s118
      %s121 = sphi 0, %s120
      %s135 = sphi 0, %s121
      %s139 = sphi 0, %s139
      %s141 = sphi 0, %s139
      %s142 = sphi 0, %s141
      %s156 = sphi 0, %s142
      %s160 = sphi 0, %s160
      %s162 = sphi 0, %s160
      %s163 = sphi 0, %s162
      %s177 = sphi 0, %s163
      %s181 = sphi 0, %s181
      %s183 = sphi 0, %s181
      %s184 = sphi 0, %s183
      %s198 = sphi 0, %s184
      %s202 = sphi 0, %s202
      %s204 = sphi 0, %s202
      %s205 = sphi 0, %s204
      %s219 = sphi 0, %s205
      %s223 = sphi 0, %s223
      %s225 = sphi 0, %s223
      %s226 = sphi 0, %s225
      %s240 = sphi 0, %s226
      %s244 = sphi 0, %s244
      %s246 = sphi 0, %s244
      %s247 = sphi 0, %s246
      %s261 = sphi 0, %s247
      %s265 = sphi 0, %s265
      %s267 = sphi 0, %s265
      %s268 = sphi 0, %s267
      %s282 = sphi 0, %s268
      %s288 = sphi 0, %s290
      %s291 = sphi 0, %s288
      %s292 = sphi 0, %s291
      %s308 = sphi 0, %s292
    $region4: #{net_forward.1} parent=1 // loop_header_branch
      %24 = sbr.rel (%p22) target = $region8
    $region5: #{net_forward.1} parent=1 // loop_body
      %s26 = ssub.s32 %s21, 1
      %s27 = ssub.s32 %s21, 2
      %s28 = sadd.s32 %s21, 1
      %s29 = ssub.s32 %s21, %s28
      %p30 = scmp.eq.s32.totalorder %s29, 0
      %s32 = sadd.s32 %s31, 1
      %s33 = scalar_select %p30, %s31, %s32
      %p36 = pneg %p30
      %p37 = scmp.eq.s32.totalorder %s21, 1
      %p38 = por %p36, %p37
      %p39 = scmp.ne.s32.totalorder %s31, %s34
      %p40 = scmp.eq.s32.totalorder %s21, 0
      %p41 = por %p39, %p40
      %p42 = scmp.ne.s32.totalorder %s31, %s34
      %p43 = scmp.eq.s32.totalorder %s26, 1
      %p44 = por %p42, %p43
      %p45 = scmp.ne.s32.totalorder %s34, %s35
      %p46 = scmp.eq.s32.totalorder %s26, 0
      %p47 = por %p45, %p46
      %p48 = scmp.ne.s32.totalorder %s34, %s35
      %p49 = scmp.eq.s32.totalorder %s27, 1
      %p50 = por %p48, %p49
      %p52 = scmp.ne.s32.totalorder %s35, %s51
      %p53 = scmp.eq.s32.totalorder %s27, 0
      %p54 = por %p52, %p53
      %s56 = sadd.s32 %s55, 1
      %p59 = scmp.eq.s32.totalorder %s21, 1
      %p60 = scmp.ne.s32.totalorder %s55, %s57
      %p61 = scmp.eq.s32.totalorder %s21, 0
      %p62 = por %p60, %p61
      %p63 = scmp.ne.s32.totalorder %s55, %s57
      %p64 = scmp.eq.s32.totalorder %s26, 1
      %p65 = por %p63, %p64
      %p66 = scmp.ne.s32.totalorder %s57, %s58
      %p67 = scmp.eq.s32.totalorder %s26, 0
      %p68 = por %p66, %p67
      %p69 = scmp.ne.s32.totalorder %s57, %s58
      %p70 = scmp.eq.s32.totalorder %s27, 1
      %p71 = por %p69, %p70
      %p73 = scmp.ne.s32.totalorder %s58, %s72
      %p74 = scmp.eq.s32.totalorder %s27, 0
      %p75 = por %p73, %p74
      %s77 = sadd.s32 %s76, 1
      %p80 = scmp.eq.s32.totalorder %s21, 1
      %p81 = scmp.ne.s32.totalorder %s76, %s78
      %p82 = scmp.eq.s32.totalorder %s21, 0
      %p83 = por %p81, %p82
      %p84 = scmp.ne.s32.totalorder %s76, %s78
      %p85 = scmp.eq.s32.totalorder %s26, 1
      %p86 = por %p84, %p85
      %p87 = scmp.ne.s32.totalorder %s78, %s79
      %p88 = scmp.eq.s32.totalorder %s26, 0
      %p89 = por %p87, %p88
      %p90 = scmp.ne.s32.totalorder %s78, %s79
      %p91 = scmp.eq.s32.totalorder %s27, 1
      %p92 = por %p90, %p91
      %p94 = scmp.ne.s32.totalorder %s79, %s93
      %p95 = scmp.eq.s32.totalorder %s27, 0
      %p96 = por %p94, %p95
      %s98 = sadd.s32 %s97, 1
      %p101 = scmp.eq.s32.totalorder %s21, 1
      %p102 = scmp.ne.s32.totalorder %s97, %s99
      %p103 = scmp.eq.s32.totalorder %s21, 0
      %p104 = por %p102, %p103
      %p105 = scmp.ne.s32.totalorder %s97, %s99
      %p106 = scmp.eq.s32.totalorder %s26, 1
      %p107 = por %p105, %p106
      %p108 = scmp.ne.s32.totalorder %s99, %s100
      %p109 = scmp.eq.s32.totalorder %s26, 0
      %p110 = por %p108, %p109
      %p111 = scmp.ne.s32.totalorder %s99, %s100
      %p112 = scmp.eq.s32.totalorder %s27, 1
      %p113 = por %p111, %p112
      %p115 = scmp.ne.s32.totalorder %s100, %s114
      %p116 = scmp.eq.s32.totalorder %s27, 0
      %p117 = por %p115, %p116
      %s119 = sadd.s32 %s118, 1
      %p122 = scmp.eq.s32.totalorder %s21, 1
      %p123 = scmp.ne.s32.totalorder %s118, %s120
      %p124 = scmp.eq.s32.totalorder %s21, 0
      %p125 = por %p123, %p124
      %p126 = scmp.ne.s32.totalorder %s118, %s120
      %p127 = scmp.eq.s32.totalorder %s26, 1
      %p128 = por %p126, %p127
      %p129 = scmp.ne.s32.totalorder %s120, %s121
      %p130 = scmp.eq.s32.totalorder %s26, 0
      %p131 = por %p129, %p130
      %p132 = scmp.ne.s32.totalorder %s120, %s121
      %p133 = scmp.eq.s32.totalorder %s27, 1
      %p134 = por %p132, %p133
      %p136 = scmp.ne.s32.totalorder %s121, %s135
      %p137 = scmp.eq.s32.totalorder %s27, 0
      %p138 = por %p136, %p137
      %s140 = sadd.s32 %s139, 1
      %p143 = scmp.eq.s32.totalorder %s21, 1
      %p144 = scmp.ne.s32.totalorder %s139, %s141
      %p145 = scmp.eq.s32.totalorder %s21, 0
      %p146 = por %p144, %p145
      %p147 = scmp.ne.s32.totalorder %s139, %s141
      %p148 = scmp.eq.s32.totalorder %s26, 1
      %p149 = por %p147, %p148
      %p150 = scmp.ne.s32.totalorder %s141, %s142
      %p151 = scmp.eq.s32.totalorder %s26, 0
      %p152 = por %p150, %p151
      %p153 = scmp.ne.s32.totalorder %s141, %s142
      %p154 = scmp.eq.s32.totalorder %s27, 1
      %p155 = por %p153, %p154
      %p157 = scmp.ne.s32.totalorder %s142, %s156
      %p158 = scmp.eq.s32.totalorder %s27, 0
      %p159 = por %p157, %p158
      %s161 = sadd.s32 %s160, 1
      %p164 = scmp.eq.s32.totalorder %s21, 1
      %p165 = scmp.ne.s32.totalorder %s160, %s162
      %p166 = scmp.eq.s32.totalorder %s21, 0
      %p167 = por %p165, %p166
      %p168 = scmp.ne.s32.totalorder %s160, %s162
      %p169 = scmp.eq.s32.totalorder %s26, 1
      %p170 = por %p168, %p169
      %p171 = scmp.ne.s32.totalorder %s162, %s163
      %p172 = scmp.eq.s32.totalorder %s26, 0
      %p173 = por %p171, %p172
      %p174 = scmp.ne.s32.totalorder %s162, %s163
      %p175 = scmp.eq.s32.totalorder %s27, 1
      %p176 = por %p174, %p175
      %p178 = scmp.ne.s32.totalorder %s163, %s177
      %p179 = scmp.eq.s32.totalorder %s27, 0
      %p180 = por %p178, %p179
      %s182 = sadd.s32 %s181, 1
      %p185 = scmp.eq.s32.totalorder %s21, 1
      %p186 = scmp.ne.s32.totalorder %s181, %s183
      %p187 = scmp.eq.s32.totalorder %s21, 0
      %p188 = por %p186, %p187
      %p189 = scmp.ne.s32.totalorder %s181, %s183
      %p190 = scmp.eq.s32.totalorder %s26, 1
      %p191 = por %p189, %p190
      %p192 = scmp.ne.s32.totalorder %s183, %s184
      %p193 = scmp.eq.s32.totalorder %s26, 0
      %p194 = por %p192, %p193
      %p195 = scmp.ne.s32.totalorder %s183, %s184
      %p196 = scmp.eq.s32.totalorder %s27, 1
      %p197 = por %p195, %p196
      %p199 = scmp.ne.s32.totalorder %s184, %s198
      %p200 = scmp.eq.s32.totalorder %s27, 0
      %p201 = por %p199, %p200
      %s203 = sadd.s32 %s202, 1
      %p206 = scmp.eq.s32.totalorder %s21, 1
      %p207 = scmp.ne.s32.totalorder %s202, %s204
      %p208 = scmp.eq.s32.totalorder %s21, 0
      %p209 = por %p207, %p208
      %p210 = scmp.ne.s32.totalorder %s202, %s204
      %p211 = scmp.eq.s32.totalorder %s26, 1
      %p212 = por %p210, %p211
      %p213 = scmp.ne.s32.totalorder %s204, %s205
      %p214 = scmp.eq.s32.totalorder %s26, 0
      %p215 = por %p213, %p214
      %p216 = scmp.ne.s32.totalorder %s204, %s205
      %p217 = scmp.eq.s32.totalorder %s27, 1
      %p218 = por %p216, %p217
      %p220 = scmp.ne.s32.totalorder %s205, %s219
      %p221 = scmp.eq.s32.totalorder %s27, 0
      %p222 = por %p220, %p221
      %s224 = sadd.s32 %s223, 1
      %p227 = scmp.eq.s32.totalorder %s21, 1
      %p228 = scmp.ne.s32.totalorder %s223, %s225
      %p229 = scmp.eq.s32.totalorder %s21, 0
      %p230 = por %p228, %p229
      %p231 = scmp.ne.s32.totalorder %s223, %s225
      %p232 = scmp.eq.s32.totalorder %s26, 1
      %p233 = por %p231, %p232
      %p234 = scmp.ne.s32.totalorder %s225, %s226
      %p235 = scmp.eq.s32.totalorder %s26, 0
      %p236 = por %p234, %p235
      %p237 = scmp.ne.s32.totalorder %s225, %s226
      %p238 = scmp.eq.s32.totalorder %s27, 1
      %p239 = por %p237, %p238
      %p241 = scmp.ne.s32.totalorder %s226, %s240
      %p242 = scmp.eq.s32.totalorder %s27, 0
      %p243 = por %p241, %p242
      %s245 = sadd.s32 %s244, 1
      %p248 = scmp.eq.s32.totalorder %s21, 1
      %p249 = scmp.ne.s32.totalorder %s244, %s246
      %p250 = scmp.eq.s32.totalorder %s21, 0
      %p251 = por %p249, %p250
      %p252 = scmp.ne.s32.totalorder %s244, %s246
      %p253 = scmp.eq.s32.totalorder %s26, 1
      %p254 = por %p252, %p253
      %p255 = scmp.ne.s32.totalorder %s246, %s247
      %p256 = scmp.eq.s32.totalorder %s26, 0
      %p257 = por %p255, %p256
      %p258 = scmp.ne.s32.totalorder %s246, %s247
      %p259 = scmp.eq.s32.totalorder %s27, 1
      %p260 = por %p258, %p259
      %p262 = scmp.ne.s32.totalorder %s247, %s261
      %p263 = scmp.eq.s32.totalorder %s27, 0
      %p264 = por %p262, %p263
      %s266 = sadd.s32 %s265, 1
      %p269 = scmp.eq.s32.totalorder %s21, 1
      %p270 = scmp.ne.s32.totalorder %s265, %s267
      %p271 = scmp.eq.s32.totalorder %s21, 0
      %p272 = por %p270, %p271
      %p273 = scmp.ne.s32.totalorder %s265, %s267
      %p274 = scmp.eq.s32.totalorder %s26, 1
      %p275 = por %p273, %p274
      %p276 = scmp.ne.s32.totalorder %s267, %s268
      %p277 = scmp.eq.s32.totalorder %s26, 0
      %p278 = por %p276, %p277
      %p279 = scmp.ne.s32.totalorder %s267, %s268
      %p280 = scmp.eq.s32.totalorder %s27, 1
      %p281 = por %p279, %p280
      %p283 = scmp.ne.s32.totalorder %s268, %s282
      %p284 = scmp.eq.s32.totalorder %s27, 0
      %p285 = por %p283, %p284
      %s286 = ssub.s32 %s21, %s28
      %p287 = scmp.eq.s32.totalorder %s286, 0
      %s289 = sadd.s32 %s288, 1
      %s290 = scalar_select %p287, %s288, %s289
      %p293 = pneg %p287
      %p294 = scmp.eq.s32.totalorder %s21, 1
      %p295 = por %p293, %p294
      %p296 = scmp.ne.s32.totalorder %s288, %s291
      %p297 = scmp.eq.s32.totalorder %s21, 0
      %p298 = por %p296, %p297
      %p299 = scmp.ne.s32.totalorder %s288, %s291
      %p300 = scmp.eq.s32.totalorder %s26, 1
      %p301 = por %p299, %p300
      %p302 = scmp.ne.s32.totalorder %s291, %s292
      %p303 = scmp.eq.s32.totalorder %s26, 0
      %p304 = por %p302, %p303
      %p305 = scmp.ne.s32.totalorder %s291, %s292
      %p306 = scmp.eq.s32.totalorder %s27, 1
      %p307 = por %p305, %p306
      %p309 = scmp.ne.s32.totalorder %s292, %s308
      %p310 = scmp.eq.s32.totalorder %s27, 0
      %p311 = por %p309, %p310
      %p312 = scmp.le.s32.totalorder 1, %s21
      %p313 = scmp.lt.s32.totalorder %s21, 3
      %p314 = pnand %p312, %p313
      %p315 = pneg %p314
      // Predicated region
      $region9: #{net_forward.1} parent=5 // pred_check
        _
      $region10: #{net_forward.1} parent=5 // pred_check_branch
        %317 = sbr.rel (%p314) target = $region12
      $region11: #{net_forward.1} parent=5 // pred_region
        %s318 = ssub.s32 %s21, 1
        // Predicated region
        $region13: #{net_forward.1} parent=11 // pred_check
          %p319 = pneg %p68
        $region14: #{net_forward.1} parent=11 // pred_check_branch
          %321 = sbr.rel (%p319) target = $region16
        $region15: #{net_forward.1} parent=11 // pred_region
          _
        $region16: #{net_forward.1} parent=11 // pred_fallthru
          _
        // Predicated region
        $region17: #{net_forward.1} parent=11 // pred_check
          %p322 = pneg %p89
        $region18: #{net_forward.1} parent=11 // pred_check_branch
          %324 = sbr.rel (%p322) target = $region20
        $region19: #{net_forward.1} parent=11 // pred_region
          _
        $region20: #{net_forward.1} parent=11 // pred_fallthru
          _
        // Predicated region
        $region21: #{net_forward.1} parent=11 // pred_check
          %p325 = pneg %p110
        $region22: #{net_forward.1} parent=11 // pred_check_branch
          %327 = sbr.rel (%p325) target = $region24
        $region23: #{net_forward.1} parent=11 // pred_region
          _
        $region24: #{net_forward.1} parent=11 // pred_fallthru
          _
        // Predicated region
        $region25: #{net_forward.1} parent=11 // pred_check
          %p328 = pneg %p131
        $region26: #{net_forward.1} parent=11 // pred_check_branch
          %330 = sbr.rel (%p328) target = $region28
        $region27: #{net_forward.1} parent=11 // pred_region
          _
        $region28: #{net_forward.1} parent=11 // pred_fallthru
          _
        // Predicated region
        $region29: #{net_forward.1} parent=11 // pred_check
          %p331 = pneg %p152
        $region30: #{net_forward.1} parent=11 // pred_check_branch
          %333 = sbr.rel (%p331) target = $region32
        $region31: #{net_forward.1} parent=11 // pred_region
          _
        $region32: #{net_forward.1} parent=11 // pred_fallthru
          _
        // Predicated region
        $region33: #{net_forward.1} parent=11 // pred_check
          %p334 = pneg %p173
        $region34: #{net_forward.1} parent=11 // pred_check_branch
          %336 = sbr.rel (%p334) target = $region36
        $region35: #{net_forward.1} parent=11 // pred_region
          _
        $region36: #{net_forward.1} parent=11 // pred_fallthru
          _
        // Predicated region
        $region37: #{net_forward.1} parent=11 // pred_check
          %p337 = pneg %p194
        $region38: #{net_forward.1} parent=11 // pred_check_branch
          %339 = sbr.rel (%p337) target = $region40
        $region39: #{net_forward.1} parent=11 // pred_region
          _
        $region40: #{net_forward.1} parent=11 // pred_fallthru
          _
        // Predicated region
        $region41: #{net_forward.1} parent=11 // pred_check
          %p340 = pneg %p215
        $region42: #{net_forward.1} parent=11 // pred_check_branch
          %342 = sbr.rel (%p340) target = $region44
        $region43: #{net_forward.1} parent=11 // pred_region
          _
        $region44: #{net_forward.1} parent=11 // pred_fallthru
          _
        // Predicated region
        $region45: #{net_forward.1} parent=11 // pred_check
          %p343 = pneg %p236
        $region46: #{net_forward.1} parent=11 // pred_check_branch
          %345 = sbr.rel (%p343) target = $region48
        $region47: #{net_forward.1} parent=11 // pred_region
          _
        $region48: #{net_forward.1} parent=11 // pred_fallthru
          _
        // Predicated region
        $region49: #{net_forward.1} parent=11 // pred_check
          %p346 = pneg %p257
        $region50: #{net_forward.1} parent=11 // pred_check_branch
          %348 = sbr.rel (%p346) target = $region52
        $region51: #{net_forward.1} parent=11 // pred_region
          _
        $region52: #{net_forward.1} parent=11 // pred_fallthru
          _
        // Predicated region
        $region53: #{net_forward.1} parent=11 // pred_check
          %p349 = pneg %p278
        $region54: #{net_forward.1} parent=11 // pred_check_branch
          %351 = sbr.rel (%p349) target = $region56
        $region55: #{net_forward.1} parent=11 // pred_region
          _
        $region56: #{net_forward.1} parent=11 // pred_fallthru
          _
      $region12: #{net_forward.1} parent=5 // pred_fallthru
        _
      %p352 = scmp.lt.s32.totalorder %s21, 2
      // Predicated region
      $region57: #{net_forward.1} parent=5 // pred_check
        %p353 = pneg %p352
      $region58: #{net_forward.1} parent=5 // pred_check_branch
        %355 = sbr.rel (%p353) target = $region60
      $region59: #{net_forward.1} parent=5 // pred_region
        // Predicated region
        $region61: #{net_forward.1} parent=59 // pred_check
          %p356 = pneg %p41
        $region62: #{net_forward.1} parent=59 // pred_check_branch
          %358 = sbr.rel (%p356) target = $region64
        $region63: #{net_forward.1} parent=59 // pred_region
          %s359 = smul.u32 8, %s21
          %p360 = scmp.lt.s32.totalorder %s359, 15
          %s361 = scalar_select %p360, %s359, 15
          %s362 = smul.addr %s361, 4
          %s363 = smul.addr %s362, 8
          %s364 = scalar_lea.vmem %s0, %s363
          %s365 = smul.u32 8, %s21
        $region64: #{net_forward.1} parent=59 // pred_fallthru
          _
      $region60: #{net_forward.1} parent=5 // pred_fallthru
        _
      %p366 = scmp.le.s32.totalorder 1, %s21
      %p367 = scmp.lt.s32.totalorder %s21, 3
      %p368 = pnand %p366, %p367
      %p369 = pneg %p368
      // Predicated region
      $region65: #{net_forward.1} parent=5 // pred_check
        _
      $region66: #{net_forward.1} parent=5 // pred_check_branch
        %371 = sbr.rel (%p368) target = $region68
      $region67: #{net_forward.1} parent=5 // pred_region
        %s372 = ssub.s32 %s21, 1
        %s373 = smul.u32 8, %s26
        %p374 = scmp.lt.s32.totalorder %s373, 15
        %s375 = scalar_select %p374, %s373, 15
        %s376 = smul.addr %s375, 4
        %s377 = smul.addr %s376, 8
        %s378 = scalar_lea.vmem %s0, %s377
        %p379 = pneg %p47
        %p380 = pneg %p44
        %p381 = pneg %p68
        %p382 = pneg %p65
        %p383 = pneg %p89
        %p384 = pneg %p86
        %p385 = pneg %p110
        %p386 = pneg %p107
        %p387 = pneg %p131
        %p388 = pneg %p128
        %p389 = pneg %p152
        %p390 = pneg %p149
        %p391 = pneg %p173
        %p392 = pneg %p170
        %p393 = pneg %p194
        %p394 = pneg %p191
        %p395 = pneg %p215
        %p396 = pneg %p212
        %p397 = pneg %p236
        %p398 = pneg %p233
        %p399 = pneg %p257
        %p400 = pneg %p254
        %p401 = pneg %p278
        %p402 = pneg %p275
        %p403 = pneg %p304
        %p404 = pneg %p301
        %s405 = sand.u32 %s291, 1
        %s406 = scalar_lea.sflag [#allocation3], %s405
        %s407 = sand.u32 %s291, 1
        %s408 = smul.addr %s407, 8
        %s409 = scalar_lea.vmem [#allocation2], %s408
        %s410 = smul.u32 8, %s26
        %p411 = scmp.lt.s32.totalorder %s410, 15
        %s412 = scalar_select %p411, %s410, 15
        %s413 = smul.addr %s412, 4
        %s414 = smul.addr %s413, 8
        %s415 = scalar_lea.vmem %s0, %s414
        %s416 = smul.u32 8, %s26
        %v417 = vld [vmem:[%s415] sm:$0xff]
        %v418 = vld [vmem:[%s415 + $0x8] sm:$0xff]
        %v419 = vld [vmem:[%s415 + $0x10] sm:$0xff]
        %v420 = vld [vmem:[%s415 + $0x18] sm:$0xf]
        %v421 = vld [vmem:[%s415 + $0x20] sm:$0xff]
        %v422 = vld [vmem:[%s415 + $0x28] sm:$0xff]
        %v423 = vld [vmem:[%s415 + $0x30] sm:$0xff]
        %v424 = vld [vmem:[%s415 + $0x38] sm:$0xf]
        %v425 = vld [vmem:[%s415 + $0x40] sm:$0xff]
        %v426 = vld [vmem:[%s415 + $0x48] sm:$0xff]
        %v427 = vld [vmem:[%s415 + $0x50] sm:$0xff]
        %v428 = vld [vmem:[%s415 + $0x58] sm:$0xf]
        %v429 = vld [vmem:[%s415 + $0x60] sm:$0xff]
        %v430 = vld [vmem:[%s415 + $0x68] sm:$0xff]
        %v431 = vld [vmem:[%s415 + $0x70] sm:$0xff]
        %v432 = vld [vmem:[%s415 + $0x78] sm:$0xf]
        %v433 = vld [vmem:[%s415 + $0x80] sm:$0xff]
        %v434 = vld [vmem:[%s415 + $0x88] sm:$0xff]
        %v435 = vld [vmem:[%s415 + $0x90] sm:$0xff]
        %v436 = vld [vmem:[%s415 + $0x98] sm:$0xf]
        %v437 = vld [vmem:[%s415 + $0xa0] sm:$0xff]
        %v438 = vld [vmem:[%s415 + $0xa8] sm:$0xff]
        %v439 = vld [vmem:[%s415 + $0xb0] sm:$0xff]
        %v440 = vld [vmem:[%s415 + $0xb8] sm:$0xf]
        %v441 = vld [vmem:[%s415 + $0xc0] sm:$0xff]
        %v442 = vld [vmem:[%s415 + $0xc8] sm:$0xff]
        %v443 = vld [vmem:[%s415 + $0xd0] sm:$0xff]
        %v444 = vld [vmem:[%s415 + $0xd8] sm:$0xf]
        %v445 = vld [vmem:[%s415 + $0xe0] sm:$0xff]
        %v446 = vld [vmem:[%s415 + $0xe8] sm:$0xff]
        %v447 = vld [vmem:[%s415 + $0xf0] sm:$0xff]
        %v448 = vld [vmem:[%s415 + $0xf8] sm:$0xf]
        %vm481 = vcmask 1046528
        %v482 = vrot.slane %v417, 1
        %v483 = vrot.slane %v418, 1
        %v484 = vsel %vm481, %v482, %v483
        %v485 = vrot.slane %v419, 1
        %v486 = vsel %vm481, %v483, %v485
        %v487 = vrot.slane %v420, 1
        %v488 = vsel %vm481, %v485, %v487
        %v489 = vrot.slane %v421, 1
        %v490 = vrot.slane %v422, 1
        %v491 = vsel %vm481, %v489, %v490
        %v492 = vrot.slane %v423, 1
        %v493 = vsel %vm481, %v490, %v492
        %v494 = vrot.slane %v424, 1
        %v495 = vsel %vm481, %v492, %v494
        %v496 = vrot.slane %v425, 1
        %v497 = vrot.slane %v426, 1
        %v498 = vsel %vm481, %v496, %v497
        %v499 = vrot.slane %v427, 1
        %v500 = vsel %vm481, %v497, %v499
        %v501 = vrot.slane %v428, 1
        %v502 = vsel %vm481, %v499, %v501
        %v503 = vrot.slane %v429, 1
        %v504 = vrot.slane %v430, 1
        %v505 = vsel %vm481, %v503, %v504
        %v506 = vrot.slane %v431, 1
        %v507 = vsel %vm481, %v504, %v506
        %v508 = vrot.slane %v432, 1
        %v509 = vsel %vm481, %v506, %v508
        %v510 = vrot.slane %v433, 1
        %v511 = vrot.slane %v434, 1
        %v512 = vsel %vm481, %v510, %v511
        %v513 = vrot.slane %v435, 1
        %v514 = vsel %vm481, %v511, %v513
        %v515 = vrot.slane %v436, 1
        %v516 = vsel %vm481, %v513, %v515
        %v517 = vrot.slane %v437, 1
        %v518 = vrot.slane %v438, 1
        %v519 = vsel %vm481, %v517, %v518
        %v520 = vrot.slane %v439, 1
        %v521 = vsel %vm481, %v518, %v520
        %v522 = vrot.slane %v440, 1
        %v523 = vsel %vm481, %v520, %v522
        %v524 = vrot.slane %v441, 1
        %v525 = vrot.slane %v442, 1
        %v526 = vsel %vm481, %v524, %v525
        %v527 = vrot.slane %v443, 1
        %v528 = vsel %vm481, %v525, %v527
        %v529 = vrot.slane %v444, 1
        %v530 = vsel %vm481, %v527, %v529
        %v531 = vrot.slane %v445, 1
        %v532 = vrot.slane %v446, 1
        %v533 = vsel %vm481, %v531, %v532
        %v534 = vrot.slane %v447, 1
        %v535 = vsel %vm481, %v532, %v534
        %v536 = vrot.slane %v448, 1
        %v537 = vsel %vm481, %v534, %v536
        %538 = vrot.lane.b32.xlu0 %v484, 28
        %v539 = vpop.permute.xlu0 %538
        %540 = vrot.lane.b32.xlu0 %v486, 28
        %v541 = vpop.permute.xlu0 %540
        %542 = vrot.lane.b32.xlu0 %v488, 28
        %v543 = vpop.permute.xlu0 %542
        %544 = vrot.lane.b32.xlu0 %v491, 28
        %v545 = vpop.permute.xlu0 %544
        %546 = vrot.lane.b32.xlu0 %v493, 28
        %v547 = vpop.permute.xlu0 %546
        %548 = vrot.lane.b32.xlu0 %v495, 28
        %v549 = vpop.permute.xlu0 %548
        %550 = vrot.lane.b32.xlu0 %v498, 28
        %v551 = vpop.permute.xlu0 %550
        %552 = vrot.lane.b32.xlu0 %v500, 28
        %v553 = vpop.permute.xlu0 %552
        %554 = vrot.lane.b32.xlu0 %v502, 28
        %v555 = vpop.permute.xlu0 %554
        %556 = vrot.lane.b32.xlu0 %v505, 28
        %v557 = vpop.permute.xlu0 %556
        %558 = vrot.lane.b32.xlu0 %v507, 28
        %v559 = vpop.permute.xlu0 %558
        %560 = vrot.lane.b32.xlu0 %v509, 28
        %v561 = vpop.permute.xlu0 %560
        %562 = vrot.lane.b32.xlu0 %v512, 28
        %v563 = vpop.permute.xlu0 %562
        %564 = vrot.lane.b32.xlu0 %v514, 28
        %v565 = vpop.permute.xlu0 %564
        %566 = vrot.lane.b32.xlu0 %v516, 28
        %v567 = vpop.permute.xlu0 %566
        %568 = vrot.lane.b32.xlu0 %v519, 28
        %v569 = vpop.permute.xlu0 %568
        %570 = vrot.lane.b32.xlu0 %v521, 28
        %v571 = vpop.permute.xlu0 %570
        %572 = vrot.lane.b32.xlu0 %v523, 28
        %v573 = vpop.permute.xlu0 %572
        %574 = vrot.lane.b32.xlu0 %v526, 28
        %v575 = vpop.permute.xlu0 %574
        %576 = vrot.lane.b32.xlu0 %v528, 28
        %v577 = vpop.permute.xlu0 %576
        %578 = vrot.lane.b32.xlu0 %v530, 28
        %v579 = vpop.permute.xlu0 %578
        %580 = vrot.lane.b32.xlu0 %v533, 28
        %v581 = vpop.permute.xlu0 %580
        %582 = vrot.lane.b32.xlu0 %v535, 28
        %v583 = vpop.permute.xlu0 %582
        %584 = vrot.lane.b32.xlu0 %v537, 28
        %v585 = vpop.permute.xlu0 %584
        %vm610 = vcmask 1045504
        %v611 = vrot.slane %v417, 2
        %v612 = vrot.slane %v418, 2
        %v613 = vsel %vm610, %v611, %v612
        %v614 = vrot.slane %v419, 2
        %v615 = vsel %vm610, %v612, %v614
        %v616 = vrot.slane %v420, 2
        %v617 = vsel %vm610, %v614, %v616
        %v618 = vrot.slane %v421, 2
        %v619 = vrot.slane %v422, 2
        %v620 = vsel %vm610, %v618, %v619
        %v621 = vrot.slane %v423, 2
        %v622 = vsel %vm610, %v619, %v621
        %v623 = vrot.slane %v424, 2
        %v624 = vsel %vm610, %v621, %v623
        %v625 = vrot.slane %v425, 2
        %v626 = vrot.slane %v426, 2
        %v627 = vsel %vm610, %v625, %v626
        %v628 = vrot.slane %v427, 2
        %v629 = vsel %vm610, %v626, %v628
        %v630 = vrot.slane %v428, 2
        %v631 = vsel %vm610, %v628, %v630
        %v632 = vrot.slane %v429, 2
        %v633 = vrot.slane %v430, 2
        %v634 = vsel %vm610, %v632, %v633
        %v635 = vrot.slane %v431, 2
        %v636 = vsel %vm610, %v633, %v635
        %v637 = vrot.slane %v432, 2
        %v638 = vsel %vm610, %v635, %v637
        %v639 = vrot.slane %v433, 2
        %v640 = vrot.slane %v434, 2
        %v641 = vsel %vm610, %v639, %v640
        %v642 = vrot.slane %v435, 2
        %v643 = vsel %vm610, %v640, %v642
        %v644 = vrot.slane %v436, 2
        %v645 = vsel %vm610, %v642, %v644
        %v646 = vrot.slane %v437, 2
        %v647 = vrot.slane %v438, 2
        %v648 = vsel %vm610, %v646, %v647
        %v649 = vrot.slane %v439, 2
        %v650 = vsel %vm610, %v647, %v649
        %v651 = vrot.slane %v440, 2
        %v652 = vsel %vm610, %v649, %v651
        %v653 = vrot.slane %v441, 2
        %v654 = vrot.slane %v442, 2
        %v655 = vsel %vm610, %v653, %v654
        %v656 = vrot.slane %v443, 2
        %v657 = vsel %vm610, %v654, %v656
        %v658 = vrot.slane %v444, 2
        %v659 = vsel %vm610, %v656, %v658
        %v660 = vrot.slane %v445, 2
        %v661 = vrot.slane %v446, 2
        %v662 = vsel %vm610, %v660, %v661
        %v663 = vrot.slane %v447, 2
        %v664 = vsel %vm610, %v661, %v663
        %v665 = vrot.slane %v448, 2
        %v666 = vsel %vm610, %v663, %v665
        %667 = vrot.lane.b32.xlu0 %v613, 56
        %v668 = vpop.permute.xlu0 %667
        %669 = vrot.lane.b32.xlu0 %v615, 56
        %v670 = vpop.permute.xlu0 %669
        %671 = vrot.lane.b32.xlu0 %v617, 56
        %v672 = vpop.permute.xlu0 %671
        %673 = vrot.lane.b32.xlu0 %v620, 56
        %v674 = vpop.permute.xlu0 %673
        %675 = vrot.lane.b32.xlu0 %v622, 56
        %v676 = vpop.permute.xlu0 %675
        %677 = vrot.lane.b32.xlu0 %v624, 56
        %v678 = vpop.permute.xlu0 %677
        %679 = vrot.lane.b32.xlu0 %v627, 56
        %v680 = vpop.permute.xlu0 %679
        %681 = vrot.lane.b32.xlu0 %v629, 56
        %v682 = vpop.permute.xlu0 %681
        %683 = vrot.lane.b32.xlu0 %v631, 56
        %v684 = vpop.permute.xlu0 %683
        %685 = vrot.lane.b32.xlu0 %v634, 56
        %v686 = vpop.permute.xlu0 %685
        %687 = vrot.lane.b32.xlu0 %v636, 56
        %v688 = vpop.permute.xlu0 %687
        %689 = vrot.lane.b32.xlu0 %v638, 56
        %v690 = vpop.permute.xlu0 %689
        %691 = vrot.lane.b32.xlu0 %v641, 56
        %v692 = vpop.permute.xlu0 %691
        %693 = vrot.lane.b32.xlu0 %v643, 56
        %v694 = vpop.permute.xlu0 %693
        %695 = vrot.lane.b32.xlu0 %v645, 56
        %v696 = vpop.permute.xlu0 %695
        %697 = vrot.lane.b32.xlu0 %v648, 56
        %v698 = vpop.permute.xlu0 %697
        %699 = vrot.lane.b32.xlu0 %v650, 56
        %v700 = vpop.permute.xlu0 %699
        %701 = vrot.lane.b32.xlu0 %v652, 56
        %v702 = vpop.permute.xlu0 %701
        %703 = vrot.lane.b32.xlu0 %v655, 56
        %v704 = vpop.permute.xlu0 %703
        %705 = vrot.lane.b32.xlu0 %v657, 56
        %v706 = vpop.permute.xlu0 %705
        %707 = vrot.lane.b32.xlu0 %v659, 56
        %v708 = vpop.permute.xlu0 %707
        %709 = vrot.lane.b32.xlu0 %v662, 56
        %v710 = vpop.permute.xlu0 %709
        %711 = vrot.lane.b32.xlu0 %v664, 56
        %v712 = vpop.permute.xlu0 %711
        %713 = vrot.lane.b32.xlu0 %v666, 56
        %v714 = vpop.permute.xlu0 %713
        %vm739 = vcmask 1044480
        %v740 = vrot.slane %v417, 3
        %v741 = vrot.slane %v418, 3
        %v742 = vsel %vm739, %v740, %v741
        %v743 = vrot.slane %v419, 3
        %v744 = vsel %vm739, %v741, %v743
        %v745 = vrot.slane %v420, 3
        %v746 = vsel %vm739, %v743, %v745
        %v747 = vrot.slane %v421, 3
        %v748 = vrot.slane %v422, 3
        %v749 = vsel %vm739, %v747, %v748
        %v750 = vrot.slane %v423, 3
        %v751 = vsel %vm739, %v748, %v750
        %v752 = vrot.slane %v424, 3
        %v753 = vsel %vm739, %v750, %v752
        %v754 = vrot.slane %v425, 3
        %v755 = vrot.slane %v426, 3
        %v756 = vsel %vm739, %v754, %v755
        %v757 = vrot.slane %v427, 3
        %v758 = vsel %vm739, %v755, %v757
        %v759 = vrot.slane %v428, 3
        %v760 = vsel %vm739, %v757, %v759
        %v761 = vrot.slane %v429, 3
        %v762 = vrot.slane %v430, 3
        %v763 = vsel %vm739, %v761, %v762
        %v764 = vrot.slane %v431, 3
        %v765 = vsel %vm739, %v762, %v764
        %v766 = vrot.slane %v432, 3
        %v767 = vsel %vm739, %v764, %v766
        %v768 = vrot.slane %v433, 3
        %v769 = vrot.slane %v434, 3
        %v770 = vsel %vm739, %v768, %v769
        %v771 = vrot.slane %v435, 3
        %v772 = vsel %vm739, %v769, %v771
        %v773 = vrot.slane %v436, 3
        %v774 = vsel %vm739, %v771, %v773
        %v775 = vrot.slane %v437, 3
        %v776 = vrot.slane %v438, 3
        %v777 = vsel %vm739, %v775, %v776
        %v778 = vrot.slane %v439, 3
        %v779 = vsel %vm739, %v776, %v778
        %v780 = vrot.slane %v440, 3
        %v781 = vsel %vm739, %v778, %v780
        %v782 = vrot.slane %v441, 3
        %v783 = vrot.slane %v442, 3
        %v784 = vsel %vm739, %v782, %v783
        %v785 = vrot.slane %v443, 3
        %v786 = vsel %vm739, %v783, %v785
        %v787 = vrot.slane %v444, 3
        %v788 = vsel %vm739, %v785, %v787
        %v789 = vrot.slane %v445, 3
        %v790 = vrot.slane %v446, 3
        %v791 = vsel %vm739, %v789, %v790
        %v792 = vrot.slane %v447, 3
        %v793 = vsel %vm739, %v790, %v792
        %v794 = vrot.slane %v448, 3
        %v795 = vsel %vm739, %v792, %v794
        %796 = vrot.lane.b32.xlu0 %v742, 84
        %v797 = vpop.permute.xlu0 %796
        %798 = vrot.lane.b32.xlu0 %v744, 84
        %v799 = vpop.permute.xlu0 %798
        %800 = vrot.lane.b32.xlu0 %v746, 84
        %v801 = vpop.permute.xlu0 %800
        %802 = vrot.lane.b32.xlu0 %v749, 84
        %v803 = vpop.permute.xlu0 %802
        %804 = vrot.lane.b32.xlu0 %v751, 84
        %v805 = vpop.permute.xlu0 %804
        %806 = vrot.lane.b32.xlu0 %v753, 84
        %v807 = vpop.permute.xlu0 %806
        %808 = vrot.lane.b32.xlu0 %v756, 84
        %v809 = vpop.permute.xlu0 %808
        %810 = vrot.lane.b32.xlu0 %v758, 84
        %v811 = vpop.permute.xlu0 %810
        %812 = vrot.lane.b32.xlu0 %v760, 84
        %v813 = vpop.permute.xlu0 %812
        %814 = vrot.lane.b32.xlu0 %v763, 84
        %v815 = vpop.permute.xlu0 %814
        %816 = vrot.lane.b32.xlu0 %v765, 84
        %v817 = vpop.permute.xlu0 %816
        %818 = vrot.lane.b32.xlu0 %v767, 84
        %v819 = vpop.permute.xlu0 %818
        %820 = vrot.lane.b32.xlu0 %v770, 84
        %v821 = vpop.permute.xlu0 %820
        %822 = vrot.lane.b32.xlu0 %v772, 84
        %v823 = vpop.permute.xlu0 %822
        %824 = vrot.lane.b32.xlu0 %v774, 84
        %v825 = vpop.permute.xlu0 %824
        %826 = vrot.lane.b32.xlu0 %v777, 84
        %v827 = vpop.permute.xlu0 %826
        %828 = vrot.lane.b32.xlu0 %v779, 84
        %v829 = vpop.permute.xlu0 %828
        %830 = vrot.lane.b32.xlu0 %v781, 84
        %v831 = vpop.permute.xlu0 %830
        %832 = vrot.lane.b32.xlu0 %v784, 84
        %v833 = vpop.permute.xlu0 %832
        %834 = vrot.lane.b32.xlu0 %v786, 84
        %v835 = vpop.permute.xlu0 %834
        %836 = vrot.lane.b32.xlu0 %v788, 84
        %v837 = vpop.permute.xlu0 %836
        %838 = vrot.lane.b32.xlu0 %v791, 84
        %v839 = vpop.permute.xlu0 %838
        %840 = vrot.lane.b32.xlu0 %v793, 84
        %v841 = vpop.permute.xlu0 %840
        %842 = vrot.lane.b32.xlu0 %v795, 84
        %v843 = vpop.permute.xlu0 %842
        %vm868 = vcmask 1043456
        %v869 = vrot.slane %v417, 4
        %v870 = vrot.slane %v418, 4
        %v871 = vsel %vm868, %v869, %v870
        %v872 = vrot.slane %v419, 4
        %v873 = vsel %vm868, %v870, %v872
        %v874 = vrot.slane %v420, 4
        %v875 = vsel %vm868, %v872, %v874
        %v876 = vrot.slane %v421, 4
        %v877 = vrot.slane %v422, 4
        %v878 = vsel %vm868, %v876, %v877
        %v879 = vrot.slane %v423, 4
        %v880 = vsel %vm868, %v877, %v879
        %v881 = vrot.slane %v424, 4
        %v882 = vsel %vm868, %v879, %v881
        %v883 = vrot.slane %v425, 4
        %v884 = vrot.slane %v426, 4
        %v885 = vsel %vm868, %v883, %v884
        %v886 = vrot.slane %v427, 4
        %v887 = vsel %vm868, %v884, %v886
        %v888 = vrot.slane %v428, 4
        %v889 = vsel %vm868, %v886, %v888
        %v890 = vrot.slane %v429, 4
        %v891 = vrot.slane %v430, 4
        %v892 = vsel %vm868, %v890, %v891
        %v893 = vrot.slane %v431, 4
        %v894 = vsel %vm868, %v891, %v893
        %v895 = vrot.slane %v432, 4
        %v896 = vsel %vm868, %v893, %v895
        %v897 = vrot.slane %v433, 4
        %v898 = vrot.slane %v434, 4
        %v899 = vsel %vm868, %v897, %v898
        %v900 = vrot.slane %v435, 4
        %v901 = vsel %vm868, %v898, %v900
        %v902 = vrot.slane %v436, 4
        %v903 = vsel %vm868, %v900, %v902
        %v904 = vrot.slane %v437, 4
        %v905 = vrot.slane %v438, 4
        %v906 = vsel %vm868, %v904, %v905
        %v907 = vrot.slane %v439, 4
        %v908 = vsel %vm868, %v905, %v907
        %v909 = vrot.slane %v440, 4
        %v910 = vsel %vm868, %v907, %v909
        %v911 = vrot.slane %v441, 4
        %v912 = vrot.slane %v442, 4
        %v913 = vsel %vm868, %v911, %v912
        %v914 = vrot.slane %v443, 4
        %v915 = vsel %vm868, %v912, %v914
        %v916 = vrot.slane %v444, 4
        %v917 = vsel %vm868, %v914, %v916
        %v918 = vrot.slane %v445, 4
        %v919 = vrot.slane %v446, 4
        %v920 = vsel %vm868, %v918, %v919
        %v921 = vrot.slane %v447, 4
        %v922 = vsel %vm868, %v919, %v921
        %v923 = vrot.slane %v448, 4
        %v924 = vsel %vm868, %v921, %v923
        %925 = vrot.lane.b32.xlu0 %v871, 112
        %v926 = vpop.permute.xlu0 %925
        %927 = vrot.lane.b32.xlu0 %v873, 112
        %v928 = vpop.permute.xlu0 %927
        %929 = vrot.lane.b32.xlu0 %v875, 112
        %v930 = vpop.permute.xlu0 %929
        %931 = vrot.lane.b32.xlu0 %v878, 112
        %v932 = vpop.permute.xlu0 %931
        %933 = vrot.lane.b32.xlu0 %v880, 112
        %v934 = vpop.permute.xlu0 %933
        %935 = vrot.lane.b32.xlu0 %v882, 112
        %v936 = vpop.permute.xlu0 %935
        %937 = vrot.lane.b32.xlu0 %v885, 112
        %v938 = vpop.permute.xlu0 %937
        %939 = vrot.lane.b32.xlu0 %v887, 112
        %v940 = vpop.permute.xlu0 %939
        %941 = vrot.lane.b32.xlu0 %v889, 112
        %v942 = vpop.permute.xlu0 %941
        %943 = vrot.lane.b32.xlu0 %v892, 112
        %v944 = vpop.permute.xlu0 %943
        %945 = vrot.lane.b32.xlu0 %v894, 112
        %v946 = vpop.permute.xlu0 %945
        %947 = vrot.lane.b32.xlu0 %v896, 112
        %v948 = vpop.permute.xlu0 %947
        %949 = vrot.lane.b32.xlu0 %v899, 112
        %v950 = vpop.permute.xlu0 %949
        %951 = vrot.lane.b32.xlu0 %v901, 112
        %v952 = vpop.permute.xlu0 %951
        %953 = vrot.lane.b32.xlu0 %v903, 112
        %v954 = vpop.permute.xlu0 %953
        %955 = vrot.lane.b32.xlu0 %v906, 112
        %v956 = vpop.permute.xlu0 %955
        %957 = vrot.lane.b32.xlu0 %v908, 112
        %v958 = vpop.permute.xlu0 %957
        %959 = vrot.lane.b32.xlu0 %v910, 112
        %v960 = vpop.permute.xlu0 %959
        %961 = vrot.lane.b32.xlu0 %v913, 112
        %v962 = vpop.permute.xlu0 %961
        %963 = vrot.lane.b32.xlu0 %v915, 112
        %v964 = vpop.permute.xlu0 %963
        %965 = vrot.lane.b32.xlu0 %v917, 112
        %v966 = vpop.permute.xlu0 %965
        %967 = vrot.lane.b32.xlu0 %v920, 112
        %v968 = vpop.permute.xlu0 %967
        %969 = vrot.lane.b32.xlu0 %v922, 112
        %v970 = vpop.permute.xlu0 %969
        %971 = vrot.lane.b32.xlu0 %v924, 112
        %v972 = vpop.permute.xlu0 %971
        %vm997 = vcmask 228352
        %v998 = vsel %vm997, %v417, %v539
        %v999 = vsel %vm997, %v418, %v541
        %v1000 = vsel %vm997, %v419, %v543
        %v1001 = vsel %vm997, %v421, %v545
        %v1002 = vsel %vm997, %v422, %v547
        %v1003 = vsel %vm997, %v423, %v549
        %v1004 = vsel %vm997, %v425, %v551
        %v1005 = vsel %vm997, %v426, %v553
        %v1006 = vsel %vm997, %v427, %v555
        %v1007 = vsel %vm997, %v429, %v557
        %v1008 = vsel %vm997, %v430, %v559
        %v1009 = vsel %vm997, %v431, %v561
        %v1010 = vsel %vm997, %v433, %v563
        %v1011 = vsel %vm997, %v434, %v565
        %v1012 = vsel %vm997, %v435, %v567
        %v1013 = vsel %vm997, %v437, %v569
        %v1014 = vsel %vm997, %v438, %v571
        %v1015 = vsel %vm997, %v439, %v573
        %v1016 = vsel %vm997, %v441, %v575
        %v1017 = vsel %vm997, %v442, %v577
        %v1018 = vsel %vm997, %v443, %v579
        %v1019 = vsel %vm997, %v445, %v581
        %v1020 = vsel %vm997, %v446, %v583
        %v1021 = vsel %vm997, %v447, %v585
        %vm1022 = vcmask 457728
        %v1023 = vsel %vm1022, %v998, %v668
        %v1024 = vsel %vm1022, %v999, %v670
        %v1025 = vsel %vm1022, %v1000, %v672
        %v1026 = vsel %vm1022, %v1001, %v674
        %v1027 = vsel %vm1022, %v1002, %v676
        %v1028 = vsel %vm1022, %v1003, %v678
        %v1029 = vsel %vm1022, %v1004, %v680
        %v1030 = vsel %vm1022, %v1005, %v682
        %v1031 = vsel %vm1022, %v1006, %v684
        %v1032 = vsel %vm1022, %v1007, %v686
        %v1033 = vsel %vm1022, %v1008, %v688
        %v1034 = vsel %vm1022, %v1009, %v690
        %v1035 = vsel %vm1022, %v1010, %v692
        %v1036 = vsel %vm1022, %v1011, %v694
        %v1037 = vsel %vm1022, %v1012, %v696
        %v1038 = vsel %vm1022, %v1013, %v698
        %v1039 = vsel %vm1022, %v1014, %v700
        %v1040 = vsel %vm1022, %v1015, %v702
        %v1041 = vsel %vm1022, %v1016, %v704
        %v1042 = vsel %vm1022, %v1017, %v706
        %v1043 = vsel %vm1022, %v1018, %v708
        %v1044 = vsel %vm1022, %v1019, %v710
        %v1045 = vsel %vm1022, %v1020, %v712
        %v1046 = vsel %vm1022, %v1021, %v714
        %vm1047 = vcmask 687104
        %v1048 = vsel %vm1047, %v1023, %v797
        %v1049 = vsel %vm1047, %v1024, %v799
        %v1050 = vsel %vm1047, %v1025, %v801
        %v1051 = vsel %vm1047, %v1026, %v803
        %v1052 = vsel %vm1047, %v1027, %v805
        %v1053 = vsel %vm1047, %v1028, %v807
        %v1054 = vsel %vm1047, %v1029, %v809
        %v1055 = vsel %vm1047, %v1030, %v811
        %v1056 = vsel %vm1047, %v1031, %v813
        %v1057 = vsel %vm1047, %v1032, %v815
        %v1058 = vsel %vm1047, %v1033, %v817
        %v1059 = vsel %vm1047, %v1034, %v819
        %v1060 = vsel %vm1047, %v1035, %v821
        %v1061 = vsel %vm1047, %v1036, %v823
        %v1062 = vsel %vm1047, %v1037, %v825
        %v1063 = vsel %vm1047, %v1038, %v827
        %v1064 = vsel %vm1047, %v1039, %v829
        %v1065 = vsel %vm1047, %v1040, %v831
        %v1066 = vsel %vm1047, %v1041, %v833
        %v1067 = vsel %vm1047, %v1042, %v835
        %v1068 = vsel %vm1047, %v1043, %v837
        %v1069 = vsel %vm1047, %v1044, %v839
        %v1070 = vsel %vm1047, %v1045, %v841
        %v1071 = vsel %vm1047, %v1046, %v843
        %vm1072 = vcmask 916480
        %v1073 = vsel %vm1072, %v1048, %v926
        %v1074 = vsel %vm1072, %v1049, %v928
        %v1075 = vsel %vm1072, %v1050, %v930
        %v1076 = vsel %vm1072, %v1051, %v932
        %v1077 = vsel %vm1072, %v1052, %v934
        %v1078 = vsel %vm1072, %v1053, %v936
        %v1079 = vsel %vm1072, %v1054, %v938
        %v1080 = vsel %vm1072, %v1055, %v940
        %v1081 = vsel %vm1072, %v1056, %v942
        %v1082 = vsel %vm1072, %v1057, %v944
        %v1083 = vsel %vm1072, %v1058, %v946
        %v1084 = vsel %vm1072, %v1059, %v948
        %v1085 = vsel %vm1072, %v1060, %v950
        %v1086 = vsel %vm1072, %v1061, %v952
        %v1087 = vsel %vm1072, %v1062, %v954
        %v1088 = vsel %vm1072, %v1063, %v956
        %v1089 = vsel %vm1072, %v1064, %v958
        %v1090 = vsel %vm1072, %v1065, %v960
        %v1091 = vsel %vm1072, %v1066, %v962
        %v1092 = vsel %vm1072, %v1067, %v964
        %v1093 = vsel %vm1072, %v1068, %v966
        %v1094 = vsel %vm1072, %v1069, %v968
        %v1095 = vsel %vm1072, %v1070, %v970
        %v1096 = vsel %vm1072, %v1071, %v972
        %v1097 = vld [vmem:[%s1] sm:$0xff]
        %v1098 = vld [vmem:[%s1 + $0x8] sm:$0xff]
        %v1099 = vld [vmem:[%s1 + $0x10] sm:$0xff]
        %v1100 = vld [vmem:[%s1 + $0x18] sm:$0xff]
        %v1101 = vld [vmem:[%s1 + $0x20] sm:$0xff]
        %v1102 = vld [vmem:[%s1 + $0x28] sm:$0xff]
        %v1103 = vld [vmem:[%s1 + $0x30] sm:$0xff]
        %v1104 = vld [vmem:[%s1 + $0x38] sm:$0xff]
        %v1105 = vld [vmem:[%s1 + $0x40] sm:$0xff]
        %v1106 = vld [vmem:[%s1 + $0x48] sm:$0xff]
        %v1107 = vld [vmem:[%s1 + $0x50] sm:$0xff]
        %v1108 = vld [vmem:[%s1 + $0x58] sm:$0xff]
        %v1109 = vld [vmem:[%s1 + $0x60] sm:$0xff]
        %v1110 = vld [vmem:[%s1 + $0x68] sm:$0xff]
        %v1111 = vld [vmem:[%s1 + $0x70] sm:$0xff]
        %v1112 = vld [vmem:[%s1 + $0x78] sm:$0xff]
        %v1113 = vld [vmem:[%s1 + $0x80] sm:$0xff]
        %v1114 = vld [vmem:[%s1 + $0x88] sm:$0xff]
        %v1115 = vld [vmem:[%s1 + $0x90] sm:$0xff]
        %v1116 = vld [vmem:[%s1 + $0x98] sm:$0xff]
        %v1117 = vld [vmem:[%s1 + $0xa0] sm:$0xff]
        %v1118 = vld [vmem:[%s1 + $0xa8] sm:$0xff]
        %v1119 = vld [vmem:[%s1 + $0xb0] sm:$0xff]
        %v1120 = vld [vmem:[%s1 + $0xb8] sm:$0xff]
        %v1121 = vld [vmem:[%s1 + $0xc0] sm:$0xff]
        %v1122 = vld [vmem:[%s1 + $0xc8] sm:$0xff]
        %v1123 = vld [vmem:[%s1 + $0xd0] sm:$0xff]
        %v1124 = vld [vmem:[%s1 + $0xd8] sm:$0xff]
        %v1125 = vld [vmem:[%s1 + $0xe0] sm:$0xff]
        %v1126 = vld [vmem:[%s1 + $0xe8] sm:$0xff]
        %v1127 = vld [vmem:[%s1 + $0xf0] sm:$0xff]
        %v1128 = vld [vmem:[%s1 + $0xf8] sm:$0xff]
        %v1129 = vld [vmem:[%s1 + $0x100] sm:$0xff]
        %v1130 = vld [vmem:[%s1 + $0x108] sm:$0xff]
        %v1131 = vld [vmem:[%s1 + $0x110] sm:$0xf]
        %v1132 = vld [vmem:[%s1 + $0x118] sm:$0xf]
        %v1133 = vld [vmem:[%s2] sm:$0x3]
        %v1135 = vlaneseq
        %v1136 = vshrl.u32 %v1135, 7
        %v1137 = vsub.s32 0, %v1136
        %v1138 = vrot.slane %v1133, %v1137
        %v1139 = vlaneseq
        %v1140 = vshrl.u32 %v1139, 7
        %v1141 = vsub.s32 1, %v1140
        %v1142 = vrot.slane %v1133, %v1141
        %vm1145 = vcmask 97280
        %v1146 = vsel %vm1145, %v926, 0
        %v1148 = vsel %vm1145, %v928, 0
        %v1150 = vsel %vm1145, %v930, 0
        %v1152 = vsel %vm1145, %v932, 0
        %v1154 = vsel %vm1145, %v934, 0
        %v1156 = vsel %vm1145, %v936, 0
        %v1158 = vsel %vm1145, %v938, 0
        %v1160 = vsel %vm1145, %v940, 0
        %v1162 = vsel %vm1145, %v942, 0
        %v1164 = vsel %vm1145, %v944, 0
        %v1166 = vsel %vm1145, %v946, 0
        %v1168 = vsel %vm1145, %v948, 0
        %v1170 = vsel %vm1145, %v950, 0
        %v1172 = vsel %vm1145, %v952, 0
        %v1174 = vsel %vm1145, %v954, 0
        %v1176 = vsel %vm1145, %v956, 0
        %v1178 = vsel %vm1145, %v958, 0
        %v1180 = vsel %vm1145, %v960, 0
        %v1182 = vsel %vm1145, %v962, 0
        %v1184 = vsel %vm1145, %v964, 0
        %v1186 = vsel %vm1145, %v966, 0
        %v1188 = vsel %vm1145, %v968, 0
        %v1190 = vsel %vm1145, %v970, 0
        %v1192 = vsel %vm1145, %v972, 0
        %v1195 = vsel %vm868, %v1131, 0
        %v1198 = vsel %vm868, %v1132, 0
        %1200 = vmatprep.subr.mxu0 %v1098
        %1201 = vmatpush1.msra.mxu0 %v1097
        %1202 = vmatprep.subr.mxu0 %v1100
        %1203 = vmatpush1.msra.mxu0 %v1099
        %1204 = vmatprep.subr.mxu0 %v1102
        %1205 = vmatpush1.msra.mxu0 %v1101
        %1206 = vmatprep.subr.mxu0 %v1104
        %1207 = vmatpush1.msra.mxu0 %v1103
        %1208 = vmatprep.subr.mxu0 %v1106
        %1209 = vmatpush1.msra.mxu0 %v1105
        %1210 = vmatprep.subr.mxu0 %v1108
        %1211 = vmatpush1.msra.mxu0 %v1107
        %1212 = vmatprep.subr.mxu0 %v1110
        %1213 = vmatpush1.msra.mxu0 %v1109
        %1214 = vmatprep.subr.mxu0 %v1112
        %1215 = vmatpush1.msra.mxu0 %v1111
        %1216 = vmatprep.subr.mxu0 %v1114
        %1217 = vmatpush1.msra.mxu0 %v1113
        %1218 = vmatprep.subr.mxu0 %v1116
        %1219 = vmatpush1.msra.mxu0 %v1115
        %1220 = vmatprep.subr.mxu0 %v1118
        %1221 = vmatpush1.msra.mxu0 %v1117
        %1222 = vmatprep.subr.mxu0 %v1120
        %1223 = vmatpush1.msra.mxu0 %v1119
        %1224 = vmatprep.subr.mxu0 %v1122
        %1225 = vmatpush1.msra.mxu0 %v1121
        %1226 = vmatprep.subr.mxu0 %v1124
        %1227 = vmatpush1.msra.mxu0 %v1123
        %1228 = vmatprep.subr.mxu0 %v1126
        %1229 = vmatpush1.msra.mxu0 %v1125
        %1230 = vmatprep.subr.mxu0 %v1128
        %1231 = vmatpush1.msra.mxu0 %v1127
        %1232 = vmatprep.subr.mxu0 %v1130
        %1233 = vmatpush1.msra.mxu0 %v1129
        %1234 = vmatprep.subr.mxu0 %v1198
        %1235 = vmatpush1.msra.mxu0 %v1195
        %1236 = vmatprep.subr.mxu0 0.0
        %1237 = vmatpush1.msra.mxu0 0.0
        %1238 = vmatprep.subr.mxu0 0.0
        %1239 = vmatpush1.msra.mxu0 0.0
        %1240 = vmatprep.subr.mxu0 0.0
        %1241 = vmatpush1.msra.mxu0 0.0
        %1242 = vmatprep.subr.mxu0 0.0
        %1243 = vmatpush1.msra.mxu0 0.0
        %1244 = vmatprep.subr.mxu0 0.0
        %1245 = vmatpush1.msra.mxu0 0.0
        %1246 = vmatprep.subr.mxu0 0.0
        %1247 = vmatpush1.msra.mxu0 0.0
        %1248 = vmatprep.subr.mxu0 0.0
        %1249 = vmatpush1.msra.mxu0 0.0
        %1250 = vmatprep.subr.mxu0 0.0
        %1251 = vmatpush1.msra.mxu0 0.0
        %1252 = vmatprep.subr.mxu0 0.0
        %1253 = vmatpush1.msra.mxu0 0.0
        %1254 = vmatprep.subr.mxu0 0.0
        %1255 = vmatpush1.msra.mxu0 0.0
        %1256 = vmatprep.subr.mxu0 0.0
        %1257 = vmatpush1.msra.mxu0 0.0
        %1258 = vmatprep.subr.mxu0 0.0
        %1259 = vmatpush1.msra.mxu0 0.0
        %1260 = vmatprep.subr.mxu0 0.0
        %1261 = vmatpush1.msra.mxu0 0.0
        %1262 = vmatprep.subr.mxu0 0.0
        %1263 = vmatpush1.msra.mxu0 0.0
        %1264 = vmatprep.mubr.f32.mxu0 %v1146
        %1265 = vmatmul.mubr.f32.gmra.mrb[0].mxu0 %v1073
        %v1266 = vpop.f32.mrb[0].mxu0
        %v1267 = vadd.f32 %v1138, %v1266
        %v1268 = vpop.f32.mrb[0].mxu0
        %v1269 = vadd.f32 %v1142, %v1268
        %1270 = vmatprep.mubr.f32.mxu0 %v1148
        %1271 = vmatmul.mubr.f32.gmra.mrb[0].mxu0 %v1074
        %v1272 = vpop.f32.mrb[0].mxu0
        %v1273 = vadd.f32 %v1138, %v1272
        %v1274 = vpop.f32.mrb[0].mxu0
        %v1275 = vadd.f32 %v1142, %v1274
        %1276 = vmatprep.mubr.f32.mxu0 %v1150
        %1277 = vmatmul.mubr.f32.gmra.mrb[0].mxu0 %v1075
        %v1278 = vpop.f32.mrb[0].mxu0
        %v1279 = vadd.f32 %v1138, %v1278
        %v1280 = vpop.f32.mrb[0].mxu0
        %v1281 = vadd.f32 %v1142, %v1280
        %1282 = vmatprep.mubr.f32.mxu0 %v1152
        %1283 = vmatmul.mubr.f32.gmra.mrb[0].mxu0 %v1076
        %v1284 = vpop.f32.mrb[0].mxu0
        %v1285 = vadd.f32 %v1138, %v1284
        %v1286 = vpop.f32.mrb[0].mxu0
        %v1287 = vadd.f32 %v1142, %v1286
        %1288 = vmatprep.mubr.f32.mxu0 %v1154
        %1289 = vmatmul.mubr.f32.gmra.mrb[0].mxu0 %v1077
        %v1290 = vpop.f32.mrb[0].mxu0
        %v1291 = vadd.f32 %v1138, %v1290
        %v1292 = vpop.f32.mrb[0].mxu0
        %v1293 = vadd.f32 %v1142, %v1292
        %1294 = vmatprep.mubr.f32.mxu0 %v1156
        %1295 = vmatmul.mubr.f32.gmra.mrb[0].mxu0 %v1078
        %v1296 = vpop.f32.mrb[0].mxu0
        %v1297 = vadd.f32 %v1138, %v1296
        %v1298 = vpop.f32.mrb[0].mxu0
        %v1299 = vadd.f32 %v1142, %v1298
        %1300 = vmatprep.mubr.f32.mxu0 %v1158
        %1301 = vmatmul.mubr.f32.gmra.mrb[0].mxu0 %v1079
        %v1302 = vpop.f32.mrb[0].mxu0
        %v1303 = vadd.f32 %v1138, %v1302
        %v1304 = vpop.f32.mrb[0].mxu0
        %v1305 = vadd.f32 %v1142, %v1304
        %1306 = vmatprep.mubr.f32.mxu0 %v1160
        %1307 = vmatmul.mubr.f32.gmra.mrb[0].mxu0 %v1080
        %v1308 = vpop.f32.mrb[0].mxu0
        %v1309 = vadd.f32 %v1138, %v1308
        %v1310 = vpop.f32.mrb[0].mxu0
        %v1311 = vadd.f32 %v1142, %v1310
        %1312 = vmatprep.mubr.f32.mxu0 %v1162
        %1313 = vmatmul.mubr.f32.gmra.mrb[0].mxu0 %v1081
        %v1314 = vpop.f32.mrb[0].mxu0
        %v1315 = vadd.f32 %v1138, %v1314
        %v1316 = vpop.f32.mrb[0].mxu0
        %v1317 = vadd.f32 %v1142, %v1316
        %1318 = vmatprep.mubr.f32.mxu0 %v1164
        %1319 = vmatmul.mubr.f32.gmra.mrb[0].mxu0 %v1082
        %v1320 = vpop.f32.mrb[0].mxu0
        %v1321 = vadd.f32 %v1138, %v1320
        %v1322 = vpop.f32.mrb[0].mxu0
        %v1323 = vadd.f32 %v1142, %v1322
        %1324 = vmatprep.mubr.f32.mxu0 %v1166
        %1325 = vmatmul.mubr.f32.gmra.mrb[0].mxu0 %v1083
        %v1326 = vpop.f32.mrb[0].mxu0
        %v1327 = vadd.f32 %v1138, %v1326
        %v1328 = vpop.f32.mrb[0].mxu0
        %v1329 = vadd.f32 %v1142, %v1328
        %1330 = vmatprep.mubr.f32.mxu0 %v1168
        %1331 = vmatmul.mubr.f32.gmra.mrb[0].mxu0 %v1084
        %v1332 = vpop.f32.mrb[0].mxu0
        %v1333 = vadd.f32 %v1138, %v1332
        %v1334 = vpop.f32.mrb[0].mxu0
        %v1335 = vadd.f32 %v1142, %v1334
        %1336 = vmatprep.mubr.f32.mxu0 %v1170
        %1337 = vmatmul.mubr.f32.gmra.mrb[0].mxu0 %v1085
        %v1338 = vpop.f32.mrb[0].mxu0
        %v1339 = vadd.f32 %v1138, %v1338
        %v1340 = vpop.f32.mrb[0].mxu0
        %v1341 = vadd.f32 %v1142, %v1340
        %1342 = vmatprep.mubr.f32.mxu0 %v1172
        %1343 = vmatmul.mubr.f32.gmra.mrb[0].mxu0 %v1086
        %v1344 = vpop.f32.mrb[0].mxu0
        %v1345 = vadd.f32 %v1138, %v1344
        %v1346 = vpop.f32.mrb[0].mxu0
        %v1347 = vadd.f32 %v1142, %v1346
        %1348 = vmatprep.mubr.f32.mxu0 %v1174
        %1349 = vmatmul.mubr.f32.gmra.mrb[0].mxu0 %v1087
        %v1350 = vpop.f32.mrb[0].mxu0
        %v1351 = vadd.f32 %v1138, %v1350
        %v1352 = vpop.f32.mrb[0].mxu0
        %v1353 = vadd.f32 %v1142, %v1352
        %1354 = vmatprep.mubr.f32.mxu0 %v1176
        %1355 = vmatmul.mubr.f32.gmra.mrb[0].mxu0 %v1088
        %v1356 = vpop.f32.mrb[0].mxu0
        %v1357 = vadd.f32 %v1138, %v1356
        %v1358 = vpop.f32.mrb[0].mxu0
        %v1359 = vadd.f32 %v1142, %v1358
        %1360 = vmatprep.mubr.f32.mxu0 %v1178
        %1361 = vmatmul.mubr.f32.gmra.mrb[0].mxu0 %v1089
        %v1362 = vpop.f32.mrb[0].mxu0
        %v1363 = vadd.f32 %v1138, %v1362
        %v1364 = vpop.f32.mrb[0].mxu0
        %v1365 = vadd.f32 %v1142, %v1364
        %1366 = vmatprep.mubr.f32.mxu0 %v1180
        %1367 = vmatmul.mubr.f32.gmra.mrb[0].mxu0 %v1090
        %v1368 = vpop.f32.mrb[0].mxu0
        %v1369 = vadd.f32 %v1138, %v1368
        %v1370 = vpop.f32.mrb[0].mxu0
        %v1371 = vadd.f32 %v1142, %v1370
        %1372 = vmatprep.mubr.f32.mxu0 %v1182
        %1373 = vmatmul.mubr.f32.gmra.mrb[0].mxu0 %v1091
        %v1374 = vpop.f32.mrb[0].mxu0
        %v1375 = vadd.f32 %v1138, %v1374
        %v1376 = vpop.f32.mrb[0].mxu0
        %v1377 = vadd.f32 %v1142, %v1376
        %1378 = vmatprep.mubr.f32.mxu0 %v1184
        %1379 = vmatmul.mubr.f32.gmra.mrb[0].mxu0 %v1092
        %v1380 = vpop.f32.mrb[0].mxu0
        %v1381 = vadd.f32 %v1138, %v1380
        %v1382 = vpop.f32.mrb[0].mxu0
        %v1383 = vadd.f32 %v1142, %v1382
        %1384 = vmatprep.mubr.f32.mxu0 %v1186
        %1385 = vmatmul.mubr.f32.gmra.mrb[0].mxu0 %v1093
        %v1386 = vpop.f32.mrb[0].mxu0
        %v1387 = vadd.f32 %v1138, %v1386
        %v1388 = vpop.f32.mrb[0].mxu0
        %v1389 = vadd.f32 %v1142, %v1388
        %1390 = vmatprep.mubr.f32.mxu0 %v1188
        %1391 = vmatmul.mubr.f32.gmra.mrb[0].mxu0 %v1094
        %v1392 = vpop.f32.mrb[0].mxu0
        %v1393 = vadd.f32 %v1138, %v1392
        %v1394 = vpop.f32.mrb[0].mxu0
        %v1395 = vadd.f32 %v1142, %v1394
        %1396 = vmatprep.mubr.f32.mxu0 %v1190
        %1397 = vmatmul.mubr.f32.gmra.mrb[0].mxu0 %v1095
        %v1398 = vpop.f32.mrb[0].mxu0
        %v1399 = vadd.f32 %v1138, %v1398
        %v1400 = vpop.f32.mrb[0].mxu0
        %v1401 = vadd.f32 %v1142, %v1400
        %1402 = vmatprep.mubr.f32.mxu0 %v1192
        %1403 = vmatmul.mubr.f32.gmra.mrb[0].mxu0 %v1096
        %v1404 = vpop.f32.mrb[0].mxu0
        %v1405 = vadd.f32 %v1138, %v1404
        %v1406 = vpop.f32.mrb[0].mxu0
        %v1407 = vadd.f32 %v1142, %v1406
        %1408 = vdwg.mxu0
        %v1409 = vmax.f32 %v1267, 0.0
        %v1410 = vmax.f32 %v1269, 0.0
        %v1411 = vmax.f32 %v1273, 0.0
        %v1412 = vmax.f32 %v1275, 0.0
        %v1413 = vmax.f32 %v1279, 0.0
        %v1414 = vmax.f32 %v1281, 0.0
        %v1415 = vmax.f32 %v1285, 0.0
        %v1416 = vmax.f32 %v1287, 0.0
        %v1417 = vmax.f32 %v1291, 0.0
        %v1418 = vmax.f32 %v1293, 0.0
        %v1419 = vmax.f32 %v1297, 0.0
        %v1420 = vmax.f32 %v1299, 0.0
        %v1421 = vmax.f32 %v1303, 0.0
        %v1422 = vmax.f32 %v1305, 0.0
        %v1423 = vmax.f32 %v1309, 0.0
        %v1424 = vmax.f32 %v1311, 0.0
        %v1425 = vmax.f32 %v1315, 0.0
        %v1426 = vmax.f32 %v1317, 0.0
        %v1427 = vmax.f32 %v1321, 0.0
        %v1428 = vmax.f32 %v1323, 0.0
        %v1429 = vmax.f32 %v1327, 0.0
        %v1430 = vmax.f32 %v1329, 0.0
        %v1431 = vmax.f32 %v1333, 0.0
        %v1432 = vmax.f32 %v1335, 0.0
        %v1433 = vmax.f32 %v1339, 0.0
        %v1434 = vmax.f32 %v1341, 0.0
        %v1435 = vmax.f32 %v1345, 0.0
        %v1436 = vmax.f32 %v1347, 0.0
        %v1437 = vmax.f32 %v1351, 0.0
        %v1438 = vmax.f32 %v1353, 0.0
        %v1439 = vmax.f32 %v1357, 0.0
        %v1440 = vmax.f32 %v1359, 0.0
        %v1441 = vmax.f32 %v1363, 0.0
        %v1442 = vmax.f32 %v1365, 0.0
        %v1443 = vmax.f32 %v1369, 0.0
        %v1444 = vmax.f32 %v1371, 0.0
        %v1445 = vmax.f32 %v1375, 0.0
        %v1446 = vmax.f32 %v1377, 0.0
        %v1447 = vmax.f32 %v1381, 0.0
        %v1448 = vmax.f32 %v1383, 0.0
        %v1449 = vmax.f32 %v1387, 0.0
        %v1450 = vmax.f32 %v1389, 0.0
        %v1451 = vmax.f32 %v1393, 0.0
        %v1452 = vmax.f32 %v1395, 0.0
        %v1453 = vmax.f32 %v1399, 0.0
        %v1454 = vmax.f32 %v1401, 0.0
        %v1455 = vmax.f32 %v1405, 0.0
        %v1456 = vmax.f32 %v1407, 0.0
        %1505 = vrot.lane.b32.xlu0 %v1409, 127
        %v1506 = vpop.permute.xlu0 %1505
        %1507 = vrot.lane.b32.xlu0 %v1410, 127
        %v1508 = vpop.permute.xlu0 %1507
        %1509 = vrot.lane.b32.xlu0 %v1411, 127
        %v1510 = vpop.permute.xlu0 %1509
        %1511 = vrot.lane.b32.xlu0 %v1412, 127
        %v1512 = vpop.permute.xlu0 %1511
        %1513 = vrot.lane.b32.xlu0 %v1413, 127
        %v1514 = vpop.permute.xlu0 %1513
        %1515 = vrot.lane.b32.xlu0 %v1414, 127
        %v1516 = vpop.permute.xlu0 %1515
        %1517 = vrot.lane.b32.xlu0 %v1415, 127
        %v1518 = vpop.permute.xlu0 %1517
        %1519 = vrot.lane.b32.xlu0 %v1416, 127
        %v1520 = vpop.permute.xlu0 %1519
        %1521 = vrot.lane.b32.xlu0 %v1417, 127
        %v1522 = vpop.permute.xlu0 %1521
        %1523 = vrot.lane.b32.xlu0 %v1418, 127
        %v1524 = vpop.permute.xlu0 %1523
        %1525 = vrot.lane.b32.xlu0 %v1419, 127
        %v1526 = vpop.permute.xlu0 %1525
        %1527 = vrot.lane.b32.xlu0 %v1420, 127
        %v1528 = vpop.permute.xlu0 %1527
        %1529 = vrot.lane.b32.xlu0 %v1421, 127
        %v1530 = vpop.permute.xlu0 %1529
        %1531 = vrot.lane.b32.xlu0 %v1422, 127
        %v1532 = vpop.permute.xlu0 %1531
        %1533 = vrot.lane.b32.xlu0 %v1423, 127
        %v1534 = vpop.permute.xlu0 %1533
        %1535 = vrot.lane.b32.xlu0 %v1424, 127
        %v1536 = vpop.permute.xlu0 %1535
        %1537 = vrot.lane.b32.xlu0 %v1425, 127
        %v1538 = vpop.permute.xlu0 %1537
        %1539 = vrot.lane.b32.xlu0 %v1426, 127
        %v1540 = vpop.permute.xlu0 %1539
        %1541 = vrot.lane.b32.xlu0 %v1427, 127
        %v1542 = vpop.permute.xlu0 %1541
        %1543 = vrot.lane.b32.xlu0 %v1428, 127
        %v1544 = vpop.permute.xlu0 %1543
        %1545 = vrot.lane.b32.xlu0 %v1429, 127
        %v1546 = vpop.permute.xlu0 %1545
        %1547 = vrot.lane.b32.xlu0 %v1430, 127
        %v1548 = vpop.permute.xlu0 %1547
        %1549 = vrot.lane.b32.xlu0 %v1431, 127
        %v1550 = vpop.permute.xlu0 %1549
        %1551 = vrot.lane.b32.xlu0 %v1432, 127
        %v1552 = vpop.permute.xlu0 %1551
        %1553 = vrot.lane.b32.xlu0 %v1433, 127
        %v1554 = vpop.permute.xlu0 %1553
        %1555 = vrot.lane.b32.xlu0 %v1434, 127
        %v1556 = vpop.permute.xlu0 %1555
        %1557 = vrot.lane.b32.xlu0 %v1435, 127
        %v1558 = vpop.permute.xlu0 %1557
        %1559 = vrot.lane.b32.xlu0 %v1436, 127
        %v1560 = vpop.permute.xlu0 %1559
        %1561 = vrot.lane.b32.xlu0 %v1437, 127
        %v1562 = vpop.permute.xlu0 %1561
        %1563 = vrot.lane.b32.xlu0 %v1438, 127
        %v1564 = vpop.permute.xlu0 %1563
        %1565 = vrot.lane.b32.xlu0 %v1439, 127
        %v1566 = vpop.permute.xlu0 %1565
        %1567 = vrot.lane.b32.xlu0 %v1440, 127
        %v1568 = vpop.permute.xlu0 %1567
        %1569 = vrot.lane.b32.xlu0 %v1441, 127
        %v1570 = vpop.permute.xlu0 %1569
        %1571 = vrot.lane.b32.xlu0 %v1442, 127
        %v1572 = vpop.permute.xlu0 %1571
        %1573 = vrot.lane.b32.xlu0 %v1443, 127
        %v1574 = vpop.permute.xlu0 %1573
        %1575 = vrot.lane.b32.xlu0 %v1444, 127
        %v1576 = vpop.permute.xlu0 %1575
        %1577 = vrot.lane.b32.xlu0 %v1445, 127
        %v1578 = vpop.permute.xlu0 %1577
        %1579 = vrot.lane.b32.xlu0 %v1446, 127
        %v1580 = vpop.permute.xlu0 %1579
        %1581 = vrot.lane.b32.xlu0 %v1447, 127
        %v1582 = vpop.permute.xlu0 %1581
        %1583 = vrot.lane.b32.xlu0 %v1448, 127
        %v1584 = vpop.permute.xlu0 %1583
        %1585 = vrot.lane.b32.xlu0 %v1449, 127
        %v1586 = vpop.permute.xlu0 %1585
        %1587 = vrot.lane.b32.xlu0 %v1450, 127
        %v1588 = vpop.permute.xlu0 %1587
        %1589 = vrot.lane.b32.xlu0 %v1451, 127
        %v1590 = vpop.permute.xlu0 %1589
        %1591 = vrot.lane.b32.xlu0 %v1452, 127
        %v1592 = vpop.permute.xlu0 %1591
        %1593 = vrot.lane.b32.xlu0 %v1453, 127
        %v1594 = vpop.permute.xlu0 %1593
        %1595 = vrot.lane.b32.xlu0 %v1454, 127
        %v1596 = vpop.permute.xlu0 %1595
        %1597 = vrot.lane.b32.xlu0 %v1455, 127
        %v1598 = vpop.permute.xlu0 %1597
        %1599 = vrot.lane.b32.xlu0 %v1456, 127
        %v1600 = vpop.permute.xlu0 %1599
        %vm1601 = vcmask 1039360
        %v1602 = vsel %vm1601, %v1506, %v1508
        %v1603 = vsel %vm1601, %v1510, %v1512
        %v1604 = vsel %vm1601, %v1514, %v1516
        %v1605 = vsel %vm1601, %v1518, %v1520
        %v1606 = vsel %vm1601, %v1522, %v1524
        %v1607 = vsel %vm1601, %v1526, %v1528
        %v1608 = vsel %vm1601, %v1530, %v1532
        %v1609 = vsel %vm1601, %v1534, %v1536
        %v1610 = vsel %vm1601, %v1538, %v1540
        %v1611 = vsel %vm1601, %v1542, %v1544
        %v1612 = vsel %vm1601, %v1546, %v1548
        %v1613 = vsel %vm1601, %v1550, %v1552
        %v1614 = vsel %vm1601, %v1554, %v1556
        %v1615 = vsel %vm1601, %v1558, %v1560
        %v1616 = vsel %vm1601, %v1562, %v1564
        %v1617 = vsel %vm1601, %v1566, %v1568
        %v1618 = vsel %vm1601, %v1570, %v1572
        %v1619 = vsel %vm1601, %v1574, %v1576
        %v1620 = vsel %vm1601, %v1578, %v1580
        %v1621 = vsel %vm1601, %v1582, %v1584
        %v1622 = vsel %vm1601, %v1586, %v1588
        %v1623 = vsel %vm1601, %v1590, %v1592
        %v1624 = vsel %vm1601, %v1594, %v1596
        %v1625 = vsel %vm1601, %v1598, %v1600
        %1674 = vrot.lane.b32.xlu0 %v1409, 15
        %v1675 = vpop.permute.xlu0 %1674
        %1676 = vrot.lane.b32.xlu0 %v1411, 15
        %v1677 = vpop.permute.xlu0 %1676
        %1678 = vrot.lane.b32.xlu0 %v1413, 15
        %v1679 = vpop.permute.xlu0 %1678
        %1680 = vrot.lane.b32.xlu0 %v1415, 15
        %v1681 = vpop.permute.xlu0 %1680
        %1682 = vrot.lane.b32.xlu0 %v1417, 15
        %v1683 = vpop.permute.xlu0 %1682
        %1684 = vrot.lane.b32.xlu0 %v1419, 15
        %v1685 = vpop.permute.xlu0 %1684
        %1686 = vrot.lane.b32.xlu0 %v1421, 15
        %v1687 = vpop.permute.xlu0 %1686
        %1688 = vrot.lane.b32.xlu0 %v1423, 15
        %v1689 = vpop.permute.xlu0 %1688
        %1690 = vrot.lane.b32.xlu0 %v1425, 15
        %v1691 = vpop.permute.xlu0 %1690
        %1692 = vrot.lane.b32.xlu0 %v1427, 15
        %v1693 = vpop.permute.xlu0 %1692
        %1694 = vrot.lane.b32.xlu0 %v1429, 15
        %v1695 = vpop.permute.xlu0 %1694
        %1696 = vrot.lane.b32.xlu0 %v1431, 15
        %v1697 = vpop.permute.xlu0 %1696
        %1698 = vrot.lane.b32.xlu0 %v1433, 15
        %v1699 = vpop.permute.xlu0 %1698
        %1700 = vrot.lane.b32.xlu0 %v1435, 15
        %v1701 = vpop.permute.xlu0 %1700
        %1702 = vrot.lane.b32.xlu0 %v1437, 15
        %v1703 = vpop.permute.xlu0 %1702
        %1704 = vrot.lane.b32.xlu0 %v1439, 15
        %v1705 = vpop.permute.xlu0 %1704
        %1706 = vrot.lane.b32.xlu0 %v1441, 15
        %v1707 = vpop.permute.xlu0 %1706
        %1708 = vrot.lane.b32.xlu0 %v1443, 15
        %v1709 = vpop.permute.xlu0 %1708
        %1710 = vrot.lane.b32.xlu0 %v1445, 15
        %v1711 = vpop.permute.xlu0 %1710
        %1712 = vrot.lane.b32.xlu0 %v1447, 15
        %v1713 = vpop.permute.xlu0 %1712
        %1714 = vrot.lane.b32.xlu0 %v1449, 15
        %v1715 = vpop.permute.xlu0 %1714
        %1716 = vrot.lane.b32.xlu0 %v1451, 15
        %v1717 = vpop.permute.xlu0 %1716
        %1718 = vrot.lane.b32.xlu0 %v1453, 15
        %v1719 = vpop.permute.xlu0 %1718
        %1720 = vrot.lane.b32.xlu0 %v1455, 15
        %v1721 = vpop.permute.xlu0 %1720
        %vm1746 = vcmask 121856
        %v1747 = vsel %vm1746, %v1508, %v1675
        %v1748 = vsel %vm1746, %v1512, %v1677
        %v1749 = vsel %vm1746, %v1516, %v1679
        %v1750 = vsel %vm1746, %v1520, %v1681
        %v1751 = vsel %vm1746, %v1524, %v1683
        %v1752 = vsel %vm1746, %v1528, %v1685
        %v1753 = vsel %vm1746, %v1532, %v1687
        %v1754 = vsel %vm1746, %v1536, %v1689
        %v1755 = vsel %vm1746, %v1540, %v1691
        %v1756 = vsel %vm1746, %v1544, %v1693
        %v1757 = vsel %vm1746, %v1548, %v1695
        %v1758 = vsel %vm1746, %v1552, %v1697
        %v1759 = vsel %vm1746, %v1556, %v1699
        %v1760 = vsel %vm1746, %v1560, %v1701
        %v1761 = vsel %vm1746, %v1564, %v1703
        %v1762 = vsel %vm1746, %v1568, %v1705
        %v1763 = vsel %vm1746, %v1572, %v1707
        %v1764 = vsel %vm1746, %v1576, %v1709
        %v1765 = vsel %vm1746, %v1580, %v1711
        %v1766 = vsel %vm1746, %v1584, %v1713
        %v1767 = vsel %vm1746, %v1588, %v1715
        %v1768 = vsel %vm1746, %v1592, %v1717
        %v1769 = vsel %vm1746, %v1596, %v1719
        %v1770 = vsel %vm1746, %v1600, %v1721
        %v1771 = vmax.f32 %v1409, %v1602
        %v1772 = vmax.f32 %v1410, %v1747
        %v1773 = vmax.f32 %v1411, %v1603
        %v1774 = vmax.f32 %v1412, %v1748
        %v1775 = vmax.f32 %v1413, %v1604
        %v1776 = vmax.f32 %v1414, %v1749
        %v1777 = vmax.f32 %v1415, %v1605
        %v1778 = vmax.f32 %v1416, %v1750
        %v1779 = vmax.f32 %v1417, %v1606
        %v1780 = vmax.f32 %v1418, %v1751
        %v1781 = vmax.f32 %v1419, %v1607
        %v1782 = vmax.f32 %v1420, %v1752
        %v1783 = vmax.f32 %v1421, %v1608
        %v1784 = vmax.f32 %v1422, %v1753
        %v1785 = vmax.f32 %v1423, %v1609
        %v1786 = vmax.f32 %v1424, %v1754
        %v1787 = vmax.f32 %v1425, %v1610
        %v1788 = vmax.f32 %v1426, %v1755
        %v1789 = vmax.f32 %v1427, %v1611
        %v1790 = vmax.f32 %v1428, %v1756
        %v1791 = vmax.f32 %v1429, %v1612
        %v1792 = vmax.f32 %v1430, %v1757
        %v1793 = vmax.f32 %v1431, %v1613
        %v1794 = vmax.f32 %v1432, %v1758
        %v1795 = vmax.f32 %v1433, %v1614
        %v1796 = vmax.f32 %v1434, %v1759
        %v1797 = vmax.f32 %v1435, %v1615
        %v1798 = vmax.f32 %v1436, %v1760
        %v1799 = vmax.f32 %v1437, %v1616
        %v1800 = vmax.f32 %v1438, %v1761
        %v1801 = vmax.f32 %v1439, %v1617
        %v1802 = vmax.f32 %v1440, %v1762
        %v1803 = vmax.f32 %v1441, %v1618
        %v1804 = vmax.f32 %v1442, %v1763
        %v1805 = vmax.f32 %v1443, %v1619
        %v1806 = vmax.f32 %v1444, %v1764
        %v1807 = vmax.f32 %v1445, %v1620
        %v1808 = vmax.f32 %v1446, %v1765
        %v1809 = vmax.f32 %v1447, %v1621
        %v1810 = vmax.f32 %v1448, %v1766
        %v1811 = vmax.f32 %v1449, %v1622
        %v1812 = vmax.f32 %v1450, %v1767
        %v1813 = vmax.f32 %v1451, %v1623
        %v1814 = vmax.f32 %v1452, %v1768
        %v1815 = vmax.f32 %v1453, %v1624
        %v1816 = vmax.f32 %v1454, %v1769
        %v1817 = vmax.f32 %v1455, %v1625
        %v1818 = vmax.f32 %v1456, %v1770
        %v1867 = vrot.slane %v1771, 1
        %v1868 = vrot.slane %v1773, 1
        %v1869 = vsel %vm481, %v1867, %v1868
        %v1870 = vrot.slane %v1772, 1
        %v1871 = vrot.slane %v1774, 1
        %v1872 = vsel %vm481, %v1870, %v1871
        %v1873 = vrot.slane %v1775, 1
        %v1874 = vsel %vm481, %v1868, %v1873
        %v1875 = vrot.slane %v1776, 1
        %v1876 = vsel %vm481, %v1871, %v1875
        %v1877 = vrot.slane %v1777, 1
        %v1878 = vsel %vm481, %v1873, %v1877
        %v1879 = vrot.slane %v1778, 1
        %v1880 = vsel %vm481, %v1875, %v1879
        %v1881 = vrot.slane %v1779, 1
        %v1882 = vsel %vm481, %v1877, %v1881
        %v1883 = vrot.slane %v1780, 1
        %v1884 = vsel %vm481, %v1879, %v1883
        %v1885 = vrot.slane %v1781, 1
        %v1886 = vsel %vm481, %v1881, %v1885
        %v1887 = vrot.slane %v1782, 1
        %v1888 = vsel %vm481, %v1883, %v1887
        %v1889 = vrot.slane %v1783, 1
        %v1890 = vsel %vm481, %v1885, %v1889
        %v1891 = vrot.slane %v1784, 1
        %v1892 = vsel %vm481, %v1887, %v1891
        %v1893 = vrot.slane %v1785, 1
        %v1894 = vsel %vm481, %v1889, %v1893
        %v1895 = vrot.slane %v1786, 1
        %v1896 = vsel %vm481, %v1891, %v1895
        %v1897 = vrot.slane %v1787, 1
        %v1898 = vsel %vm481, %v1893, %v1897
        %v1899 = vrot.slane %v1788, 1
        %v1900 = vsel %vm481, %v1895, %v1899
        %v1901 = vrot.slane %v1789, 1
        %v1902 = vsel %vm481, %v1897, %v1901
        %v1903 = vrot.slane %v1790, 1
        %v1904 = vsel %vm481, %v1899, %v1903
        %v1905 = vrot.slane %v1791, 1
        %v1906 = vsel %vm481, %v1901, %v1905
        %v1907 = vrot.slane %v1792, 1
        %v1908 = vsel %vm481, %v1903, %v1907
        %v1909 = vrot.slane %v1793, 1
        %v1910 = vsel %vm481, %v1905, %v1909
        %v1911 = vrot.slane %v1794, 1
        %v1912 = vsel %vm481, %v1907, %v1911
        %v1913 = vrot.slane %v1795, 1
        %v1914 = vsel %vm481, %v1909, %v1913
        %v1915 = vrot.slane %v1796, 1
        %v1916 = vsel %vm481, %v1911, %v1915
        %v1917 = vrot.slane %v1797, 1
        %v1918 = vsel %vm481, %v1913, %v1917
        %v1919 = vrot.slane %v1798, 1
        %v1920 = vsel %vm481, %v1915, %v1919
        %v1921 = vrot.slane %v1799, 1
        %v1922 = vsel %vm481, %v1917, %v1921
        %v1923 = vrot.slane %v1800, 1
        %v1924 = vsel %vm481, %v1919, %v1923
        %v1925 = vrot.slane %v1801, 1
        %v1926 = vsel %vm481, %v1921, %v1925
        %v1927 = vrot.slane %v1802, 1
        %v1928 = vsel %vm481, %v1923, %v1927
        %v1929 = vrot.slane %v1803, 1
        %v1930 = vsel %vm481, %v1925, %v1929
        %v1931 = vrot.slane %v1804, 1
        %v1932 = vsel %vm481, %v1927, %v1931
        %v1933 = vrot.slane %v1805, 1
        %v1934 = vsel %vm481, %v1929, %v1933
        %v1935 = vrot.slane %v1806, 1
        %v1936 = vsel %vm481, %v1931, %v1935
        %v1937 = vrot.slane %v1807, 1
        %v1938 = vsel %vm481, %v1933, %v1937
        %v1939 = vrot.slane %v1808, 1
        %v1940 = vsel %vm481, %v1935, %v1939
        %v1941 = vrot.slane %v1809, 1
        %v1942 = vsel %vm481, %v1937, %v1941
        %v1943 = vrot.slane %v1810, 1
        %v1944 = vsel %vm481, %v1939, %v1943
        %v1945 = vrot.slane %v1811, 1
        %v1946 = vsel %vm481, %v1941, %v1945
        %v1947 = vrot.slane %v1812, 1
        %v1948 = vsel %vm481, %v1943, %v1947
        %v1949 = vrot.slane %v1813, 1
        %v1950 = vsel %vm481, %v1945, %v1949
        %v1951 = vrot.slane %v1814, 1
        %v1952 = vsel %vm481, %v1947, %v1951
        %v1953 = vrot.slane %v1815, 1
        %v1954 = vsel %vm481, %v1949, %v1953
        %v1955 = vrot.slane %v1816, 1
        %v1956 = vsel %vm481, %v1951, %v1955
        %v1957 = vrot.slane %v1817, 1
        %v1958 = vsel %vm481, %v1953, %v1957
        %v1959 = vrot.slane %v1818, 1
        %v1960 = vsel %vm481, %v1955, %v1959
        %v2011 = vsel %vm481, %v1957, %v1867
        %v2012 = vsel %vm481, %v1959, %v1870
        %v2013 = vmax.f32 %v1771, %v1869
        %v2014 = vmax.f32 %v1772, %v1872
        %v2015 = vmax.f32 %v1773, %v1874
        %v2016 = vmax.f32 %v1774, %v1876
        %v2017 = vmax.f32 %v1775, %v1878
        %v2018 = vmax.f32 %v1776, %v1880
        %v2019 = vmax.f32 %v1777, %v1882
        %v2020 = vmax.f32 %v1778, %v1884
        %v2021 = vmax.f32 %v1779, %v1886
        %v2022 = vmax.f32 %v1780, %v1888
        %v2023 = vmax.f32 %v1781, %v1890
        %v2024 = vmax.f32 %v1782, %v1892
        %v2025 = vmax.f32 %v1783, %v1894
        %v2026 = vmax.f32 %v1784, %v1896
        %v2027 = vmax.f32 %v1785, %v1898
        %v2028 = vmax.f32 %v1786, %v1900
        %v2029 = vmax.f32 %v1787, %v1902
        %v2030 = vmax.f32 %v1788, %v1904
        %v2031 = vmax.f32 %v1789, %v1906
        %v2032 = vmax.f32 %v1790, %v1908
        %v2033 = vmax.f32 %v1791, %v1910
        %v2034 = vmax.f32 %v1792, %v1912
        %v2035 = vmax.f32 %v1793, %v1914
        %v2036 = vmax.f32 %v1794, %v1916
        %v2037 = vmax.f32 %v1795, %v1918
        %v2038 = vmax.f32 %v1796, %v1920
        %v2039 = vmax.f32 %v1797, %v1922
        %v2040 = vmax.f32 %v1798, %v1924
        %v2041 = vmax.f32 %v1799, %v1926
        %v2042 = vmax.f32 %v1800, %v1928
        %v2043 = vmax.f32 %v1801, %v1930
        %v2044 = vmax.f32 %v1802, %v1932
        %v2045 = vmax.f32 %v1803, %v1934
        %v2046 = vmax.f32 %v1804, %v1936
        %v2047 = vmax.f32 %v1805, %v1938
        %v2048 = vmax.f32 %v1806, %v1940
        %v2049 = vmax.f32 %v1807, %v1942
        %v2050 = vmax.f32 %v1808, %v1944
        %v2051 = vmax.f32 %v1809, %v1946
        %v2052 = vmax.f32 %v1810, %v1948
        %v2053 = vmax.f32 %v1811, %v1950
        %v2054 = vmax.f32 %v1812, %v1952
        %v2055 = vmax.f32 %v1813, %v1954
        %v2056 = vmax.f32 %v1814, %v1956
        %v2057 = vmax.f32 %v1815, %v1958
        %v2058 = vmax.f32 %v1816, %v1960
        %v2059 = vmax.f32 %v1817, %v2011
        %v2060 = vmax.f32 %v1818, %v2012
        %v2061 = vld [vmem:[%s3] sm:$0xff]
        %v2062 = vld [vmem:[%s3 + $0x8] sm:$0xff]
        %v2063 = vld [vmem:[%s3 + $0x10] sm:$0xff]
        %v2064 = vld [vmem:[%s3 + $0x18] sm:$0xff]
        %v2065 = vld [vmem:[%s3 + $0x20] sm:$0xff]
        %v2066 = vld [vmem:[%s3 + $0x28] sm:$0xff]
        %v2067 = vld [vmem:[%s3 + $0x30] sm:$0xff]
        %v2068 = vld [vmem:[%s3 + $0x38] sm:$0xff]
        %v2069 = vld [vmem:[%s3 + $0x40] sm:$0xff]
        %v2070 = vld [vmem:[%s3 + $0x48] sm:$0xff]
        %v2071 = vld [vmem:[%s3 + $0x50] sm:$0xff]
        %v2072 = vld [vmem:[%s3 + $0x58] sm:$0xff]
        %v2073 = vld [vmem:[%s3 + $0x60] sm:$0xff]
        %v2074 = vld [vmem:[%s3 + $0x68] sm:$0xff]
        %v2075 = vld [vmem:[%s3 + $0x70] sm:$0xff]
        %v2076 = vld [vmem:[%s3 + $0x78] sm:$0xff]
        %v2077 = vld [vmem:[%s3 + $0x80] sm:$0xff]
        %v2078 = vld [vmem:[%s3 + $0x88] sm:$0xff]
        %v2079 = vld [vmem:[%s3 + $0x90] sm:$0xff]
        %v2080 = vld [vmem:[%s3 + $0x98] sm:$0xff]
        %v2081 = vld [vmem:[%s3 + $0xa0] sm:$0xff]
        %v2082 = vld [vmem:[%s3 + $0xa8] sm:$0xff]
        %v2083 = vld [vmem:[%s3 + $0xb0] sm:$0xff]
        %v2084 = vld [vmem:[%s3 + $0xb8] sm:$0xff]
        %vm2085 = vcmask 523264
        %v2087 = vsel %vm2085, %v2062, 0
        %v2090 = vsel %vm2085, %v2064, 0
        %v2093 = vsel %vm2085, %v2066, 0
        %v2096 = vsel %vm2085, %v2068, 0
        %v2099 = vsel %vm2085, %v2070, 0
        %v2102 = vsel %vm2085, %v2072, 0
        %v2105 = vsel %vm2085, %v2074, 0
        %v2108 = vsel %vm2085, %v2076, 0
        %v2111 = vsel %vm2085, %v2078, 0
        %v2114 = vsel %vm2085, %v2080, 0
        %v2117 = vsel %vm2085, %v2082, 0
        %v2120 = vsel %vm2085, %v2084, 0
        %2122 = vmatprep.subr.mxu0 %v2014
        %2123 = vmatpush1.msra.mxu0 %v2013
        %2124 = vmatprep.subr.mxu0 %v2016
        %2125 = vmatpush1.msra.mxu0 %v2015
        %2126 = vmatprep.subr.mxu0 %v2018
        %2127 = vmatpush1.msra.mxu0 %v2017
        %2128 = vmatprep.subr.mxu0 %v2020
        %2129 = vmatpush1.msra.mxu0 %v2019
        %2130 = vmatprep.subr.mxu0 %v2022
        %2131 = vmatpush1.msra.mxu0 %v2021
        %2132 = vmatprep.subr.mxu0 %v2024
        %2133 = vmatpush1.msra.mxu0 %v2023
        %2134 = vmatprep.subr.mxu0 %v2026
        %2135 = vmatpush1.msra.mxu0 %v2025
        %2136 = vmatprep.subr.mxu0 %v2028
        %2137 = vmatpush1.msra.mxu0 %v2027
        %2138 = vmatprep.subr.mxu0 %v2030
        %2139 = vmatpush1.msra.mxu0 %v2029
        %2140 = vmatprep.subr.mxu0 %v2032
        %2141 = vmatpush1.msra.mxu0 %v2031
        %2142 = vmatprep.subr.mxu0 %v2034
        %2143 = vmatpush1.msra.mxu0 %v2033
        %2144 = vmatprep.subr.mxu0 %v2036
        %2145 = vmatpush1.msra.mxu0 %v2035
        %2146 = vmatprep.subr.mxu0 %v2038
        %2147 = vmatpush1.msra.mxu0 %v2037
        %2148 = vmatprep.subr.mxu0 %v2040
        %2149 = vmatpush1.msra.mxu0 %v2039
        %2150 = vmatprep.subr.mxu0 %v2042
        %2151 = vmatpush1.msra.mxu0 %v2041
        %2152 = vmatprep.subr.mxu0 %v2044
        %2153 = vmatpush1.msra.mxu0 %v2043
        %2154 = vmatprep.subr.mxu0 %v2046
        %2155 = vmatpush1.msra.mxu0 %v2045
        %2156 = vmatprep.subr.mxu0 %v2048
        %2157 = vmatpush1.msra.mxu0 %v2047
        %2158 = vmatprep.subr.mxu0 %v2050
        %2159 = vmatpush1.msra.mxu0 %v2049
        %2160 = vmatprep.subr.mxu0 %v2052
        %2161 = vmatpush1.msra.mxu0 %v2051
        %2162 = vmatprep.subr.mxu0 %v2054
        %2163 = vmatpush1.msra.mxu0 %v2053
        %2164 = vmatprep.subr.mxu0 %v2056
        %2165 = vmatpush1.msra.mxu0 %v2055
        %2166 = vmatprep.subr.mxu0 %v2058
        %2167 = vmatpush1.msra.mxu0 %v2057
        %2168 = vmatprep.subr.mxu0 %v2060
        %2169 = vmatpush1.msra.mxu0 %v2059
        %2170 = vmatprep.subr.mxu0 0.0
        %2171 = vmatpush1.msra.mxu0 0.0
        %2172 = vmatprep.subr.mxu0 0.0
        %2173 = vmatpush1.msra.mxu0 0.0
        %2174 = vmatprep.subr.mxu0 0.0
        %2175 = vmatpush1.msra.mxu0 0.0
        %2176 = vmatprep.subr.mxu0 0.0
        %2177 = vmatpush1.msra.mxu0 0.0
        %2178 = vmatprep.subr.mxu0 0.0
        %2179 = vmatpush1.msra.mxu0 0.0
        %2180 = vmatprep.subr.mxu0 0.0
        %2181 = vmatpush1.msra.mxu0 0.0
        %2182 = vmatprep.subr.mxu0 0.0
        %2183 = vmatpush1.msra.mxu0 0.0
        %2184 = vmatprep.subr.mxu0 0.0
        %2185 = vmatpush1.msra.mxu0 0.0
        %2186 = vmatprep.mubr.f32.mxu0 %v2087
        %2187 = vmatmul.mubr.f32.gmra.mrb[0].mxu0 %v2061
        %v2188 = vpop.f32.mrb[0].mxu0
        %v2189 = vadd.f32 0.0, %v2188
        %v2190 = vpop.f32.mrb[0].mxu0
        %v2191 = vadd.f32 0.0, %v2190
        %2192 = vmatprep.mubr.f32.mxu0 %v2090
        %2193 = vmatmul.mubr.f32.gmra.mrb[0].mxu0 %v2063
        %v2194 = vpop.f32.mrb[0].mxu0
        %v2195 = vadd.f32 0.0, %v2194
        %v2196 = vpop.f32.mrb[0].mxu0
        %v2197 = vadd.f32 0.0, %v2196
        %2198 = vmatprep.mubr.f32.mxu0 %v2093
        %2199 = vmatmul.mubr.f32.gmra.mrb[0].mxu0 %v2065
        %v2200 = vpop.f32.mrb[0].mxu0
        %v2201 = vadd.f32 0.0, %v2200
        %v2202 = vpop.f32.mrb[0].mxu0
        %v2203 = vadd.f32 0.0, %v2202
        %2204 = vmatprep.mubr.f32.mxu0 %v2096
        %2205 = vmatmul.mubr.f32.gmra.mrb[0].mxu0 %v2067
        %v2206 = vpop.f32.mrb[0].mxu0
        %v2207 = vadd.f32 0.0, %v2206
        %v2208 = vpop.f32.mrb[0].mxu0
        %v2209 = vadd.f32 0.0, %v2208
        %2210 = vmatprep.mubr.f32.mxu0 %v2099
        %2211 = vmatmul.mubr.f32.gmra.mrb[0].mxu0 %v2069
        %v2212 = vpop.f32.mrb[0].mxu0
        %v2213 = vadd.f32 0.0, %v2212
        %v2214 = vpop.f32.mrb[0].mxu0
        %v2215 = vadd.f32 0.0, %v2214
        %2216 = vmatprep.mubr.f32.mxu0 %v2102
        %2217 = vmatmul.mubr.f32.gmra.mrb[0].mxu0 %v2071
        %v2218 = vpop.f32.mrb[0].mxu0
        %v2219 = vadd.f32 0.0, %v2218
        %v2220 = vpop.f32.mrb[0].mxu0
        %v2221 = vadd.f32 0.0, %v2220
        %2222 = vmatprep.mubr.f32.mxu0 %v2105
        %2223 = vmatmul.mubr.f32.gmra.mrb[0].mxu0 %v2073
        %v2224 = vpop.f32.mrb[0].mxu0
        %v2225 = vadd.f32 0.0, %v2224
        %v2226 = vpop.f32.mrb[0].mxu0
        %v2227 = vadd.f32 0.0, %v2226
        %2228 = vmatprep.mubr.f32.mxu0 %v2108
        %2229 = vmatmul.mubr.f32.gmra.mrb[0].mxu0 %v2075
        %v2230 = vpop.f32.mrb[0].mxu0
        %v2231 = vadd.f32 0.0, %v2230
        %v2232 = vpop.f32.mrb[0].mxu0
        %v2233 = vadd.f32 0.0, %v2232
        %2234 = vmatprep.mubr.f32.mxu0 %v2111
        %2235 = vmatmul.mubr.f32.gmra.mrb[0].mxu0 %v2077
        %v2236 = vpop.f32.mrb[0].mxu0
        %v2237 = vadd.f32 0.0, %v2236
        %v2238 = vpop.f32.mrb[0].mxu0
        %v2239 = vadd.f32 0.0, %v2238
        %2240 = vmatprep.mubr.f32.mxu0 %v2114
        %2241 = vmatmul.mubr.f32.gmra.mrb[0].mxu0 %v2079
        %v2242 = vpop.f32.mrb[0].mxu0
        %v2243 = vadd.f32 0.0, %v2242
        %v2244 = vpop.f32.mrb[0].mxu0
        %v2245 = vadd.f32 0.0, %v2244
        %2246 = vmatprep.mubr.f32.mxu0 %v2117
        %2247 = vmatmul.mubr.f32.gmra.mrb[0].mxu0 %v2081
        %v2248 = vpop.f32.mrb[0].mxu0
        %v2249 = vadd.f32 0.0, %v2248
        %v2250 = vpop.f32.mrb[0].mxu0
        %v2251 = vadd.f32 0.0, %v2250
        %2252 = vmatprep.mubr.f32.mxu0 %v2120
        %2253 = vmatmul.mubr.f32.gmra.mrb[0].mxu0 %v2083
        %v2254 = vpop.f32.mrb[0].mxu0
        %v2255 = vadd.f32 0.0, %v2254
        %v2256 = vpop.f32.mrb[0].mxu0
        %v2257 = vadd.f32 0.0, %v2256
        %2258 = vdwg.mxu0
        %2261 = vrot.lane.b32.xlu0 %v2195, 16
        %v2262 = vpop.permute.xlu0 %2261
        %2263 = vrot.lane.b32.xlu0 %v2197, 16
        %v2264 = vpop.permute.xlu0 %2263
        %vm2265 = vcmask 130048
        %v2266 = vsel %vm2265, %v2262, %v2264
        %2271 = vrot.lane.b32.xlu0 %v2201, 32
        %v2272 = vpop.permute.xlu0 %2271
        %2273 = vrot.lane.b32.xlu0 %v2203, 32
        %v2274 = vpop.permute.xlu0 %2273
        %vm2275 = vcmask 261120
        %v2276 = vsel %vm2275, %v2272, %v2274
        %2281 = vrot.lane.b32.xlu0 %v2207, 48
        %v2282 = vpop.permute.xlu0 %2281
        %2283 = vrot.lane.b32.xlu0 %v2209, 48
        %v2284 = vpop.permute.xlu0 %2283
        %vm2285 = vcmask 392192
        %v2286 = vsel %vm2285, %v2282, %v2284
        %2291 = vrot.lane.b32.xlu0 %v2213, 64
        %v2292 = vpop.permute.xlu0 %2291
        %2293 = vrot.lane.b32.xlu0 %v2215, 64
        %v2294 = vpop.permute.xlu0 %2293
        %v2295 = vsel %vm2085, %v2292, %v2294
        %v2297 = vsel %vm2265, %v2191, %v2262
        %v2298 = vsel %vm2275, %v2266, %v2272
        %v2299 = vsel %vm2285, %v2276, %v2282
        %v2300 = vsel %vm2085, %v2286, %v2292
        %2301 = vrot.lane.b32.xlu0 %v2201, 16
        %v2302 = vpop.permute.xlu0 %2301
        %2303 = vrot.lane.b32.xlu0 %v2203, 16
        %v2304 = vpop.permute.xlu0 %2303
        %v2305 = vsel %vm2265, %v2302, %v2304
        %2308 = vrot.lane.b32.xlu0 %v2207, 32
        %v2309 = vpop.permute.xlu0 %2308
        %2310 = vrot.lane.b32.xlu0 %v2209, 32
        %v2311 = vpop.permute.xlu0 %2310
        %v2312 = vsel %vm2275, %v2309, %v2311
        %2315 = vrot.lane.b32.xlu0 %v2213, 48
        %v2316 = vpop.permute.xlu0 %2315
        %2317 = vrot.lane.b32.xlu0 %v2215, 48
        %v2318 = vpop.permute.xlu0 %2317
        %v2319 = vsel %vm2285, %v2316, %v2318
        %2324 = vrot.lane.b32.xlu0 %v2219, 64
        %v2325 = vpop.permute.xlu0 %2324
        %2326 = vrot.lane.b32.xlu0 %v2221, 64
        %v2327 = vpop.permute.xlu0 %2326
        %v2328 = vsel %vm2085, %v2325, %v2327
        %v2330 = vsel %vm2265, %v2197, %v2302
        %v2331 = vsel %vm2275, %v2305, %v2309
        %v2332 = vsel %vm2285, %v2312, %v2316
        %v2333 = vsel %vm2085, %v2319, %v2325
        %2334 = vrot.lane.b32.xlu0 %v2207, 16
        %v2335 = vpop.permute.xlu0 %2334
        %2336 = vrot.lane.b32.xlu0 %v2209, 16
        %v2337 = vpop.permute.xlu0 %2336
        %v2338 = vsel %vm2265, %v2335, %v2337
        %2341 = vrot.lane.b32.xlu0 %v2213, 32
        %v2342 = vpop.permute.xlu0 %2341
        %2343 = vrot.lane.b32.xlu0 %v2215, 32
        %v2344 = vpop.permute.xlu0 %2343
        %v2345 = vsel %vm2275, %v2342, %v2344
        %2348 = vrot.lane.b32.xlu0 %v2219, 48
        %v2349 = vpop.permute.xlu0 %2348
        %2350 = vrot.lane.b32.xlu0 %v2221, 48
        %v2351 = vpop.permute.xlu0 %2350
        %v2352 = vsel %vm2285, %v2349, %v2351
        %2357 = vrot.lane.b32.xlu0 %v2225, 64
        %v2358 = vpop.permute.xlu0 %2357
        %2359 = vrot.lane.b32.xlu0 %v2227, 64
        %v2360 = vpop.permute.xlu0 %2359
        %v2361 = vsel %vm2085, %v2358, %v2360
        %v2363 = vsel %vm2265, %v2203, %v2335
        %v2364 = vsel %vm2275, %v2338, %v2342
        %v2365 = vsel %vm2285, %v2345, %v2349
        %v2366 = vsel %vm2085, %v2352, %v2358
        %2367 = vrot.lane.b32.xlu0 %v2213, 16
        %v2368 = vpop.permute.xlu0 %2367
        %2369 = vrot.lane.b32.xlu0 %v2215, 16
        %v2370 = vpop.permute.xlu0 %2369
        %v2371 = vsel %vm2265, %v2368, %v2370
        %2374 = vrot.lane.b32.xlu0 %v2219, 32
        %v2375 = vpop.permute.xlu0 %2374
        %2376 = vrot.lane.b32.xlu0 %v2221, 32
        %v2377 = vpop.permute.xlu0 %2376
        %v2378 = vsel %vm2275, %v2375, %v2377
        %2381 = vrot.lane.b32.xlu0 %v2225, 48
        %v2382 = vpop.permute.xlu0 %2381
        %2383 = vrot.lane.b32.xlu0 %v2227, 48
        %v2384 = vpop.permute.xlu0 %2383
        %v2385 = vsel %vm2285, %v2382, %v2384
        %2390 = vrot.lane.b32.xlu0 %v2231, 64
        %v2391 = vpop.permute.xlu0 %2390
        %2392 = vrot.lane.b32.xlu0 %v2233, 64
        %v2393 = vpop.permute.xlu0 %2392
        %v2394 = vsel %vm2085, %v2391, %v2393
        %v2396 = vsel %vm2265, %v2209, %v2368
        %v2397 = vsel %vm2275, %v2371, %v2375
        %v2398 = vsel %vm2285, %v2378, %v2382
        %v2399 = vsel %vm2085, %v2385, %v2391
        %2400 = vrot.lane.b32.xlu0 %v2219, 16
        %v2401 = vpop.permute.xlu0 %2400
        %2402 = vrot.lane.b32.xlu0 %v2221, 16
        %v2403 = vpop.permute.xlu0 %2402
        %v2404 = vsel %vm2265, %v2401, %v2403
        %2407 = vrot.lane.b32.xlu0 %v2225, 32
        %v2408 = vpop.permute.xlu0 %2407
        %2409 = vrot.lane.b32.xlu0 %v2227, 32
        %v2410 = vpop.permute.xlu0 %2409
        %v2411 = vsel %vm2275, %v2408, %v2410
        %2414 = vrot.lane.b32.xlu0 %v2231, 48
        %v2415 = vpop.permute.xlu0 %2414
        %2416 = vrot.lane.b32.xlu0 %v2233, 48
        %v2417 = vpop.permute.xlu0 %2416
        %v2418 = vsel %vm2285, %v2415, %v2417
        %2423 = vrot.lane.b32.xlu0 %v2237, 64
        %v2424 = vpop.permute.xlu0 %2423
        %2425 = vrot.lane.b32.xlu0 %v2239, 64
        %v2426 = vpop.permute.xlu0 %2425
        %v2427 = vsel %vm2085, %v2424, %v2426
        %v2429 = vsel %vm2265, %v2215, %v2401
        %v2430 = vsel %vm2275, %v2404, %v2408
        %v2431 = vsel %vm2285, %v2411, %v2415
        %v2432 = vsel %vm2085, %v2418, %v2424
        %2433 = vrot.lane.b32.xlu0 %v2225, 16
        %v2434 = vpop.permute.xlu0 %2433
        %2435 = vrot.lane.b32.xlu0 %v2227, 16
        %v2436 = vpop.permute.xlu0 %2435
        %v2437 = vsel %vm2265, %v2434, %v2436
        %2440 = vrot.lane.b32.xlu0 %v2231, 32
        %v2441 = vpop.permute.xlu0 %2440
        %2442 = vrot.lane.b32.xlu0 %v2233, 32
        %v2443 = vpop.permute.xlu0 %2442
        %v2444 = vsel %vm2275, %v2441, %v2443
        %2447 = vrot.lane.b32.xlu0 %v2237, 48
        %v2448 = vpop.permute.xlu0 %2447
        %2449 = vrot.lane.b32.xlu0 %v2239, 48
        %v2450 = vpop.permute.xlu0 %2449
        %v2451 = vsel %vm2285, %v2448, %v2450
        %2456 = vrot.lane.b32.xlu0 %v2243, 64
        %v2457 = vpop.permute.xlu0 %2456
        %2458 = vrot.lane.b32.xlu0 %v2245, 64
        %v2459 = vpop.permute.xlu0 %2458
        %v2460 = vsel %vm2085, %v2457, %v2459
        %v2462 = vsel %vm2265, %v2221, %v2434
        %v2463 = vsel %vm2275, %v2437, %v2441
        %v2464 = vsel %vm2285, %v2444, %v2448
        %v2465 = vsel %vm2085, %v2451, %v2457
        %2466 = vrot.lane.b32.xlu0 %v2231, 16
        %v2467 = vpop.permute.xlu0 %2466
        %2468 = vrot.lane.b32.xlu0 %v2233, 16
        %v2469 = vpop.permute.xlu0 %2468
        %v2470 = vsel %vm2265, %v2467, %v2469
        %2473 = vrot.lane.b32.xlu0 %v2237, 32
        %v2474 = vpop.permute.xlu0 %2473
        %2475 = vrot.lane.b32.xlu0 %v2239, 32
        %v2476 = vpop.permute.xlu0 %2475
        %v2477 = vsel %vm2275, %v2474, %v2476
        %2480 = vrot.lane.b32.xlu0 %v2243, 48
        %v2481 = vpop.permute.xlu0 %2480
        %2482 = vrot.lane.b32.xlu0 %v2245, 48
        %v2483 = vpop.permute.xlu0 %2482
        %v2484 = vsel %vm2285, %v2481, %v2483
        %2489 = vrot.lane.b32.xlu0 %v2249, 64
        %v2490 = vpop.permute.xlu0 %2489
        %2491 = vrot.lane.b32.xlu0 %v2251, 64
        %v2492 = vpop.permute.xlu0 %2491
        %v2493 = vsel %vm2085, %v2490, %v2492
        %v2495 = vsel %vm2265, %v2227, %v2467
        %v2496 = vsel %vm2275, %v2470, %v2474
        %v2497 = vsel %vm2285, %v2477, %v2481
        %v2498 = vsel %vm2085, %v2484, %v2490
        %2499 = vrot.lane.b32.xlu0 %v2237, 16
        %v2500 = vpop.permute.xlu0 %2499
        %2501 = vrot.lane.b32.xlu0 %v2239, 16
        %v2502 = vpop.permute.xlu0 %2501
        %v2503 = vsel %vm2265, %v2500, %v2502
        %2506 = vrot.lane.b32.xlu0 %v2243, 32
        %v2507 = vpop.permute.xlu0 %2506
        %2508 = vrot.lane.b32.xlu0 %v2245, 32
        %v2509 = vpop.permute.xlu0 %2508
        %v2510 = vsel %vm2275, %v2507, %v2509
        %2513 = vrot.lane.b32.xlu0 %v2249, 48
        %v2514 = vpop.permute.xlu0 %2513
        %2515 = vrot.lane.b32.xlu0 %v2251, 48
        %v2516 = vpop.permute.xlu0 %2515
        %v2517 = vsel %vm2285, %v2514, %v2516
        %2522 = vrot.lane.b32.xlu0 %v2255, 64
        %v2523 = vpop.permute.xlu0 %2522
        %2524 = vrot.lane.b32.xlu0 %v2257, 64
        %v2525 = vpop.permute.xlu0 %2524
        %v2526 = vsel %vm2085, %v2523, %v2525
        %v2528 = vsel %vm2265, %v2233, %v2500
        %v2529 = vsel %vm2275, %v2503, %v2507
        %v2530 = vsel %vm2285, %v2510, %v2514
        %v2531 = vsel %vm2085, %v2517, %v2523
        %v2532 = vld [vmem:[%s4] sm:$0xff]
        %v2533 = vld [vmem:[%s4 + $0x8] sm:$0xff]
        %v2534 = vld [vmem:[%s4 + $0x10] sm:$0xff]
        %v2535 = vld [vmem:[%s4 + $0x18] sm:$0xff]
        %v2536 = vld [vmem:[%s4 + $0x20] sm:$0xff]
        %v2537 = vld [vmem:[%s4 + $0x28] sm:$0xff]
        %v2538 = vld [vmem:[%s4 + $0x30] sm:$0xff]
        %v2539 = vld [vmem:[%s4 + $0x38] sm:$0xff]
        %v2540 = vld [vmem:[%s4 + $0x40] sm:$0xff]
        %v2541 = vld [vmem:[%s4 + $0x48] sm:$0xff]
        %v2542 = vld [vmem:[%s4 + $0x50] sm:$0xff]
        %v2543 = vld [vmem:[%s4 + $0x58] sm:$0xff]
        %v2544 = vld [vmem:[%s4 + $0x60] sm:$0xff]
        %v2545 = vld [vmem:[%s4 + $0x68] sm:$0xff]
        %v2546 = vld [vmem:[%s4 + $0x70] sm:$0xff]
        %v2547 = vld [vmem:[%s4 + $0x78] sm:$0xff]
        %v2548 = vld [vmem:[%s4 + $0x80] sm:$0xff]
        %v2549 = vld [vmem:[%s4 + $0x88] sm:$0xff]
        %v2550 = vld [vmem:[%s4 + $0x90] sm:$0xff]
        %v2551 = vld [vmem:[%s4 + $0x98] sm:$0xff]
        %v2552 = vld [vmem:[%s4 + $0xa0] sm:$0xff]
        %v2553 = vld [vmem:[%s4 + $0xa8] sm:$0xff]
        %v2554 = vld [vmem:[%s4 + $0xb0] sm:$0xff]
        %v2555 = vld [vmem:[%s4 + $0xb8] sm:$0xff]
        %v2556 = vld [vmem:[%s4 + $0xc0] sm:$0xff]
        %v2557 = vld [vmem:[%s4 + $0xc8] sm:$0xff]
        %v2558 = vld [vmem:[%s4 + $0xd0] sm:$0xff]
        %v2559 = vld [vmem:[%s4 + $0xd8] sm:$0xff]
        %v2560 = vld [vmem:[%s4 + $0xe0] sm:$0xff]
        %v2561 = vld [vmem:[%s4 + $0xe8] sm:$0xff]
        %v2562 = vld [vmem:[%s4 + $0xf0] sm:$0xff]
        %v2563 = vld [vmem:[%s4 + $0xf8] sm:$0xff]
        %v2564 = vld [vmem:[%s4 + $0x100] sm:$0xff]
        %v2565 = vld [vmem:[%s4 + $0x108] sm:$0xff]
        %v2566 = vld [vmem:[%s4 + $0x110] sm:$0xff]
        %v2567 = vld [vmem:[%s4 + $0x118] sm:$0xff]
        %v2568 = vld [vmem:[%s4 + $0x120] sm:$0xff]
        %v2569 = vld [vmem:[%s4 + $0x128] sm:$0xff]
        %v2570 = vld [vmem:[%s4 + $0x130] sm:$0xff]
        %v2571 = vld [vmem:[%s4 + $0x138] sm:$0xff]
        %v2572 = vld [vmem:[%s4 + $0x140] sm:$0xff]
        %v2573 = vld [vmem:[%s4 + $0x148] sm:$0xff]
        %v2574 = vld [vmem:[%s4 + $0x150] sm:$0xff]
        %v2575 = vld [vmem:[%s4 + $0x158] sm:$0xff]
        %v2576 = vld [vmem:[%s4 + $0x160] sm:$0xff]
        %v2577 = vld [vmem:[%s4 + $0x168] sm:$0xff]
        %v2578 = vld [vmem:[%s4 + $0x170] sm:$0xff]
        %v2579 = vld [vmem:[%s4 + $0x178] sm:$0xff]
        %v2580 = vld [vmem:[%s4 + $0x180] sm:$0xff]
        %v2581 = vld [vmem:[%s4 + $0x188] sm:$0xff]
        %v2582 = vld [vmem:[%s4 + $0x190] sm:$0xff]
        %v2583 = vld [vmem:[%s4 + $0x198] sm:$0xff]
        %v2584 = vld [vmem:[%s4 + $0x1a0] sm:$0xff]
        %v2585 = vld [vmem:[%s4 + $0x1a8] sm:$0xff]
        %v2586 = vld [vmem:[%s4 + $0x1b0] sm:$0xff]
        %v2587 = vld [vmem:[%s4 + $0x1b8] sm:$0xff]
        %v2588 = vld [vmem:[%s4 + $0x1c0] sm:$0xff]
        %v2589 = vld [vmem:[%s4 + $0x1c8] sm:$0xff]
        %v2590 = vld [vmem:[%s4 + $0x1d0] sm:$0xff]
        %v2591 = vld [vmem:[%s4 + $0x1d8] sm:$0xff]
        %v2592 = vld [vmem:[%s4 + $0x1e0] sm:$0xff]
        %v2593 = vld [vmem:[%s4 + $0x1e8] sm:$0xff]
        %v2594 = vld [vmem:[%s4 + $0x1f0] sm:$0xff]
        %v2595 = vld [vmem:[%s4 + $0x1f8] sm:$0xff]
        %v2596 = vld [vmem:[%s4 + $0x200] sm:$0xff]
        %v2597 = vld [vmem:[%s4 + $0x208] sm:$0xff]
        %v2598 = vld [vmem:[%s4 + $0x210] sm:$0xff]
        %v2599 = vld [vmem:[%s4 + $0x218] sm:$0xff]
        %v2600 = vld [vmem:[%s4 + $0x220] sm:$0xff]
        %v2601 = vld [vmem:[%s4 + $0x228] sm:$0xff]
        %v2602 = vld [vmem:[%s4 + $0x230] sm:$0xff]
        %v2603 = vld [vmem:[%s4 + $0x238] sm:$0xff]
        %v2604 = vld [vmem:[%s4 + $0x240] sm:$0xff]
        %v2605 = vld [vmem:[%s4 + $0x248] sm:$0xff]
        %v2606 = vld [vmem:[%s4 + $0x250] sm:$0xff]
        %v2607 = vld [vmem:[%s4 + $0x258] sm:$0xff]
        %v2608 = vld [vmem:[%s4 + $0x260] sm:$0xff]
        %v2609 = vld [vmem:[%s4 + $0x268] sm:$0xff]
        %v2610 = vld [vmem:[%s4 + $0x270] sm:$0xff]
        %v2611 = vld [vmem:[%s4 + $0x278] sm:$0xff]
        %v2612 = vld [vmem:[%s4 + $0x280] sm:$0xff]
        %v2613 = vld [vmem:[%s4 + $0x288] sm:$0xff]
        %v2614 = vld [vmem:[%s4 + $0x290] sm:$0xff]
        %v2615 = vld [vmem:[%s4 + $0x298] sm:$0xff]
        %v2616 = vld [vmem:[%s4 + $0x2a0] sm:$0xff]
        %v2617 = vld [vmem:[%s4 + $0x2a8] sm:$0xff]
        %v2618 = vld [vmem:[%s4 + $0x2b0] sm:$0xff]
        %v2619 = vld [vmem:[%s4 + $0x2b8] sm:$0xff]
        %v2620 = vld [vmem:[%s4 + $0x2c0] sm:$0xff]
        %v2621 = vld [vmem:[%s4 + $0x2c8] sm:$0xff]
        %v2622 = vld [vmem:[%s5] sm:$0x1]
        %v2624 = vlaneseq
        %v2625 = vshrl.u32 %v2624, 7
        %v2626 = vsub.s32 0, %v2625
        %v2627 = vrot.slane %v2622, %v2626
        %vm2629 = vcmask 654336
        %v2630 = vsel %vm2629, %v2295, 0
        %v2632 = vsel %vm2629, %v2328, 0
        %v2634 = vsel %vm2629, %v2361, 0
        %v2636 = vsel %vm2629, %v2394, 0
        %v2638 = vsel %vm2629, %v2427, 0
        %v2640 = vsel %vm2629, %v2460, 0
        %v2642 = vsel %vm2629, %v2493, 0
        %v2644 = vsel %vm2629, %v2526, 0
        %2646 = vmatprep.subr.mxu0 0.0
        %2647 = vmatpush1.msra.mxu0 %v2532
        %2648 = vmatprep.subr.mxu0 0.0
        %2649 = vmatpush1.msra.mxu0 %v2533
        %2650 = vmatprep.subr.mxu0 0.0
        %2651 = vmatpush1.msra.mxu0 %v2534
        %2652 = vmatprep.subr.mxu0 0.0
        %2653 = vmatpush1.msra.mxu0 %v2535
        %2654 = vmatprep.subr.mxu0 0.0
        %2655 = vmatpush1.msra.mxu0 %v2536
        %2656 = vmatprep.subr.mxu0 0.0
        %2657 = vmatpush1.msra.mxu0 %v2537
        %2658 = vmatprep.subr.mxu0 0.0
        %2659 = vmatpush1.msra.mxu0 %v2538
        %2660 = vmatprep.subr.mxu0 0.0
        %2661 = vmatpush1.msra.mxu0 %v2539
        %2662 = vmatprep.subr.mxu0 0.0
        %2663 = vmatpush1.msra.mxu0 %v2540
        %2664 = vmatprep.subr.mxu0 0.0
        %2665 = vmatpush1.msra.mxu0 %v2541
        %2666 = vmatprep.subr.mxu0 0.0
        %2667 = vmatpush1.msra.mxu0 %v2542
        %2668 = vmatprep.subr.mxu0 0.0
        %2669 = vmatpush1.msra.mxu0 %v2543
        %2670 = vmatprep.subr.mxu0 0.0
        %2671 = vmatpush1.msra.mxu0 %v2544
        %2672 = vmatprep.subr.mxu0 0.0
        %2673 = vmatpush1.msra.mxu0 %v2545
        %2674 = vmatprep.subr.mxu0 0.0
        %2675 = vmatpush1.msra.mxu0 %v2546
        %2676 = vmatprep.subr.mxu0 0.0
        %2677 = vmatpush1.msra.mxu0 %v2547
        %2678 = vmatprep.subr.mxu0 0.0
        %2679 = vmatpush1.msra.mxu0 %v2548
        %2680 = vmatprep.subr.mxu0 0.0
        %2681 = vmatpush1.msra.mxu0 %v2549
        %2682 = vmatprep.subr.mxu0 0.0
        %2683 = vmatpush1.msra.mxu0 %v2550
        %2684 = vmatprep.subr.mxu0 0.0
        %2685 = vmatpush1.msra.mxu0 %v2551
        %2686 = vmatprep.subr.mxu0 0.0
        %2687 = vmatpush1.msra.mxu0 %v2552
        %2688 = vmatprep.subr.mxu0 0.0
        %2689 = vmatpush1.msra.mxu0 %v2553
        %2690 = vmatprep.subr.mxu0 0.0
        %2691 = vmatpush1.msra.mxu0 %v2554
        %2692 = vmatprep.subr.mxu0 0.0
        %2693 = vmatpush1.msra.mxu0 %v2555
        %2694 = vmatprep.subr.mxu0 0.0
        %2695 = vmatpush1.msra.mxu0 %v2556
        %2696 = vmatprep.subr.mxu0 0.0
        %2697 = vmatpush1.msra.mxu0 %v2557
        %2698 = vmatprep.subr.mxu0 0.0
        %2699 = vmatpush1.msra.mxu0 %v2558
        %2700 = vmatprep.subr.mxu0 0.0
        %2701 = vmatpush1.msra.mxu0 %v2559
        %2702 = vmatprep.subr.mxu0 0.0
        %2703 = vmatpush1.msra.mxu0 %v2560
        %2704 = vmatprep.subr.mxu0 0.0
        %2705 = vmatpush1.msra.mxu0 %v2561
        %2706 = vmatprep.subr.mxu0 0.0
        %2707 = vmatpush1.msra.mxu0 %v2562
        %2708 = vmatprep.subr.mxu0 0.0
        %2709 = vmatpush1.msra.mxu0 %v2563
        %2710 = vmatprep.mubr.f32.mxu0 %v2297
        %2711 = vmatmul.mubr.f32.gmra.mrb[0].mxu0 %v2189
        %v2712 = vpop.f32.mrb[0].mxu0
        %v2713 = vadd.f32 %v2627, %v2712
        %v2714 = vpop.f32.mrb[0].mxu0
        %2715 = vmatprep.mubr.f32.mxu0 %v2330
        %2716 = vmatmul.mubr.f32.gmra.mrb[0].mxu0 %v2195
        %v2717 = vpop.f32.mrb[0].mxu0
        %v2718 = vadd.f32 %v2627, %v2717
        %v2719 = vpop.f32.mrb[0].mxu0
        %2720 = vmatprep.mubr.f32.mxu0 %v2363
        %2721 = vmatmul.mubr.f32.gmra.mrb[0].mxu0 %v2201
        %v2722 = vpop.f32.mrb[0].mxu0
        %v2723 = vadd.f32 %v2627, %v2722
        %v2724 = vpop.f32.mrb[0].mxu0
        %2725 = vmatprep.mubr.f32.mxu0 %v2396
        %2726 = vmatmul.mubr.f32.gmra.mrb[0].mxu0 %v2207
        %v2727 = vpop.f32.mrb[0].mxu0
        %v2728 = vadd.f32 %v2627, %v2727
        %v2729 = vpop.f32.mrb[0].mxu0
        %2730 = vmatprep.mubr.f32.mxu0 %v2429
        %2731 = vmatmul.mubr.f32.gmra.mrb[0].mxu0 %v2213
        %v2732 = vpop.f32.mrb[0].mxu0
        %v2733 = vadd.f32 %v2627, %v2732
        %v2734 = vpop.f32.mrb[0].mxu0
        %2735 = vmatprep.mubr.f32.mxu0 %v2462
        %2736 = vmatmul.mubr.f32.gmra.mrb[0].mxu0 %v2219
        %v2737 = vpop.f32.mrb[0].mxu0
        %v2738 = vadd.f32 %v2627, %v2737
        %v2739 = vpop.f32.mrb[0].mxu0
        %2740 = vmatprep.mubr.f32.mxu0 %v2495
        %2741 = vmatmul.mubr.f32.gmra.mrb[0].mxu0 %v2225
        %v2742 = vpop.f32.mrb[0].mxu0
        %v2743 = vadd.f32 %v2627, %v2742
        %v2744 = vpop.f32.mrb[0].mxu0
        %2745 = vmatprep.mubr.f32.mxu0 %v2528
        %2746 = vmatmul.mubr.f32.gmra.mrb[0].mxu0 %v2231
        %v2747 = vpop.f32.mrb[0].mxu0
        %v2748 = vadd.f32 %v2627, %v2747
        %v2749 = vpop.f32.mrb[0].mxu0
        %2750 = vdwg.mxu0
        %2751 = vmatprep.subr.mxu0 0.0
        %2752 = vmatpush1.msra.mxu0 %v2564
        %2753 = vmatprep.subr.mxu0 0.0
        %2754 = vmatpush1.msra.mxu0 %v2565
        %2755 = vmatprep.subr.mxu0 0.0
        %2756 = vmatpush1.msra.mxu0 %v2566
        %2757 = vmatprep.subr.mxu0 0.0
        %2758 = vmatpush1.msra.mxu0 %v2567
        %2759 = vmatprep.subr.mxu0 0.0
        %2760 = vmatpush1.msra.mxu0 %v2568
        %2761 = vmatprep.subr.mxu0 0.0
        %2762 = vmatpush1.msra.mxu0 %v2569
        %2763 = vmatprep.subr.mxu0 0.0
        %2764 = vmatpush1.msra.mxu0 %v2570
        %2765 = vmatprep.subr.mxu0 0.0
        %2766 = vmatpush1.msra.mxu0 %v2571
        %2767 = vmatprep.subr.mxu0 0.0
        %2768 = vmatpush1.msra.mxu0 %v2572
        %2769 = vmatprep.subr.mxu0 0.0
        %2770 = vmatpush1.msra.mxu0 %v2573
        %2771 = vmatprep.subr.mxu0 0.0
        %2772 = vmatpush1.msra.mxu0 %v2574
        %2773 = vmatprep.subr.mxu0 0.0
        %2774 = vmatpush1.msra.mxu0 %v2575
        %2775 = vmatprep.subr.mxu0 0.0
        %2776 = vmatpush1.msra.mxu0 %v2576
        %2777 = vmatprep.subr.mxu0 0.0
        %2778 = vmatpush1.msra.mxu0 %v2577
        %2779 = vmatprep.subr.mxu0 0.0
        %2780 = vmatpush1.msra.mxu0 %v2578
        %2781 = vmatprep.subr.mxu0 0.0
        %2782 = vmatpush1.msra.mxu0 %v2579
        %2783 = vmatprep.subr.mxu0 0.0
        %2784 = vmatpush1.msra.mxu0 %v2580
        %2785 = vmatprep.subr.mxu0 0.0
        %2786 = vmatpush1.msra.mxu0 %v2581
        %2787 = vmatprep.subr.mxu0 0.0
        %2788 = vmatpush1.msra.mxu0 %v2582
        %2789 = vmatprep.subr.mxu0 0.0
        %2790 = vmatpush1.msra.mxu0 %v2583
        %2791 = vmatprep.subr.mxu0 0.0
        %2792 = vmatpush1.msra.mxu0 %v2584
        %2793 = vmatprep.subr.mxu0 0.0
        %2794 = vmatpush1.msra.mxu0 %v2585
        %2795 = vmatprep.subr.mxu0 0.0
        %2796 = vmatpush1.msra.mxu0 %v2586
        %2797 = vmatprep.subr.mxu0 0.0
        %2798 = vmatpush1.msra.mxu0 %v2587
        %2799 = vmatprep.subr.mxu0 0.0
        %2800 = vmatpush1.msra.mxu0 %v2588
        %2801 = vmatprep.subr.mxu0 0.0
        %2802 = vmatpush1.msra.mxu0 %v2589
        %2803 = vmatprep.subr.mxu0 0.0
        %2804 = vmatpush1.msra.mxu0 %v2590
        %2805 = vmatprep.subr.mxu0 0.0
        %2806 = vmatpush1.msra.mxu0 %v2591
        %2807 = vmatprep.subr.mxu0 0.0
        %2808 = vmatpush1.msra.mxu0 %v2592
        %2809 = vmatprep.subr.mxu0 0.0
        %2810 = vmatpush1.msra.mxu0 %v2593
        %2811 = vmatprep.subr.mxu0 0.0
        %2812 = vmatpush1.msra.mxu0 %v2594
        %2813 = vmatprep.subr.mxu0 0.0
        %2814 = vmatpush1.msra.mxu0 %v2595
        %2815 = vmatprep.mubr.f32.mxu0 %v2299
        %2816 = vmatmul.mubr.f32.gmra.mrb[0].mxu0 %v2298
        %v2817 = vpop.f32.mrb[0].mxu0
        %v2818 = vadd.f32 %v2713, %v2817
        %v2819 = vpop.f32.mrb[0].mxu0
        %2820 = vmatprep.mubr.f32.mxu0 %v2332
        %2821 = vmatmul.mubr.f32.gmra.mrb[0].mxu0 %v2331
        %v2822 = vpop.f32.mrb[0].mxu0
        %v2823 = vadd.f32 %v2718, %v2822
        %v2824 = vpop.f32.mrb[0].mxu0
        %2825 = vmatprep.mubr.f32.mxu0 %v2365
        %2826 = vmatmul.mubr.f32.gmra.mrb[0].mxu0 %v2364
        %v2827 = vpop.f32.mrb[0].mxu0
        %v2828 = vadd.f32 %v2723, %v2827
        %v2829 = vpop.f32.mrb[0].mxu0
        %2830 = vmatprep.mubr.f32.mxu0 %v2398
        %2831 = vmatmul.mubr.f32.gmra.mrb[0].mxu0 %v2397
        %v2832 = vpop.f32.mrb[0].mxu0
        %v2833 = vadd.f32 %v2728, %v2832
        %v2834 = vpop.f32.mrb[0].mxu0
        %2835 = vmatprep.mubr.f32.mxu0 %v2431
        %2836 = vmatmul.mubr.f32.gmra.mrb[0].mxu0 %v2430
        %v2837 = vpop.f32.mrb[0].mxu0
        %v2838 = vadd.f32 %v2733, %v2837
        %v2839 = vpop.f32.mrb[0].mxu0
        %2840 = vmatprep.mubr.f32.mxu0 %v2464
        %2841 = vmatmul.mubr.f32.gmra.mrb[0].mxu0 %v2463
        %v2842 = vpop.f32.mrb[0].mxu0
        %v2843 = vadd.f32 %v2738, %v2842
        %v2844 = vpop.f32.mrb[0].mxu0
        %2845 = vmatprep.mubr.f32.mxu0 %v2497
        %2846 = vmatmul.mubr.f32.gmra.mrb[0].mxu0 %v2496
        %v2847 = vpop.f32.mrb[0].mxu0
        %v2848 = vadd.f32 %v2743, %v2847
        %v2849 = vpop.f32.mrb[0].mxu0
        %2850 = vmatprep.mubr.f32.mxu0 %v2530
        %2851 = vmatmul.mubr.f32.gmra.mrb[0].mxu0 %v2529
        %v2852 = vpop.f32.mrb[0].mxu0
        %v2853 = vadd.f32 %v2748, %v2852
        %v2854 = vpop.f32.mrb[0].mxu0
        %2855 = vdwg.mxu0
        %2856 = vmatprep.subr.mxu0 0.0
        %2857 = vmatpush1.msra.mxu0 %v2596
        %2858 = vmatprep.subr.mxu0 0.0
        %2859 = vmatpush1.msra.mxu0 %v2597
        %2860 = vmatprep.subr.mxu0 0.0
        %2861 = vmatpush1.msra.mxu0 %v2598
        %2862 = vmatprep.subr.mxu0 0.0
        %2863 = vmatpush1.msra.mxu0 %v2599
        %2864 = vmatprep.subr.mxu0 0.0
        %2865 = vmatpush1.msra.mxu0 %v2600
        %2866 = vmatprep.subr.mxu0 0.0
        %2867 = vmatpush1.msra.mxu0 %v2601
        %2868 = vmatprep.subr.mxu0 0.0
        %2869 = vmatpush1.msra.mxu0 %v2602
        %2870 = vmatprep.subr.mxu0 0.0
        %2871 = vmatpush1.msra.mxu0 %v2603
        %2872 = vmatprep.subr.mxu0 0.0
        %2873 = vmatpush1.msra.mxu0 %v2604
        %2874 = vmatprep.subr.mxu0 0.0
        %2875 = vmatpush1.msra.mxu0 %v2605
        %2876 = vmatprep.subr.mxu0 0.0
        %2877 = vmatpush1.msra.mxu0 %v2606
        %2878 = vmatprep.subr.mxu0 0.0
        %2879 = vmatpush1.msra.mxu0 %v2607
        %2880 = vmatprep.subr.mxu0 0.0
        %2881 = vmatpush1.msra.mxu0 %v2608
        %2882 = vmatprep.subr.mxu0 0.0
        %2883 = vmatpush1.msra.mxu0 %v2609
        %2884 = vmatprep.subr.mxu0 0.0
        %2885 = vmatpush1.msra.mxu0 %v2610
        %2886 = vmatprep.subr.mxu0 0.0
        %2887 = vmatpush1.msra.mxu0 %v2611
        %2888 = vmatprep.subr.mxu0 0.0
        %2889 = vmatpush1.msra.mxu0 %v2612
        %2890 = vmatprep.subr.mxu0 0.0
        %2891 = vmatpush1.msra.mxu0 %v2613
        %2892 = vmatprep.subr.mxu0 0.0
        %2893 = vmatpush1.msra.mxu0 %v2614
        %2894 = vmatprep.subr.mxu0 0.0
        %2895 = vmatpush1.msra.mxu0 %v2615
        %2896 = vmatprep.subr.mxu0 0.0
        %2897 = vmatpush1.msra.mxu0 %v2616
        %2898 = vmatprep.subr.mxu0 0.0
        %2899 = vmatpush1.msra.mxu0 %v2617
        %2900 = vmatprep.subr.mxu0 0.0
        %2901 = vmatpush1.msra.mxu0 %v2618
        %2902 = vmatprep.subr.mxu0 0.0
        %2903 = vmatpush1.msra.mxu0 %v2619
        %2904 = vmatprep.subr.mxu0 0.0
        %2905 = vmatpush1.msra.mxu0 %v2620
        %2906 = vmatprep.subr.mxu0 0.0
        %2907 = vmatpush1.msra.mxu0 %v2621
        %2908 = vmatprep.subr.mxu0 0.0
        %2909 = vmatpush1.msra.mxu0 0.0
        %2910 = vmatprep.subr.mxu0 0.0
        %2911 = vmatpush1.msra.mxu0 0.0
        %2912 = vmatprep.subr.mxu0 0.0
        %2913 = vmatpush1.msra.mxu0 0.0
        %2914 = vmatprep.subr.mxu0 0.0
        %2915 = vmatpush1.msra.mxu0 0.0
        %2916 = vmatprep.subr.mxu0 0.0
        %2917 = vmatpush1.msra.mxu0 0.0
        %2918 = vmatprep.subr.mxu0 0.0
        %2919 = vmatpush1.msra.mxu0 0.0
        %2920 = vmatprep.mubr.f32.mxu0 %v2630
        %2921 = vmatmul.mubr.f32.gmra.mrb[0].mxu0 %v2300
        %v2922 = vpop.f32.mrb[0].mxu0
        %v2923 = vadd.f32 %v2818, %v2922
        %v2924 = vpop.f32.mrb[0].mxu0
        %2925 = vmatprep.mubr.f32.mxu0 %v2632
        %2926 = vmatmul.mubr.f32.gmra.mrb[0].mxu0 %v2333
        %v2927 = vpop.f32.mrb[0].mxu0
        %v2928 = vadd.f32 %v2823, %v2927
        %v2929 = vpop.f32.mrb[0].mxu0
        %2930 = vmatprep.mubr.f32.mxu0 %v2634
        %2931 = vmatmul.mubr.f32.gmra.mrb[0].mxu0 %v2366
        %v2932 = vpop.f32.mrb[0].mxu0
        %v2933 = vadd.f32 %v2828, %v2932
        %v2934 = vpop.f32.mrb[0].mxu0
        %2935 = vmatprep.mubr.f32.mxu0 %v2636
        %2936 = vmatmul.mubr.f32.gmra.mrb[0].mxu0 %v2399
        %v2937 = vpop.f32.mrb[0].mxu0
        %v2938 = vadd.f32 %v2833, %v2937
        %v2939 = vpop.f32.mrb[0].mxu0
        %2940 = vmatprep.mubr.f32.mxu0 %v2638
        %2941 = vmatmul.mubr.f32.gmra.mrb[0].mxu0 %v2432
        %v2942 = vpop.f32.mrb[0].mxu0
        %v2943 = vadd.f32 %v2838, %v2942
        %v2944 = vpop.f32.mrb[0].mxu0
        %2945 = vmatprep.mubr.f32.mxu0 %v2640
        %2946 = vmatmul.mubr.f32.gmra.mrb[0].mxu0 %v2465
        %v2947 = vpop.f32.mrb[0].mxu0
        %v2948 = vadd.f32 %v2843, %v2947
        %v2949 = vpop.f32.mrb[0].mxu0
        %2950 = vmatprep.mubr.f32.mxu0 %v2642
        %2951 = vmatmul.mubr.f32.gmra.mrb[0].mxu0 %v2498
        %v2952 = vpop.f32.mrb[0].mxu0
        %v2953 = vadd.f32 %v2848, %v2952
        %v2954 = vpop.f32.mrb[0].mxu0
        %2955 = vmatprep.mubr.f32.mxu0 %v2644
        %2956 = vmatmul.mubr.f32.gmra.mrb[0].mxu0 %v2531
        %v2957 = vpop.f32.mrb[0].mxu0
        %v2958 = vadd.f32 %v2853, %v2957
        %v2959 = vpop.f32.mrb[0].mxu0
        %2960 = vdwg.mxu0
        %v2961 = vmax.f32 %v2923, 0.0
        %v2962 = vmax.f32 %v2928, 0.0
        %v2963 = vmax.f32 %v2933, 0.0
        %v2964 = vmax.f32 %v2938, 0.0
        %v2965 = vmax.f32 %v2943, 0.0
        %v2966 = vmax.f32 %v2948, 0.0
        %v2967 = vmax.f32 %v2953, 0.0
        %v2968 = vmax.f32 %v2958, 0.0
        %2977 = vrot.lane.b32.xlu0 %v2961, 127
        %v2978 = vpop.permute.xlu0 %2977
        %2979 = vrot.lane.b32.xlu0 %v2962, 127
        %v2980 = vpop.permute.xlu0 %2979
        %2981 = vrot.lane.b32.xlu0 %v2963, 127
        %v2982 = vpop.permute.xlu0 %2981
        %2983 = vrot.lane.b32.xlu0 %v2964, 127
        %v2984 = vpop.permute.xlu0 %2983
        %2985 = vrot.lane.b32.xlu0 %v2965, 127
        %v2986 = vpop.permute.xlu0 %2985
        %2987 = vrot.lane.b32.xlu0 %v2966, 127
        %v2988 = vpop.permute.xlu0 %2987
        %2989 = vrot.lane.b32.xlu0 %v2967, 127
        %v2990 = vpop.permute.xlu0 %2989
        %2991 = vrot.lane.b32.xlu0 %v2968, 127
        %v2992 = vpop.permute.xlu0 %2991
        %v3001 = vmax.f32 %v2961, %v2978
        %v3002 = vmax.f32 %v2962, %v2980
        %v3003 = vmax.f32 %v2963, %v2982
        %v3004 = vmax.f32 %v2964, %v2984
        %v3005 = vmax.f32 %v2965, %v2986
        %v3006 = vmax.f32 %v2966, %v2988
        %v3007 = vmax.f32 %v2967, %v2990
        %v3008 = vmax.f32 %v2968, %v2992
        %v3009 = vmax.f32 %v3001, %v3002
        %v3010 = vmax.f32 %v3003, %v3004
        %v3011 = vmax.f32 %v3005, %v3006
        %v3012 = vmax.f32 %v3007, %v3008
        %v3013 = vld [vmem:[%s6] sm:$0xff]
        %v3014 = vld [vmem:[%s6 + $0x8] sm:$0xff]
        %v3015 = vld [vmem:[%s6 + $0x10] sm:$0xff]
        %v3016 = vld [vmem:[%s6 + $0x18] sm:$0xff]
        %v3017 = vld [vmem:[%s6 + $0x20] sm:$0xff]
        %v3018 = vld [vmem:[%s6 + $0x28] sm:$0xff]
        %v3019 = vld [vmem:[%s6 + $0x30] sm:$0xff]
        %v3020 = vld [vmem:[%s6 + $0x38] sm:$0xff]
        %v3021 = vld [vmem:[%s6 + $0x40] sm:$0xff]
        %v3022 = vld [vmem:[%s6 + $0x48] sm:$0xff]
        %v3023 = vld [vmem:[%s6 + $0x50] sm:$0xff]
        %v3024 = vld [vmem:[%s6 + $0x58] sm:$0xff]
        %v3025 = vld [vmem:[%s6 + $0x60] sm:$0xff]
        %v3026 = vld [vmem:[%s6 + $0x68] sm:$0xff]
        %v3027 = vld [vmem:[%s6 + $0x70] sm:$0xff]
        %v3028 = vld [vmem:[%s6 + $0x78] sm:$0xff]
        %v3029 = vld [vmem:[%s6 + $0x80] sm:$0xff]
        %v3030 = vld [vmem:[%s6 + $0x88] sm:$0xff]
        %v3031 = vld [vmem:[%s6 + $0x90] sm:$0xff]
        %v3032 = vld [vmem:[%s6 + $0x98] sm:$0xff]
        %v3033 = vld [vmem:[%s6 + $0xa0] sm:$0xff]
        %v3034 = vld [vmem:[%s6 + $0xa8] sm:$0xff]
        %v3035 = vld [vmem:[%s6 + $0xb0] sm:$0xff]
        %v3036 = vld [vmem:[%s6 + $0xb8] sm:$0xff]
        %v3037 = vld [vmem:[%s6 + $0xc0] sm:$0xff]
        %v3038 = vld [vmem:[%s6 + $0xc8] sm:$0xff]
        %v3039 = vld [vmem:[%s6 + $0xd0] sm:$0xff]
        %v3040 = vld [vmem:[%s6 + $0xd8] sm:$0xff]
        %v3041 = vld [vmem:[%s6 + $0xe0] sm:$0xff]
        %v3042 = vld [vmem:[%s6 + $0xe8] sm:$0xff]
        %v3043 = vld [vmem:[%s6 + $0xf0] sm:$0xff]
        %v3044 = vld [vmem:[%s6 + $0xf8] sm:$0xff]
        %v3045 = vld [vmem:[%s6 + $0x100] sm:$0xff]
        %v3046 = vld [vmem:[%s6 + $0x108] sm:$0xff]
        %v3047 = vld [vmem:[%s6 + $0x110] sm:$0xff]
        %v3048 = vld [vmem:[%s6 + $0x118] sm:$0xff]
        %v3049 = vld [vmem:[%s6 + $0x120] sm:$0xff]
        %v3050 = vld [vmem:[%s6 + $0x128] sm:$0xff]
        %v3051 = vld [vmem:[%s6 + $0x130] sm:$0xff]
        %v3052 = vld [vmem:[%s6 + $0x138] sm:$0xff]
        %v3053 = vld [vmem:[%s6 + $0x140] sm:$0xff]
        %v3054 = vld [vmem:[%s6 + $0x148] sm:$0xff]
        %v3055 = vld [vmem:[%s6 + $0x150] sm:$0xff]
        %v3056 = vld [vmem:[%s6 + $0x158] sm:$0xff]
        %v3057 = vld [vmem:[%s6 + $0x160] sm:$0xff]
        %v3058 = vld [vmem:[%s6 + $0x168] sm:$0xff]
        %v3059 = vld [vmem:[%s6 + $0x170] sm:$0xff]
        %v3060 = vld [vmem:[%s6 + $0x178] sm:$0xff]
        %v3061 = vld [vmem:[%s6 + $0x180] sm:$0xff]
        %v3062 = vld [vmem:[%s6 + $0x188] sm:$0xff]
        %v3063 = vld [vmem:[%s6 + $0x190] sm:$0xff]
        %v3064 = vld [vmem:[%s6 + $0x198] sm:$0xff]
        %v3065 = vld [vmem:[%s6 + $0x1a0] sm:$0xff]
        %v3066 = vld [vmem:[%s6 + $0x1a8] sm:$0xff]
        %v3067 = vld [vmem:[%s6 + $0x1b0] sm:$0xff]
        %v3068 = vld [vmem:[%s6 + $0x1b8] sm:$0xff]
        %v3069 = vld [vmem:[%s6 + $0x1c0] sm:$0xff]
        %v3070 = vld [vmem:[%s6 + $0x1c8] sm:$0xff]
        %v3071 = vld [vmem:[%s6 + $0x1d0] sm:$0xff]
        %v3072 = vld [vmem:[%s6 + $0x1d8] sm:$0xff]
        %v3073 = vld [vmem:[%s6 + $0x1e0] sm:$0xff]
        %v3074 = vld [vmem:[%s6 + $0x1e8] sm:$0xff]
        %v3075 = vld [vmem:[%s6 + $0x1f0] sm:$0xff]
        %v3076 = vld [vmem:[%s6 + $0x1f8] sm:$0xff]
        %v3077 = vld [vmem:[%s7] sm:$0x1]
        %v3079 = vlaneseq
        %v3080 = vshrl.u32 %v3079, 7
        %v3081 = vsub.s32 0, %v3080
        %v3082 = vrot.slane %v3077, %v3081
        %3084 = vmatprep.subr.mxu0 0.0
        %3085 = vmatpush1.msra.mxu0 %v3013
        %3086 = vmatprep.subr.mxu0 0.0
        %3087 = vmatpush1.msra.mxu0 %v3014
        %3088 = vmatprep.subr.mxu0 0.0
        %3089 = vmatpush1.msra.mxu0 %v3015
        %3090 = vmatprep.subr.mxu0 0.0
        %3091 = vmatpush1.msra.mxu0 %v3016
        %3092 = vmatprep.subr.mxu0 0.0
        %3093 = vmatpush1.msra.mxu0 %v3017
        %3094 = vmatprep.subr.mxu0 0.0
        %3095 = vmatpush1.msra.mxu0 %v3018
        %3096 = vmatprep.subr.mxu0 0.0
        %3097 = vmatpush1.msra.mxu0 %v3019
        %3098 = vmatprep.subr.mxu0 0.0
        %3099 = vmatpush1.msra.mxu0 %v3020
        %3100 = vmatprep.subr.mxu0 0.0
        %3101 = vmatpush1.msra.mxu0 %v3021
        %3102 = vmatprep.subr.mxu0 0.0
        %3103 = vmatpush1.msra.mxu0 %v3022
        %3104 = vmatprep.subr.mxu0 0.0
        %3105 = vmatpush1.msra.mxu0 %v3023
        %3106 = vmatprep.subr.mxu0 0.0
        %3107 = vmatpush1.msra.mxu0 %v3024
        %3108 = vmatprep.subr.mxu0 0.0
        %3109 = vmatpush1.msra.mxu0 %v3025
        %3110 = vmatprep.subr.mxu0 0.0
        %3111 = vmatpush1.msra.mxu0 %v3026
        %3112 = vmatprep.subr.mxu0 0.0
        %3113 = vmatpush1.msra.mxu0 %v3027
        %3114 = vmatprep.subr.mxu0 0.0
        %3115 = vmatpush1.msra.mxu0 %v3028
        %3116 = vmatprep.subr.mxu0 0.0
        %3117 = vmatpush1.msra.mxu0 %v3029
        %3118 = vmatprep.subr.mxu0 0.0
        %3119 = vmatpush1.msra.mxu0 %v3030
        %3120 = vmatprep.subr.mxu0 0.0
        %3121 = vmatpush1.msra.mxu0 %v3031
        %3122 = vmatprep.subr.mxu0 0.0
        %3123 = vmatpush1.msra.mxu0 %v3032
        %3124 = vmatprep.subr.mxu0 0.0
        %3125 = vmatpush1.msra.mxu0 %v3033
        %3126 = vmatprep.subr.mxu0 0.0
        %3127 = vmatpush1.msra.mxu0 %v3034
        %3128 = vmatprep.subr.mxu0 0.0
        %3129 = vmatpush1.msra.mxu0 %v3035
        %3130 = vmatprep.subr.mxu0 0.0
        %3131 = vmatpush1.msra.mxu0 %v3036
        %3132 = vmatprep.subr.mxu0 0.0
        %3133 = vmatpush1.msra.mxu0 %v3037
        %3134 = vmatprep.subr.mxu0 0.0
        %3135 = vmatpush1.msra.mxu0 %v3038
        %3136 = vmatprep.subr.mxu0 0.0
        %3137 = vmatpush1.msra.mxu0 %v3039
        %3138 = vmatprep.subr.mxu0 0.0
        %3139 = vmatpush1.msra.mxu0 %v3040
        %3140 = vmatprep.subr.mxu0 0.0
        %3141 = vmatpush1.msra.mxu0 %v3041
        %3142 = vmatprep.subr.mxu0 0.0
        %3143 = vmatpush1.msra.mxu0 %v3042
        %3144 = vmatprep.subr.mxu0 0.0
        %3145 = vmatpush1.msra.mxu0 %v3043
        %3146 = vmatprep.subr.mxu0 0.0
        %3147 = vmatpush1.msra.mxu0 %v3044
        %3148 = vmatprep.mubr.f32.mxu0 %v3010
        %3149 = vmatmul.mubr.f32.gmra.mrb[0].mxu0 %v3009
        %v3150 = vpop.f32.mrb[0].mxu0
        %v3151 = vadd.f32 %v3082, %v3150
        %v3152 = vpop.f32.mrb[0].mxu0
        %3153 = vdwg.mxu0
        %3154 = vmatprep.subr.mxu0 0.0
        %3155 = vmatpush1.msra.mxu0 %v3045
        %3156 = vmatprep.subr.mxu0 0.0
        %3157 = vmatpush1.msra.mxu0 %v3046
        %3158 = vmatprep.subr.mxu0 0.0
        %3159 = vmatpush1.msra.mxu0 %v3047
        %3160 = vmatprep.subr.mxu0 0.0
        %3161 = vmatpush1.msra.mxu0 %v3048
        %3162 = vmatprep.subr.mxu0 0.0
        %3163 = vmatpush1.msra.mxu0 %v3049
        %3164 = vmatprep.subr.mxu0 0.0
        %3165 = vmatpush1.msra.mxu0 %v3050
        %3166 = vmatprep.subr.mxu0 0.0
        %3167 = vmatpush1.msra.mxu0 %v3051
        %3168 = vmatprep.subr.mxu0 0.0
        %3169 = vmatpush1.msra.mxu0 %v3052
        %3170 = vmatprep.subr.mxu0 0.0
        %3171 = vmatpush1.msra.mxu0 %v3053
        %3172 = vmatprep.subr.mxu0 0.0
        %3173 = vmatpush1.msra.mxu0 %v3054
        %3174 = vmatprep.subr.mxu0 0.0
        %3175 = vmatpush1.msra.mxu0 %v3055
        %3176 = vmatprep.subr.mxu0 0.0
        %3177 = vmatpush1.msra.mxu0 %v3056
        %3178 = vmatprep.subr.mxu0 0.0
        %3179 = vmatpush1.msra.mxu0 %v3057
        %3180 = vmatprep.subr.mxu0 0.0
        %3181 = vmatpush1.msra.mxu0 %v3058
        %3182 = vmatprep.subr.mxu0 0.0
        %3183 = vmatpush1.msra.mxu0 %v3059
        %3184 = vmatprep.subr.mxu0 0.0
        %3185 = vmatpush1.msra.mxu0 %v3060
        %3186 = vmatprep.subr.mxu0 0.0
        %3187 = vmatpush1.msra.mxu0 %v3061
        %3188 = vmatprep.subr.mxu0 0.0
        %3189 = vmatpush1.msra.mxu0 %v3062
        %3190 = vmatprep.subr.mxu0 0.0
        %3191 = vmatpush1.msra.mxu0 %v3063
        %3192 = vmatprep.subr.mxu0 0.0
        %3193 = vmatpush1.msra.mxu0 %v3064
        %3194 = vmatprep.subr.mxu0 0.0
        %3195 = vmatpush1.msra.mxu0 %v3065
        %3196 = vmatprep.subr.mxu0 0.0
        %3197 = vmatpush1.msra.mxu0 %v3066
        %3198 = vmatprep.subr.mxu0 0.0
        %3199 = vmatpush1.msra.mxu0 %v3067
        %3200 = vmatprep.subr.mxu0 0.0
        %3201 = vmatpush1.msra.mxu0 %v3068
        %3202 = vmatprep.subr.mxu0 0.0
        %3203 = vmatpush1.msra.mxu0 %v3069
        %3204 = vmatprep.subr.mxu0 0.0
        %3205 = vmatpush1.msra.mxu0 %v3070
        %3206 = vmatprep.subr.mxu0 0.0
        %3207 = vmatpush1.msra.mxu0 %v3071
        %3208 = vmatprep.subr.mxu0 0.0
        %3209 = vmatpush1.msra.mxu0 %v3072
        %3210 = vmatprep.subr.mxu0 0.0
        %3211 = vmatpush1.msra.mxu0 %v3073
        %3212 = vmatprep.subr.mxu0 0.0
        %3213 = vmatpush1.msra.mxu0 %v3074
        %3214 = vmatprep.subr.mxu0 0.0
        %3215 = vmatpush1.msra.mxu0 %v3075
        %3216 = vmatprep.subr.mxu0 0.0
        %3217 = vmatpush1.msra.mxu0 %v3076
        %3218 = vmatprep.mubr.f32.mxu0 %v3012
        %3219 = vmatmul.mubr.f32.gmra.mrb[0].mxu0 %v3011
        %v3220 = vpop.f32.mrb[0].mxu0
        %v3221 = vadd.f32 %v3151, %v3220
        %v3222 = vpop.f32.mrb[0].mxu0
        %3223 = vdwg.mxu0
        %v3224 = vmax.f32 %v3221, 0.0
        %v3225 = vld [vmem:[%s8] sm:$0xff]
        %v3226 = vld [vmem:[%s8 + $0x8] sm:$0xff]
        %v3227 = vld [vmem:[%s8 + $0x10] sm:$0xff]
        %v3228 = vld [vmem:[%s8 + $0x18] sm:$0xff]
        %v3229 = vld [vmem:[%s8 + $0x20] sm:$0xff]
        %v3230 = vld [vmem:[%s8 + $0x28] sm:$0xff]
        %v3231 = vld [vmem:[%s8 + $0x30] sm:$0xff]
        %v3232 = vld [vmem:[%s8 + $0x38] sm:$0xff]
        %v3233 = vld [vmem:[%s8 + $0x40] sm:$0xff]
        %v3234 = vld [vmem:[%s8 + $0x48] sm:$0xff]
        %v3235 = vld [vmem:[%s8 + $0x50] sm:$0xff]
        %v3236 = vld [vmem:[%s8 + $0x58] sm:$0xff]
        %v3237 = vld [vmem:[%s8 + $0x60] sm:$0xff]
        %v3238 = vld [vmem:[%s8 + $0x68] sm:$0xff]
        %v3239 = vld [vmem:[%s8 + $0x70] sm:$0xff]
        %v3240 = vld [vmem:[%s9] sm:$0x1]
        %v3242 = vlaneseq
        %v3243 = vshrl.u32 %v3242, 7
        %v3244 = vsub.s32 0, %v3243
        %v3245 = vrot.slane %v3240, %v3244
        %vm3247 = vcmask 982016
        %v3249 = vsel %vm3247, %v3224, 0
        %3251 = vmatprep.subr.mxu0 0.0
        %3252 = vmatpush1.msra.mxu0 %v3225
        %3253 = vmatprep.subr.mxu0 0.0
        %3254 = vmatpush1.msra.mxu0 %v3226
        %3255 = vmatprep.subr.mxu0 0.0
        %3256 = vmatpush1.msra.mxu0 %v3227
        %3257 = vmatprep.subr.mxu0 0.0
        %3258 = vmatpush1.msra.mxu0 %v3228
        %3259 = vmatprep.subr.mxu0 0.0
        %3260 = vmatpush1.msra.mxu0 %v3229
        %3261 = vmatprep.subr.mxu0 0.0
        %3262 = vmatpush1.msra.mxu0 %v3230
        %3263 = vmatprep.subr.mxu0 0.0
        %3264 = vmatpush1.msra.mxu0 %v3231
        %3265 = vmatprep.subr.mxu0 0.0
        %3266 = vmatpush1.msra.mxu0 %v3232
        %3267 = vmatprep.subr.mxu0 0.0
        %3268 = vmatpush1.msra.mxu0 %v3233
        %3269 = vmatprep.subr.mxu0 0.0
        %3270 = vmatpush1.msra.mxu0 %v3234
        %3271 = vmatprep.subr.mxu0 0.0
        %3272 = vmatpush1.msra.mxu0 %v3235
        %3273 = vmatprep.subr.mxu0 0.0
        %3274 = vmatpush1.msra.mxu0 %v3236
        %3275 = vmatprep.subr.mxu0 0.0
        %3276 = vmatpush1.msra.mxu0 %v3237
        %3277 = vmatprep.subr.mxu0 0.0
        %3278 = vmatpush1.msra.mxu0 %v3238
        %3279 = vmatprep.subr.mxu0 0.0
        %3280 = vmatpush1.msra.mxu0 %v3239
        %3281 = vmatprep.subr.mxu0 0.0
        %3282 = vmatpush1.msra.mxu0 0.0
        %3283 = vmatprep.subr.mxu0 0.0
        %3284 = vmatpush1.msra.mxu0 0.0
        %3285 = vmatprep.subr.mxu0 0.0
        %3286 = vmatpush1.msra.mxu0 0.0
        %3287 = vmatprep.subr.mxu0 0.0
        %3288 = vmatpush1.msra.mxu0 0.0
        %3289 = vmatprep.subr.mxu0 0.0
        %3290 = vmatpush1.msra.mxu0 0.0
        %3291 = vmatprep.subr.mxu0 0.0
        %3292 = vmatpush1.msra.mxu0 0.0
        %3293 = vmatprep.subr.mxu0 0.0
        %3294 = vmatpush1.msra.mxu0 0.0
        %3295 = vmatprep.subr.mxu0 0.0
        %3296 = vmatpush1.msra.mxu0 0.0
        %3297 = vmatprep.subr.mxu0 0.0
        %3298 = vmatpush1.msra.mxu0 0.0
        %3299 = vmatprep.subr.mxu0 0.0
        %3300 = vmatpush1.msra.mxu0 0.0
        %3301 = vmatprep.subr.mxu0 0.0
        %3302 = vmatpush1.msra.mxu0 0.0
        %3303 = vmatprep.subr.mxu0 0.0
        %3304 = vmatpush1.msra.mxu0 0.0
        %3305 = vmatprep.subr.mxu0 0.0
        %3306 = vmatpush1.msra.mxu0 0.0
        %3307 = vmatprep.subr.mxu0 0.0
        %3308 = vmatpush1.msra.mxu0 0.0
        %3309 = vmatprep.subr.mxu0 0.0
        %3310 = vmatpush1.msra.mxu0 0.0
        %3311 = vmatprep.subr.mxu0 0.0
        %3312 = vmatpush1.msra.mxu0 0.0
        %3313 = vmatprep.subr.mxu0 0.0
        %3314 = vmatpush1.msra.mxu0 0.0
        %3315 = vmatprep.mubr.f32.mxu0 0.0
        %3316 = vmatmul.mubr.f32.gmra.mrb[0].mxu0 %v3249
        %v3317 = vpop.f32.mrb[0].mxu0
        %v3318 = vadd.f32 %v3245, %v3317
        %v3319 = vpop.f32.mrb[0].mxu0
        %3320 = vdwg.mxu0
        %v3321 = vmax.f32 %v3318, 0.0
        %v3322 = vld [vmem:[%s10] sm:$0xff]
        %v3323 = vld [vmem:[%s10 + $0x8] sm:$0xff]
        %v3324 = vld [vmem:[%s10 + $0x10] sm:$0xff]
        %v3325 = vld [vmem:[%s10 + $0x18] sm:$0xff]
        %v3326 = vld [vmem:[%s10 + $0x20] sm:$0xff]
        %v3327 = vld [vmem:[%s10 + $0x28] sm:$0xff]
        %v3328 = vld [vmem:[%s10 + $0x30] sm:$0xff]
        %v3329 = vld [vmem:[%s10 + $0x38] sm:$0xff]
        %v3330 = vld [vmem:[%s10 + $0x40] sm:$0xff]
        %v3331 = vld [vmem:[%s10 + $0x48] sm:$0xff]
        %v3332 = vld [vmem:[%s10 + $0x50] sm:$0xf]
        %v3333 = vld [vmem:[%s11] sm:$0x1]
        %v3335 = vlaneseq
        %v3336 = vshrl.u32 %v3335, 7
        %v3337 = vsub.s32 0, %v3336
        %v3338 = vrot.slane %v3333, %v3337
        %v3341 = vsel %vm1047, %v3321, 0
        %v3344 = vsel %vm868, %v3332, 0
        %3346 = vmatprep.subr.mxu0 0.0
        %3347 = vmatpush1.msra.mxu0 %v3322
        %3348 = vmatprep.subr.mxu0 0.0
        %3349 = vmatpush1.msra.mxu0 %v3323
        %3350 = vmatprep.subr.mxu0 0.0
        %3351 = vmatpush1.msra.mxu0 %v3324
        %3352 = vmatprep.subr.mxu0 0.0
        %3353 = vmatpush1.msra.mxu0 %v3325
        %3354 = vmatprep.subr.mxu0 0.0
        %3355 = vmatpush1.msra.mxu0 %v3326
        %3356 = vmatprep.subr.mxu0 0.0
        %3357 = vmatpush1.msra.mxu0 %v3327
        %3358 = vmatprep.subr.mxu0 0.0
        %3359 = vmatpush1.msra.mxu0 %v3328
        %3360 = vmatprep.subr.mxu0 0.0
        %3361 = vmatpush1.msra.mxu0 %v3329
        %3362 = vmatprep.subr.mxu0 0.0
        %3363 = vmatpush1.msra.mxu0 %v3330
        %3364 = vmatprep.subr.mxu0 0.0
        %3365 = vmatpush1.msra.mxu0 %v3331
        %3366 = vmatprep.subr.mxu0 0.0
        %3367 = vmatpush1.msra.mxu0 %v3344
        %3368 = vmatprep.subr.mxu0 0.0
        %3369 = vmatpush1.msra.mxu0 0.0
        %3370 = vmatprep.subr.mxu0 0.0
        %3371 = vmatpush1.msra.mxu0 0.0
        %3372 = vmatprep.subr.mxu0 0.0
        %3373 = vmatpush1.msra.mxu0 0.0
        %3374 = vmatprep.subr.mxu0 0.0
        %3375 = vmatpush1.msra.mxu0 0.0
        %3376 = vmatprep.subr.mxu0 0.0
        %3377 = vmatpush1.msra.mxu0 0.0
        %3378 = vmatprep.subr.mxu0 0.0
        %3379 = vmatpush1.msra.mxu0 0.0
        %3380 = vmatprep.subr.mxu0 0.0
        %3381 = vmatpush1.msra.mxu0 0.0
        %3382 = vmatprep.subr.mxu0 0.0
        %3383 = vmatpush1.msra.mxu0 0.0
        %3384 = vmatprep.subr.mxu0 0.0
        %3385 = vmatpush1.msra.mxu0 0.0
        %3386 = vmatprep.subr.mxu0 0.0
        %3387 = vmatpush1.msra.mxu0 0.0
        %3388 = vmatprep.subr.mxu0 0.0
        %3389 = vmatpush1.msra.mxu0 0.0
        %3390 = vmatprep.subr.mxu0 0.0
        %3391 = vmatpush1.msra.mxu0 0.0
        %3392 = vmatprep.subr.mxu0 0.0
        %3393 = vmatpush1.msra.mxu0 0.0
        %3394 = vmatprep.subr.mxu0 0.0
        %3395 = vmatpush1.msra.mxu0 0.0
        %3396 = vmatprep.subr.mxu0 0.0
        %3397 = vmatpush1.msra.mxu0 0.0
        %3398 = vmatprep.subr.mxu0 0.0
        %3399 = vmatpush1.msra.mxu0 0.0
        %3400 = vmatprep.subr.mxu0 0.0
        %3401 = vmatpush1.msra.mxu0 0.0
        %3402 = vmatprep.subr.mxu0 0.0
        %3403 = vmatpush1.msra.mxu0 0.0
        %3404 = vmatprep.subr.mxu0 0.0
        %3405 = vmatpush1.msra.mxu0 0.0
        %3406 = vmatprep.subr.mxu0 0.0
        %3407 = vmatpush1.msra.mxu0 0.0
        %3408 = vmatprep.subr.mxu0 0.0
        %3409 = vmatpush1.msra.mxu0 0.0
        %3410 = vmatprep.mubr.f32.mxu0 0.0
        %3411 = vmatmul.mubr.f32.gmra.mrb[0].mxu0 %v3341
        %v3412 = vpop.f32.mrb[0].mxu0
        %v3413 = vadd.f32 %v3338, %v3412
        %v3414 = vpop.f32.mrb[0].mxu0
        %3415 = vdwg.mxu0
        %3416 = vst [vmem:[%s409] sm:$0xff] %v3413
        %s3417 = sand.u32 %s291, 1
        %s3418 = scalar_lea.sflag [#allocation3], %s3417
        %s3419 = sand.u32 %s291, 1
        %s3420 = smul.addr %s3419, 8
        %s3421 = scalar_lea.vmem [#allocation2], %s3420
        // Predicated region
        $region69: #{net_forward.1} parent=67 // pred_check
          %p3422 = pneg %p301
        $region70: #{net_forward.1} parent=67 // pred_check_branch
          %3424 = sbr.rel (%p3422) target = $region72
        $region71: #{net_forward.1} parent=67 // pred_region
          %s3426 = ssub.s32 128, 128
          %3427 = vsyncadd %s3418, %s3426
          %s3428 = smul.addr %s26, 128
          %s3429 = scalar_lea.hbm %s12, %s3428
          %s3431 = sshll.u32 %s3421, 4
          %s3432 = int_to_ptr.vmem [resolvable:$true] %s3431
          %3434 = dma.vmem_to_hbm [thread:$0]  %s3432, 128, %s3429, %s3418
        $region72: #{net_forward.1} parent=67 // pred_fallthru
          _
      $region68: #{net_forward.1} parent=5 // pred_fallthru
        _
      %p3435 = scmp.le.s32.totalorder 2, %s21
      // Predicated region
      $region73: #{net_forward.1} parent=5 // pred_check
        %p3436 = pneg %p3435
      $region74: #{net_forward.1} parent=5 // pred_check_branch
        %3438 = sbr.rel (%p3436) target = $region76
      $region75: #{net_forward.1} parent=5 // pred_region
        %s3439 = ssub.s32 %s21, 2
        // Predicated region
        $region77: #{net_forward.1} parent=75 // pred_check
          %p3440 = pneg %p307
        $region78: #{net_forward.1} parent=75 // pred_check_branch
          %3442 = sbr.rel (%p3440) target = $region80
        $region79: #{net_forward.1} parent=75 // pred_region
          %s3443 = sand.u32 %s292, 1
          %s3444 = scalar_lea.sflag [#allocation3], %s3443
          %s3445 = sand.u32 %s292, 1
          %s3446 = smul.addr %s3445, 8
          %s3447 = scalar_lea.vmem [#allocation2], %s3446
          %3448 = dma.done %s3444, 128
        $region80: #{net_forward.1} parent=75 // pred_fallthru
          _
      $region76: #{net_forward.1} parent=5 // pred_fallthru
        _
    $region6: #{net_forward.1} parent=1 // loop_footer
      %s25 = sadd.s32 1, %s21
    $region7: #{net_forward.1} parent=1 // loop_footer_branch
      %20 = sbr.rel target = $region3
    $region8: #{net_forward.1} parent=1 // loop_exit
      _
    %3449 = vsyncpa [#allocation3], 1
    %s3450 = scalar_lea.sflag [#allocation3], 1
    %3451 = vsyncpa %s3450, 1

</llo_original>
